<compile_context>
chip_gen: v7x
topology: tpu7x:2x2x1
jax: 0.10.0
libtpu: 0.0.40
codegen_flags: <defaults>
</compile_context>

<pallas_src>
import functools

import jax
import jax.numpy as jnp
from jax.experimental import pallas as pl
from jax.experimental.pallas import tpu as pltpu

BN_EPS = 1e-5
LANE = 128

# Row layout of the packed [NUM_ROWS, row_w] parameter slab (all widths are
# multiples of 128, so every kernel-side slice is lane-aligned).
ROW_ENC0_G = 0
ROW_ENC0_B = 1
ROW_ENC1_G = 2
ROW_ENC1_B = 3
ROW_HEAD_B = 4   # [mu_b @ lanes 0.. | lv_b @ lanes LAT_PAD..], width 2*LAT_PAD
ROW_DEC0_G = 5
ROW_DEC0_B = 6
ROW_DEC1_G = 7
ROW_DEC1_B = 8
ROW_OUT_B = 9    # width IN_PAD
NUM_ROWS = 10


def _round_up(n, m):
    return ((n + m - 1) // m) * m


def _bn_relu(x, gamma, beta):
    """Training-mode BatchNorm1d (biased variance) + ReLU, all in f32.

    Mean-centered variance (two passes over in-vreg data) for accuracy.
    Padded lanes: x == 0 and gamma == beta == 0  =>  output stays exactly 0.
    """
    mean = jnp.mean(x, axis=0, keepdims=True)
    xc = x - mean
    var = jnp.mean(xc * xc, axis=0, keepdims=True)
    scale = gamma * jax.lax.rsqrt(var + BN_EPS)
    return jnp.maximum(xc * scale + beta, 0.0)


def _vae_kernel(in_p, h0_p, h1_p, lat_p,
                scale_ref,                       # (1,1) SMEM: eps_scaling
                x_ref, eps_ref, rows_ref,        # activations + packed rows
                e0w_ref, e1w_ref, hw_ref,        # encoder weights (+ merged head)
                d0w_ref, d1w_ref, ow_ref,        # decoder weights
                out_ref):                        # [B, in_p + 2*lat_p] packed output

    def row(i, w):
        # w is always a multiple of 128 -> aligned, unmasked [1, w] view.
        return rows_ref[i:i + 1, :w]

    def mm(a, w_ref):
        # bf16 MXU matmul, f32 accumulation.
        return jnp.dot(a.astype(jnp.bfloat16), w_ref[...],
                       preferred_element_type=jnp.float32)

    x = x_ref[...]

    # ---- encoder (pre-BN biases omitted: cancelled by the batch mean) ----
    h = _bn_relu(mm(x, e0w_ref), row(ROW_ENC0_G, h0_p), row(ROW_ENC0_B, h0_p))
    h = _bn_relu(mm(h, e1w_ref), row(ROW_ENC1_G, h1_p), row(ROW_ENC1_B, h1_p))

    # ---- merged mu|logvar head: one matmul, vreg-aligned halves ----
    head = mm(h, hw_ref) + row(ROW_HEAD_B, 2 * lat_p)   # [B, 2*lat_p]
    mu = head[:, :lat_p]                                 # lanes [0, lat_p)
    logvar = head[:, lat_p:2 * lat_p]                    # lanes [lat_p, 2*lat_p)

    # ---- reparameterize (padded lanes: mu=0, logvar=0, eps=0 -> z=0) ----
    std = jnp.exp(logvar * 0.5)
    z = mu + std * (eps_ref[...] * scale_ref[0, 0])

    # ---- decoder ----
    h = _bn_relu(mm(z, d0w_ref), row(ROW_DEC0_G, h1_p), row(ROW_DEC0_B, h1_p))
    h = _bn_relu(mm(h, d1w_ref), row(ROW_DEC1_G, h0_p), row(ROW_DEC1_B, h0_p))
    recon = jax.nn.sigmoid(mm(h, ow_ref) + row(ROW_OUT_B, in_p))

    # ---- lane-aligned segment stores (no concat, no masked stores) ----
    out_ref[:, :in_p] = recon
    out_ref[:, in_p:in_p + 2 * lat_p] = head


# ---------------------------------------------------------------------------
# Parameter packing: pad every feature dim to a multiple of 128, cast weights
# to bf16, pack all tiny bias/gamma/beta rows into one lane-aligned slab.
# ---------------------------------------------------------------------------
def pack_params(params, input_size, latent):
    h0 = params["enc0_w"].shape[1]
    h1 = params["enc1_w"].shape[1]

    in_p = _round_up(input_size, LANE)
    h0_p = _round_up(h0, LANE)
    h1_p = _round_up(h1, LANE)
    lat_p = _round_up(latent, LANE)
    row_w = max(h0_p, h1_p, 2 * lat_p, in_p)

    def pad_w(w, r, c):
        w = jnp.asarray(w, jnp.float32)
        w = jnp.pad(w, ((0, r - w.shape[0]), (0, c - w.shape[1])))
        return w.astype(jnp.bfloat16)

    def row(v, off=0):
        v = jnp.asarray(v, jnp.float32).ravel()
        r = jnp.zeros((1, row_w), jnp.float32)
        return r.at[0, off:off + v.shape[0]].set(v)

    # Merged mu|logvar head weight: mu -> cols [0, latent), lv -> [lat_p, lat_p+latent)
    head_w = jnp.zeros((h1, 2 * lat_p), jnp.float32)
    head_w = head_w.at[:, :latent].set(jnp.asarray(params["mu_w"], jnp.float32))
    head_w = head_w.at[:, lat_p:lat_p + latent].set(jnp.asarray(params["lv_w"], jnp.float32))
    head_w = jnp.pad(head_w, ((0, h1_p - h1), (0, 0))).astype(jnp.bfloat16)

    head_b = (row(params["mu_b"], 0)[0] + row(params["lv_b"], lat_p)[0]).reshape(1, -1)

    rows = jnp.concatenate([
        row(params["enc0_g"]), row(params["enc0_beta"]),
        row(params["enc1_g"]), row(params["enc1_beta"]),
        head_b,
        row(params["dec0_g"]), row(params["dec0_beta"]),
        row(params["dec1_g"]), row(params["dec1_beta"]),
        row(params["out_b"]),
    ], axis=0)                                            # [NUM_ROWS, row_w] f32

    return {
        "rows": rows,
        "enc0_w": pad_w(params["enc0_w"], in_p, h0_p),
        "enc1_w": pad_w(params["enc1_w"], h0_p, h1_p),
        "head_w": head_w,
        "dec0_w": pad_w(params["dec0_w"], lat_p, h1_p),
        "dec1_w": pad_w(params["dec1_w"], h1_p, h0_p),
        "out_w": pad_w(params["out_w"], h0_p, in_p),
        "dims": (input_size, h0, h1, latent),
        "pdims": (in_p, h0_p, h1_p, lat_p),
    }


def _vmem_limit_bytes(operand_bytes):
    # Headroom for intermediates / compiler scratch, but stay well under
    # v7x's 64 MiB physical VMEM (v5e/v6e have 128 MiB).
    want = 4 * operand_bytes + (8 << 20)
    return int(min(max(want, 16 << 20), 48 << 20))


def vae_forward(x, eps, packed, eps_scaling):
    """x: [B, input_size] f32, eps: [B, latent] f32 unit-normal draw."""
    B = x.shape[0]
    input_size, h0, h1, latent = packed["dims"]
    in_p, h0_p, h1_p, lat_p = packed["pdims"]

    # Lane-pad activations in the wrapper (one-time layout plumbing).
    x_p = jnp.pad(jnp.asarray(x, jnp.float32), ((0, 0), (0, in_p - input_size)))
    eps_p = jnp.pad(jnp.asarray(eps, jnp.float32), ((0, 0), (0, lat_p - latent)))

    out_w = in_p + 2 * lat_p
    kernel = functools.partial(_vae_kernel, in_p, h0_p, h1_p, lat_p)

    smem = pl.BlockSpec(memory_space=pltpu.MemorySpace.SMEM)
    vmem = pl.BlockSpec(memory_space=pltpu.MemorySpace.VMEM)

    scale_arr = jnp.full((1, 1), eps_scaling, jnp.float32)

    operands = (scale_arr, x_p, eps_p, packed["rows"],
                packed["enc0_w"], packed["enc1_w"], packed["head_w"],
                packed["dec0_w"], packed["dec1_w"], packed["out_w"])
    operand_bytes = sum(int(o.size) * o.dtype.itemsize for o in operands)
    operand_bytes += B * out_w * 4

    out_packed = pl.pallas_call(
        kernel,
        out_shape=jax.ShapeDtypeStruct((B, out_w), jnp.float32),
        in_specs=[smem] + [vmem] * 9,
        out_specs=vmem,
        compiler_params=pltpu.CompilerParams(
            vmem_limit_bytes=_vmem_limit_bytes(operand_bytes)),
    )(*operands)

    recon = out_packed[:, :input_size]
    mu = out_packed[:, in_p:in_p + latent]
    logvar = out_packed[:, in_p + lat_p:in_p + lat_p + latent]
    return recon, mu, logvar


# ---------------------------------------------------------------------------
# Deterministic parameter construction (shapes follow VAE.__init__).
# Pre-BN biases ARE generated (and used by the reference) to demonstrate that
# dropping them in the kernel is exact for training-mode BatchNorm.
# ---------------------------------------------------------------------------
def make_params(key, input_size, hidden_sizes, latent):
    assert len(hidden_sizes) == 2, "this script wires the 2-hidden-layer case"
    keys = iter(jax.random.split(key, 48))

    def lin(n_in, n_out):
        w = jax.random.normal(next(keys), (n_in, n_out), jnp.float32) * (1.0 / jnp.sqrt(n_in))
        b = jax.random.normal(next(keys), (1, n_out), jnp.float32) * 0.01
        return w, b

    def bn(n):
        g = 1.0 + 0.1 * jax.random.normal(next(keys), (1, n), jnp.float32)
        beta = 0.1 * jax.random.normal(next(keys), (1, n), jnp.float32)
        return g, beta

    p = {}
    p["enc0_w"], p["enc0_b"] = lin(input_size, hidden_sizes[0])
    p["enc0_g"], p["enc0_beta"] = bn(hidden_sizes[0])
    p["enc1_w"], p["enc1_b"] = lin(hidden_sizes[0], hidden_sizes[1])
    p["enc1_g"], p["enc1_beta"] = bn(hidden_sizes[1])
    p["mu_w"], p["mu_b"] = lin(hidden_sizes[1], latent)
    p["lv_w"], p["lv_b"] = lin(hidden_sizes[1], latent)
    # decoder walks reversed(hidden_sizes)
    p["dec0_w"], p["dec0_b"] = lin(latent, hidden_sizes[1])
    p["dec0_g"], p["dec0_beta"] = bn(hidden_sizes[1])
    p["dec1_w"], p["dec1_b"] = lin(hidden_sizes[1], hidden_sizes[0])
    p["dec1_g"], p["dec1_beta"] = bn(hidden_sizes[0])
    p["out_w"], p["out_b"] = lin(hidden_sizes[0], input_size)
    return p


# Pure-JAX f32 reference, faithful to the PyTorch module (keeps pre-BN biases,
# standard two-pass variance) for the correctness check.
def reference_forward(x, eps, p, eps_scaling):
    def bn_relu(h, g, b):
        m = h.mean(0, keepdims=True)
        v = ((h - m) ** 2).mean(0, keepdims=True)
        return jnp.maximum((h - m) / jnp.sqrt(v + BN_EPS) * g + b, 0.0)

    h = bn_relu(x @ p["enc0_w"] + p["enc0_b"], p["enc0_g"], p["enc0_beta"])
    h = bn_relu(h @ p["enc1_w"] + p["enc1_b"], p["enc1_g"], p["enc1_beta"])
    mu = h @ p["mu_w"] + p["mu_b"]
    logvar = h @ p["lv_w"] + p["lv_b"]
    z = mu + jnp.exp(logvar / 2) * (eps * eps_scaling)
    h = bn_relu(z @ p["dec0_w"] + p["dec0_b"], p["dec0_g"], p["dec0_beta"])
    h = bn_relu(h @ p["dec1_w"] + p["dec1_b"], p["dec1_g"], p["dec1_beta"])
    out = jax.nn.sigmoid(h @ p["out_w"] + p["out_b"])
    return out, mu, logvar


def _check(name, got, want, tol=0.1):
    # Tolerance accounts for bf16 MXU matmul inputs (f32 reference).
    err = float(jnp.max(jnp.abs(got - want)))
    scale = float(jnp.max(jnp.abs(want))) + 1e-6
    assert err <= tol * scale, f"{name}: max|err|={err:.4g} vs max|ref|={scale:.4g}"


if __name__ == "__main__":
    # Feature dims follow the module's MLP structure; batch = 256 so the MXU
    # sees a full row count per matmul (review item #5).
    B = 256
    INPUT_SIZE = 16
    HIDDEN_SIZES = [32, 32]
    LATENT = 8
    EPS_SCALING = 0.5

    key = jax.random.PRNGKey(0)
    k_x, k_eps, k_p = jax.random.split(key, 3)

    x = jax.random.normal(k_x, (B, INPUT_SIZE), jnp.float32)
    # torch.randn_like replaced by an explicit deterministic unit-normal draw.
    eps = jax.random.normal(k_eps, (B, LATENT), jnp.float32)
    params = make_params(k_p, INPUT_SIZE, HIDDEN_SIZES, LATENT)
    packed = pack_params(params, INPUT_SIZE, LATENT)

    out, mu, logvar = vae_forward(x, eps, packed, EPS_SCALING)
    jax.block_until_ready((out, mu, logvar))

    ref_out, ref_mu, ref_lv = reference_forward(x, eps, params, EPS_SCALING)
    assert out.shape == (B, INPUT_SIZE) and mu.shape == (B, LATENT) and logvar.shape == (B, LATENT)
    _check("recon", out, ref_out)
    _check("mu", mu, ref_mu)
    _check("logvar", logvar, ref_lv)

    print("KERNEL_OK")
</pallas_src>

<mosaic_0001>
module attributes {stable_mosaic.version = 11 : i64} {
  func.func @_vae_kernel(%arg0: memref<1x1xf32, #tpu.memory_space<smem>>, %arg1: memref<256x128xf32, #tpu.memory_space<vmem>>, %arg2: memref<256x128xf32, #tpu.memory_space<vmem>>, %arg3: memref<10x256xf32, #tpu.memory_space<vmem>>, %arg4: memref<128x128xbf16, #tpu.memory_space<vmem>>, %arg5: memref<128x128xbf16, #tpu.memory_space<vmem>>, %arg6: memref<128x256xbf16, #tpu.memory_space<vmem>>, %arg7: memref<128x128xbf16, #tpu.memory_space<vmem>>, %arg8: memref<128x128xbf16, #tpu.memory_space<vmem>>, %arg9: memref<128x128xbf16, #tpu.memory_space<vmem>>, %arg10: memref<256x384xf32, #tpu.memory_space<vmem>>) attributes {dimension_semantics = [], scalar_prefetch = 0 : i64, scratch_operands = 0 : i64, tpu.core_type = #tpu.core_type<tc>} {
    %c0 = arith.constant 0 : index
    %c0_0 = arith.constant 0 : index
    %0 = vector.load %arg1[%c0, %c0_0] : memref<256x128xf32, #tpu.memory_space<vmem>>, vector<256x128xf32>
    %1 = arith.truncf %0 : vector<256x128xf32> to vector<256x128xbf16>
    %c0_1 = arith.constant 0 : index
    %c0_2 = arith.constant 0 : index
    %2 = vector.load %arg4[%c0_1, %c0_2] : memref<128x128xbf16, #tpu.memory_space<vmem>>, vector<128x128xbf16>
    %cst = arith.constant dense<0.000000e+00> : vector<256x128xf32>
    %3 = tpu.matmul %1, %2, %cst {dimension_numbers = #tpu.dot_dimension_numbers<[1], [0], [0], [1], [0, 0, 1, 1], [], []>} : vector<256x128xbf16>, vector<128x128xbf16>, vector<256x128xf32> -> vector<256x128xf32>
    %c0_3 = arith.constant 0 : index
    %c0_4 = arith.constant 0 : index
    %4 = vector.load %arg3[%c0_3, %c0_4] : memref<10x256xf32, #tpu.memory_space<vmem>>, vector<1x128xf32>
    %c1 = arith.constant 1 : index
    %c0_5 = arith.constant 0 : index
    %5 = vector.load %arg3[%c1, %c0_5] : memref<10x256xf32, #tpu.memory_space<vmem>>, vector<1x128xf32>
    %cst_6 = arith.constant dense<0.000000e+00> : vector<128xf32>
    %6 = vector.multi_reduction <add>, %3, %cst_6 [0] : vector<256x128xf32> to vector<128xf32>
    %7 = vector.shape_cast %6 : vector<128xf32> to vector<1x128xf32>
    %cst_7 = arith.constant 2.560000e+02 : f32
    %8 = vector.broadcast %cst_7 : f32 to vector<1x128xf32>
    %9 = arith.divf %7, %8 : vector<1x128xf32>
    %10 = vector.broadcast %9 : vector<1x128xf32> to vector<256x128xf32>
    %11 = arith.subf %3, %10 : vector<256x128xf32>
    %12 = arith.mulf %11, %11 : vector<256x128xf32>
    %cst_8 = arith.constant dense<0.000000e+00> : vector<128xf32>
    %13 = vector.multi_reduction <add>, %12, %cst_8 [0] : vector<256x128xf32> to vector<128xf32>
    %14 = vector.shape_cast %13 : vector<128xf32> to vector<1x128xf32>
    %cst_9 = arith.constant 2.560000e+02 : f32
    %15 = vector.broadcast %cst_9 : f32 to vector<1x128xf32>
    %16 = arith.divf %14, %15 : vector<1x128xf32>
    %cst_10 = arith.constant 9.99999974E-6 : f32
    %17 = vector.broadcast %cst_10 : f32 to vector<1x128xf32>
    %18 = arith.addf %16, %17 : vector<1x128xf32>
    %19 = math.rsqrt %18 : vector<1x128xf32>
    %20 = arith.mulf %4, %19 : vector<1x128xf32>
    %21 = vector.broadcast %20 : vector<1x128xf32> to vector<256x128xf32>
    %22 = arith.mulf %11, %21 : vector<256x128xf32>
    %23 = vector.broadcast %5 : vector<1x128xf32> to vector<256x128xf32>
    %24 = arith.addf %22, %23 : vector<256x128xf32>
    %cst_11 = arith.constant 0.000000e+00 : f32
    %25 = vector.broadcast %cst_11 : f32 to vector<256x128xf32>
    %26 = arith.maximumf %24, %25 : vector<256x128xf32>
    %27 = arith.truncf %26 : vector<256x128xf32> to vector<256x128xbf16>
    %c0_12 = arith.constant 0 : index
    %c0_13 = arith.constant 0 : index
    %28 = vector.load %arg5[%c0_12, %c0_13] : memref<128x128xbf16, #tpu.memory_space<vmem>>, vector<128x128xbf16>
    %cst_14 = arith.constant dense<0.000000e+00> : vector<256x128xf32>
    %29 = tpu.matmul %27, %28, %cst_14 {dimension_numbers = #tpu.dot_dimension_numbers<[1], [0], [0], [1], [0, 0, 1, 1], [], []>} : vector<256x128xbf16>, vector<128x128xbf16>, vector<256x128xf32> -> vector<256x128xf32>
    %c2 = arith.constant 2 : index
    %c0_15 = arith.constant 0 : index
    %30 = vector.load %arg3[%c2, %c0_15] : memref<10x256xf32, #tpu.memory_space<vmem>>, vector<1x128xf32>
    %c3 = arith.constant 3 : index
    %c0_16 = arith.constant 0 : index
    %31 = vector.load %arg3[%c3, %c0_16] : memref<10x256xf32, #tpu.memory_space<vmem>>, vector<1x128xf32>
    %cst_17 = arith.constant dense<0.000000e+00> : vector<128xf32>
    %32 = vector.multi_reduction <add>, %29, %cst_17 [0] : vector<256x128xf32> to vector<128xf32>
    %33 = vector.shape_cast %32 : vector<128xf32> to vector<1x128xf32>
    %cst_18 = arith.constant 2.560000e+02 : f32
    %34 = vector.broadcast %cst_18 : f32 to vector<1x128xf32>
    %35 = arith.divf %33, %34 : vector<1x128xf32>
    %36 = vector.broadcast %35 : vector<1x128xf32> to vector<256x128xf32>
    %37 = arith.subf %29, %36 : vector<256x128xf32>
    %38 = arith.mulf %37, %37 : vector<256x128xf32>
    %cst_19 = arith.constant dense<0.000000e+00> : vector<128xf32>
    %39 = vector.multi_reduction <add>, %38, %cst_19 [0] : vector<256x128xf32> to vector<128xf32>
    %40 = vector.shape_cast %39 : vector<128xf32> to vector<1x128xf32>
    %cst_20 = arith.constant 2.560000e+02 : f32
    %41 = vector.broadcast %cst_20 : f32 to vector<1x128xf32>
    %42 = arith.divf %40, %41 : vector<1x128xf32>
    %cst_21 = arith.constant 9.99999974E-6 : f32
    %43 = vector.broadcast %cst_21 : f32 to vector<1x128xf32>
    %44 = arith.addf %42, %43 : vector<1x128xf32>
    %45 = math.rsqrt %44 : vector<1x128xf32>
    %46 = arith.mulf %30, %45 : vector<1x128xf32>
    %47 = vector.broadcast %46 : vector<1x128xf32> to vector<256x128xf32>
    %48 = arith.mulf %37, %47 : vector<256x128xf32>
    %49 = vector.broadcast %31 : vector<1x128xf32> to vector<256x128xf32>
    %50 = arith.addf %48, %49 : vector<256x128xf32>
    %cst_22 = arith.constant 0.000000e+00 : f32
    %51 = vector.broadcast %cst_22 : f32 to vector<256x128xf32>
    %52 = arith.maximumf %50, %51 : vector<256x128xf32>
    %53 = arith.truncf %52 : vector<256x128xf32> to vector<256x128xbf16>
    %c0_23 = arith.constant 0 : index
    %c0_24 = arith.constant 0 : index
    %54 = vector.load %arg6[%c0_23, %c0_24] : memref<128x256xbf16, #tpu.memory_space<vmem>>, vector<128x256xbf16>
    %cst_25 = arith.constant dense<0.000000e+00> : vector<256x256xf32>
    %55 = tpu.matmul %53, %54, %cst_25 {dimension_numbers = #tpu.dot_dimension_numbers<[1], [0], [0], [1], [0, 0, 1, 1], [], []>} : vector<256x128xbf16>, vector<128x256xbf16>, vector<256x256xf32> -> vector<256x256xf32>
    %c4 = arith.constant 4 : index
    %c0_26 = arith.constant 0 : index
    %56 = vector.load %arg3[%c4, %c0_26] : memref<10x256xf32, #tpu.memory_space<vmem>>, vector<1x256xf32>
    %57 = vector.broadcast %56 : vector<1x256xf32> to vector<256x256xf32>
    %58 = arith.addf %55, %57 : vector<256x256xf32>
    %59 = vector.extract_strided_slice %58 {offsets = [0, 0], sizes = [256, 128], strides = [1, 1]} : vector<256x256xf32> to vector<256x128xf32>
    %60 = vector.extract_strided_slice %58 {offsets = [0, 128], sizes = [256, 128], strides = [1, 1]} : vector<256x256xf32> to vector<256x128xf32>
    %cst_27 = arith.constant 5.000000e-01 : f32
    %61 = vector.broadcast %cst_27 : f32 to vector<256x128xf32>
    %62 = arith.mulf %60, %61 : vector<256x128xf32>
    %63 = math.exp %62 : vector<256x128xf32>
    %c0_28 = arith.constant 0 : index
    %c0_29 = arith.constant 0 : index
    %64 = vector.load %arg2[%c0_28, %c0_29] : memref<256x128xf32, #tpu.memory_space<vmem>>, vector<256x128xf32>
    %c0_30 = arith.constant 0 : index
    %c0_31 = arith.constant 0 : index
    %65 = memref.load %arg0[%c0_30, %c0_31] : memref<1x1xf32, #tpu.memory_space<smem>>
    %66 = vector.broadcast %65 : f32 to vector<256x128xf32>
    %67 = arith.mulf %64, %66 : vector<256x128xf32>
    %68 = arith.mulf %63, %67 : vector<256x128xf32>
    %69 = arith.addf %59, %68 : vector<256x128xf32>
    %70 = arith.truncf %69 : vector<256x128xf32> to vector<256x128xbf16>
    %c0_32 = arith.constant 0 : index
    %c0_33 = arith.constant 0 : index
    %71 = vector.load %arg7[%c0_32, %c0_33] : memref<128x128xbf16, #tpu.memory_space<vmem>>, vector<128x128xbf16>
    %cst_34 = arith.constant dense<0.000000e+00> : vector<256x128xf32>
    %72 = tpu.matmul %70, %71, %cst_34 {dimension_numbers = #tpu.dot_dimension_numbers<[1], [0], [0], [1], [0, 0, 1, 1], [], []>} : vector<256x128xbf16>, vector<128x128xbf16>, vector<256x128xf32> -> vector<256x128xf32>
    %c5 = arith.constant 5 : index
    %c0_35 = arith.constant 0 : index
    %73 = vector.load %arg3[%c5, %c0_35] : memref<10x256xf32, #tpu.memory_space<vmem>>, vector<1x128xf32>
    %c6 = arith.constant 6 : index
    %c0_36 = arith.constant 0 : index
    %74 = vector.load %arg3[%c6, %c0_36] : memref<10x256xf32, #tpu.memory_space<vmem>>, vector<1x128xf32>
    %cst_37 = arith.constant dense<0.000000e+00> : vector<128xf32>
    %75 = vector.multi_reduction <add>, %72, %cst_37 [0] : vector<256x128xf32> to vector<128xf32>
    %76 = vector.shape_cast %75 : vector<128xf32> to vector<1x128xf32>
    %cst_38 = arith.constant 2.560000e+02 : f32
    %77 = vector.broadcast %cst_38 : f32 to vector<1x128xf32>
    %78 = arith.divf %76, %77 : vector<1x128xf32>
    %79 = vector.broadcast %78 : vector<1x128xf32> to vector<256x128xf32>
    %80 = arith.subf %72, %79 : vector<256x128xf32>
    %81 = arith.mulf %80, %80 : vector<256x128xf32>
    %cst_39 = arith.constant dense<0.000000e+00> : vector<128xf32>
    %82 = vector.multi_reduction <add>, %81, %cst_39 [0] : vector<256x128xf32> to vector<128xf32>
    %83 = vector.shape_cast %82 : vector<128xf32> to vector<1x128xf32>
    %cst_40 = arith.constant 2.560000e+02 : f32
    %84 = vector.broadcast %cst_40 : f32 to vector<1x128xf32>
    %85 = arith.divf %83, %84 : vector<1x128xf32>
    %cst_41 = arith.constant 9.99999974E-6 : f32
    %86 = vector.broadcast %cst_41 : f32 to vector<1x128xf32>
    %87 = arith.addf %85, %86 : vector<1x128xf32>
    %88 = math.rsqrt %87 : vector<1x128xf32>
    %89 = arith.mulf %73, %88 : vector<1x128xf32>
    %90 = vector.broadcast %89 : vector<1x128xf32> to vector<256x128xf32>
    %91 = arith.mulf %80, %90 : vector<256x128xf32>
    %92 = vector.broadcast %74 : vector<1x128xf32> to vector<256x128xf32>
    %93 = arith.addf %91, %92 : vector<256x128xf32>
    %cst_42 = arith.constant 0.000000e+00 : f32
    %94 = vector.broadcast %cst_42 : f32 to vector<256x128xf32>
    %95 = arith.maximumf %93, %94 : vector<256x128xf32>
    %96 = arith.truncf %95 : vector<256x128xf32> to vector<256x128xbf16>
    %c0_43 = arith.constant 0 : index
    %c0_44 = arith.constant 0 : index
    %97 = vector.load %arg8[%c0_43, %c0_44] : memref<128x128xbf16, #tpu.memory_space<vmem>>, vector<128x128xbf16>
    %cst_45 = arith.constant dense<0.000000e+00> : vector<256x128xf32>
    %98 = tpu.matmul %96, %97, %cst_45 {dimension_numbers = #tpu.dot_dimension_numbers<[1], [0], [0], [1], [0, 0, 1, 1], [], []>} : vector<256x128xbf16>, vector<128x128xbf16>, vector<256x128xf32> -> vector<256x128xf32>
    %c7 = arith.constant 7 : index
    %c0_46 = arith.constant 0 : index
    %99 = vector.load %arg3[%c7, %c0_46] : memref<10x256xf32, #tpu.memory_space<vmem>>, vector<1x128xf32>
    %c8 = arith.constant 8 : index
    %c0_47 = arith.constant 0 : index
    %100 = vector.load %arg3[%c8, %c0_47] : memref<10x256xf32, #tpu.memory_space<vmem>>, vector<1x128xf32>
    %cst_48 = arith.constant dense<0.000000e+00> : vector<128xf32>
    %101 = vector.multi_reduction <add>, %98, %cst_48 [0] : vector<256x128xf32> to vector<128xf32>
    %102 = vector.shape_cast %101 : vector<128xf32> to vector<1x128xf32>
    %cst_49 = arith.constant 2.560000e+02 : f32
    %103 = vector.broadcast %cst_49 : f32 to vector<1x128xf32>
    %104 = arith.divf %102, %103 : vector<1x128xf32>
    %105 = vector.broadcast %104 : vector<1x128xf32> to vector<256x128xf32>
    %106 = arith.subf %98, %105 : vector<256x128xf32>
    %107 = arith.mulf %106, %106 : vector<256x128xf32>
    %cst_50 = arith.constant dense<0.000000e+00> : vector<128xf32>
    %108 = vector.multi_reduction <add>, %107, %cst_50 [0] : vector<256x128xf32> to vector<128xf32>
    %109 = vector.shape_cast %108 : vector<128xf32> to vector<1x128xf32>
    %cst_51 = arith.constant 2.560000e+02 : f32
    %110 = vector.broadcast %cst_51 : f32 to vector<1x128xf32>
    %111 = arith.divf %109, %110 : vector<1x128xf32>
    %cst_52 = arith.constant 9.99999974E-6 : f32
    %112 = vector.broadcast %cst_52 : f32 to vector<1x128xf32>
    %113 = arith.addf %111, %112 : vector<1x128xf32>
    %114 = math.rsqrt %113 : vector<1x128xf32>
    %115 = arith.mulf %99, %114 : vector<1x128xf32>
    %116 = vector.broadcast %115 : vector<1x128xf32> to vector<256x128xf32>
    %117 = arith.mulf %106, %116 : vector<256x128xf32>
    %118 = vector.broadcast %100 : vector<1x128xf32> to vector<256x128xf32>
    %119 = arith.addf %117, %118 : vector<256x128xf32>
    %cst_53 = arith.constant 0.000000e+00 : f32
    %120 = vector.broadcast %cst_53 : f32 to vector<256x128xf32>
    %121 = arith.maximumf %119, %120 : vector<256x128xf32>
    %122 = arith.truncf %121 : vector<256x128xf32> to vector<256x128xbf16>
    %c0_54 = arith.constant 0 : index
    %c0_55 = arith.constant 0 : index
    %123 = vector.load %arg9[%c0_54, %c0_55] : memref<128x128xbf16, #tpu.memory_space<vmem>>, vector<128x128xbf16>
    %cst_56 = arith.constant dense<0.000000e+00> : vector<256x128xf32>
    %124 = tpu.matmul %122, %123, %cst_56 {dimension_numbers = #tpu.dot_dimension_numbers<[1], [0], [0], [1], [0, 0, 1, 1], [], []>} : vector<256x128xbf16>, vector<128x128xbf16>, vector<256x128xf32> -> vector<256x128xf32>
    %c9 = arith.constant 9 : index
    %c0_57 = arith.constant 0 : index
    %125 = vector.load %arg3[%c9, %c0_57] : memref<10x256xf32, #tpu.memory_space<vmem>>, vector<1x128xf32>
    %126 = vector.broadcast %125 : vector<1x128xf32> to vector<256x128xf32>
    %127 = arith.addf %124, %126 : vector<256x128xf32>
    %128 = arith.negf %127 : vector<256x128xf32>
    %129 = math.exp %128 : vector<256x128xf32>
    %cst_58 = arith.constant 1.000000e+00 : f32
    %130 = vector.broadcast %cst_58 : f32 to vector<256x128xf32>
    %131 = arith.addf %130, %129 : vector<256x128xf32>
    %132 = arith.divf %130, %131 : vector<256x128xf32>
    %c0_59 = arith.constant 0 : index
    %c0_60 = arith.constant 0 : index
    %133 = vector.load %arg10[%c0_59, %c0_60] : memref<256x384xf32, #tpu.memory_space<vmem>>, vector<256x128xf32>
    tpu.vector_store %arg10[%c0_59, %c0_60], %132 {strides = array<i32>} : memref<256x384xf32, #tpu.memory_space<vmem>>, vector<256x128xf32>,
    %c0_61 = arith.constant 0 : index
    %c128 = arith.constant 128 : index
    %134 = vector.load %arg10[%c0_61, %c128] : memref<256x384xf32, #tpu.memory_space<vmem>>, vector<256x256xf32>
    tpu.vector_store %arg10[%c0_61, %c128], %58 {strides = array<i32>} : memref<256x384xf32, #tpu.memory_space<vmem>>, vector<256x256xf32>,
    return
  }
}

</mosaic_0001>

<llo_original>
// kernel: tpu_custom_call.1
$region0: #{tpu_custom_call.1}
  #allocation0 [shape = 'u32[]', space=smem, size = 0x4, offset = 0x4, fixed_abs, tag = 'smem constant byte address 0x4 - core index']
  #allocation1 [shape = 'u32[144,128]{1,0:T(1,128)}', space=vmem, size = 0x12000, scoped, tag = 'internal scratch']
  #allocation2 [shape = 'f32[1,1]{1,0:T(1,128)S(6)}', space=smem, size = 0x200, scoped, tag = 'scoped memory for tpu_custom_call.1']
  %s0 = inlined_call_operand.<no memory space> [shape: f32[1,1], index: 0, kind: input, shape index: {}]
  %s1 = inlined_call_operand.hbm [shape: f32[256,128], index: 1, kind: input, shape index: {}]
  %s2 = inlined_call_operand.hbm [shape: f32[256,128], index: 2, kind: input, shape index: {}]
  %s3 = inlined_call_operand.hbm [shape: f32[10,256], index: 3, kind: input, shape index: {}]
  %s4 = inlined_call_operand.hbm [shape: bf16[128,128], index: 4, kind: input, shape index: {}]
  %s5 = inlined_call_operand.hbm [shape: bf16[128,128], index: 5, kind: input, shape index: {}]
  %s6 = inlined_call_operand.hbm [shape: bf16[128,256], index: 6, kind: input, shape index: {}]
  %s7 = inlined_call_operand.hbm [shape: bf16[128,128], index: 7, kind: input, shape index: {}]
  %s8 = inlined_call_operand.hbm [shape: bf16[128,128], index: 8, kind: input, shape index: {}]
  %s9 = inlined_call_operand.hbm [shape: bf16[128,128], index: 9, kind: input, shape index: {}]
  %s10 = inlined_call_operand.hbm [shape: f32[256,384], index: 10, kind: output, shape index: {}]
  %s11 = sld [smem:[#allocation0]]
  $region86: #{tpu_custom_call.1} parent=0
    _
  %s13 = ssub.s32 1, %s11
  %s14 = scalar_select 0, %s13, %s11
  %15 = sst [smem:[#allocation2]] %s0
  $region1: #{tpu_custom_call.1} parent=0
    #allocation3 [shape = 'u8[131072]{0}', space=vmem, size = 0x20000, scoped, tag = 'input window, operand 1, single buffered']
    #allocation4 [shape = 's32[1]{0}', space=sflag, size = 0x4, scoped, tag = 'scoped memory for tpu_custom_call.1']
    #allocation5 [shape = 's32[1]{0}', space=sflag, size = 0x4, scoped, tag = 'scoped memory for tpu_custom_call.1']
    #allocation6 [shape = 'u8[131072]{0}', space=vmem, size = 0x20000, scoped, tag = 'input window, operand 2, single buffered']
    #allocation7 [shape = 's32[1]{0}', space=sflag, size = 0x4, scoped, tag = 'scoped memory for tpu_custom_call.1']
    #allocation8 [shape = 'u8[16384]{0}', space=vmem, size = 0x4000, scoped, tag = 'input window, operand 3, single buffered']
    #allocation9 [shape = 'u8[32768]{0}', space=vmem, size = 0x8000, scoped, tag = 'input window, operand 4, single buffered']
    #allocation10 [shape = 's32[1]{0}', space=sflag, size = 0x4, scoped, tag = 'scoped memory for tpu_custom_call.1']
    #allocation11 [shape = 'u8[32768]{0}', space=vmem, size = 0x8000, scoped, tag = 'input window, operand 5, single buffered']
    #allocation12 [shape = 'u8[65536]{0}', space=vmem, size = 0x10000, scoped, tag = 'input window, operand 6, single buffered']
    #allocation13 [shape = 's32[1]{0}', space=sflag, size = 0x4, scoped, tag = 'scoped memory for tpu_custom_call.1']
    #allocation14 [shape = 'u8[32768]{0}', space=vmem, size = 0x8000, scoped, tag = 'input window, operand 7, single buffered']
    #allocation15 [shape = 'u8[32768]{0}', space=vmem, size = 0x8000, scoped, tag = 'input window, operand 8, single buffered']
    #allocation16 [shape = 's32[1]{0}', space=sflag, size = 0x4, scoped, tag = 'scoped memory for tpu_custom_call.1']
    #allocation17 [shape = 'u8[32768]{0}', space=vmem, size = 0x8000, scoped, tag = 'input window, operand 9, single buffered']
    #allocation18 [shape = 'u8[393216]{0}', space=vmem, size = 0x60000, scoped, tag = 'output window, operand 0, single buffered']
    %16 = vsyncpa [#allocation4], 0
    %17 = vsyncpa [#allocation7], 0
    %18 = vsyncpa [#allocation10], 0
    %19 = vsyncpa [#allocation13], 0
    %20 = vsyncpa [#allocation16], 0
    %21 = vsyncpa [#allocation5], 0
    // Predicated region
    $region2: #{tpu_custom_call.1} parent=1 // pred_check
      _
    $region3: #{tpu_custom_call.1} parent=1 // pred_check_branch
      %23 = sbr.rel (0) target = $region5
    $region4: #{tpu_custom_call.1} parent=1 // pred_region
      _
    $region5: #{tpu_custom_call.1} parent=1 // pred_fallthru
      _
    // Predicated region
    $region6: #{tpu_custom_call.1} parent=1 // pred_check
      _
    $region7: #{tpu_custom_call.1} parent=1 // pred_check_branch
      %25 = sbr.rel (0) target = $region9
    $region8: #{tpu_custom_call.1} parent=1 // pred_region
      %s27 = ssub.s32 4096, 4096
      %28 = vsyncadd [#allocation4], %s27
      %s29 = sshll.u32 [#allocation3], 4
      %s30 = int_to_ptr.vmem [resolvable:$true] %s29
      %35 = dma.hbm_to_vmem [thread:$0]  %s1, 4096, %s30, [#allocation4], 128, 128, 8
    $region9: #{tpu_custom_call.1} parent=1 // pred_fallthru
      _
    // Predicated region
    $region10: #{tpu_custom_call.1} parent=1 // pred_check
      _
    $region11: #{tpu_custom_call.1} parent=1 // pred_check_branch
      %37 = sbr.rel (0) target = $region13
    $region12: #{tpu_custom_call.1} parent=1 // pred_region
      %s39 = ssub.s32 4096, 4096
      %40 = vsyncadd [#allocation7], %s39
      %s41 = sshll.u32 [#allocation6], 4
      %s42 = int_to_ptr.vmem [resolvable:$true] %s41
      %47 = dma.hbm_to_vmem [thread:$0]  %s2, 4096, %s42, [#allocation7], 128, 128, 8
    $region13: #{tpu_custom_call.1} parent=1 // pred_fallthru
      _
    // Predicated region
    $region14: #{tpu_custom_call.1} parent=1 // pred_check
      _
    $region15: #{tpu_custom_call.1} parent=1 // pred_check_branch
      %49 = sbr.rel (0) target = $region17
    $region16: #{tpu_custom_call.1} parent=1 // pred_region
      %s51 = ssub.s32 512, 512
      %52 = vsyncadd [#allocation7], %s51
      %s53 = sshll.u32 [#allocation8], 4
      %s54 = int_to_ptr.vmem [resolvable:$true] %s53
      %59 = dma.hbm_to_vmem [thread:$0]  %s3, 512, %s54, [#allocation7], 256, 256, 16
    $region17: #{tpu_custom_call.1} parent=1 // pred_fallthru
      _
    // Predicated region
    $region18: #{tpu_custom_call.1} parent=1 // pred_check
      _
    $region19: #{tpu_custom_call.1} parent=1 // pred_check_branch
      %61 = sbr.rel (0) target = $region21
    $region20: #{tpu_custom_call.1} parent=1 // pred_region
      %s63 = ssub.s32 1024, 1024
      %64 = vsyncadd [#allocation10], %s63
      %s65 = sshll.u32 [#allocation9], 4
      %s66 = int_to_ptr.vmem [resolvable:$true] %s65
      %71 = dma.hbm_to_vmem [thread:$0]  %s4, 1024, %s66, [#allocation10], 64, 64, 4
    $region21: #{tpu_custom_call.1} parent=1 // pred_fallthru
      _
    // Predicated region
    $region22: #{tpu_custom_call.1} parent=1 // pred_check
      _
    $region23: #{tpu_custom_call.1} parent=1 // pred_check_branch
      %73 = sbr.rel (0) target = $region25
    $region24: #{tpu_custom_call.1} parent=1 // pred_region
      %s75 = ssub.s32 1024, 1024
      %76 = vsyncadd [#allocation10], %s75
      %s77 = sshll.u32 [#allocation11], 4
      %s78 = int_to_ptr.vmem [resolvable:$true] %s77
      %83 = dma.hbm_to_vmem [thread:$0]  %s5, 1024, %s78, [#allocation10], 64, 64, 4
    $region25: #{tpu_custom_call.1} parent=1 // pred_fallthru
      _
    // Predicated region
    $region26: #{tpu_custom_call.1} parent=1 // pred_check
      _
    $region27: #{tpu_custom_call.1} parent=1 // pred_check_branch
      %85 = sbr.rel (0) target = $region29
    $region28: #{tpu_custom_call.1} parent=1 // pred_region
      %s87 = ssub.s32 2048, 2048
      %88 = vsyncadd [#allocation13], %s87
      %s89 = sshll.u32 [#allocation12], 4
      %s90 = int_to_ptr.vmem [resolvable:$true] %s89
      %95 = dma.hbm_to_vmem [thread:$0]  %s6, 2048, %s90, [#allocation13], 128, 128, 8
    $region29: #{tpu_custom_call.1} parent=1 // pred_fallthru
      _
    // Predicated region
    $region30: #{tpu_custom_call.1} parent=1 // pred_check
      _
    $region31: #{tpu_custom_call.1} parent=1 // pred_check_branch
      %97 = sbr.rel (0) target = $region33
    $region32: #{tpu_custom_call.1} parent=1 // pred_region
      %s99 = ssub.s32 1024, 1024
      %100 = vsyncadd [#allocation13], %s99
      %s101 = sshll.u32 [#allocation14], 4
      %s102 = int_to_ptr.vmem [resolvable:$true] %s101
      %107 = dma.hbm_to_vmem [thread:$0]  %s7, 1024, %s102, [#allocation13], 64, 64, 4
    $region33: #{tpu_custom_call.1} parent=1 // pred_fallthru
      _
    // Predicated region
    $region34: #{tpu_custom_call.1} parent=1 // pred_check
      _
    $region35: #{tpu_custom_call.1} parent=1 // pred_check_branch
      %109 = sbr.rel (0) target = $region37
    $region36: #{tpu_custom_call.1} parent=1 // pred_region
      %s111 = ssub.s32 1024, 1024
      %112 = vsyncadd [#allocation16], %s111
      %s113 = sshll.u32 [#allocation15], 4
      %s114 = int_to_ptr.vmem [resolvable:$true] %s113
      %119 = dma.hbm_to_vmem [thread:$0]  %s8, 1024, %s114, [#allocation16], 64, 64, 4
    $region37: #{tpu_custom_call.1} parent=1 // pred_fallthru
      _
    // Predicated region
    $region38: #{tpu_custom_call.1} parent=1 // pred_check
      _
    $region39: #{tpu_custom_call.1} parent=1 // pred_check_branch
      %121 = sbr.rel (0) target = $region41
    $region40: #{tpu_custom_call.1} parent=1 // pred_region
      %s123 = ssub.s32 1024, 1024
      %124 = vsyncadd [#allocation16], %s123
      %s125 = sshll.u32 [#allocation17], 4
      %s126 = int_to_ptr.vmem [resolvable:$true] %s125
      %131 = dma.hbm_to_vmem [thread:$0]  %s9, 1024, %s126, [#allocation16], 64, 64, 4
    $region41: #{tpu_custom_call.1} parent=1 // pred_fallthru
      _
    // Predicated region
    $region42: #{tpu_custom_call.1} parent=1 // pred_check
      _
    $region43: #{tpu_custom_call.1} parent=1 // pred_check_branch
      %133 = sbr.rel (0) target = $region45
    $region44: #{tpu_custom_call.1} parent=1 // pred_region
      %134 = dma.done [#allocation4], 4096
    $region45: #{tpu_custom_call.1} parent=1 // pred_fallthru
      _
    // Predicated region
    $region46: #{tpu_custom_call.1} parent=1 // pred_check
      _
    $region47: #{tpu_custom_call.1} parent=1 // pred_check_branch
      %136 = sbr.rel (0) target = $region49
    $region48: #{tpu_custom_call.1} parent=1 // pred_region
      %137 = dma.done [#allocation7], 4096
    $region49: #{tpu_custom_call.1} parent=1 // pred_fallthru
      _
    // Predicated region
    $region50: #{tpu_custom_call.1} parent=1 // pred_check
      _
    $region51: #{tpu_custom_call.1} parent=1 // pred_check_branch
      %139 = sbr.rel (0) target = $region53
    $region52: #{tpu_custom_call.1} parent=1 // pred_region
      %140 = dma.done [#allocation7], 512
    $region53: #{tpu_custom_call.1} parent=1 // pred_fallthru
      _
    // Predicated region
    $region54: #{tpu_custom_call.1} parent=1 // pred_check
      _
    $region55: #{tpu_custom_call.1} parent=1 // pred_check_branch
      %142 = sbr.rel (0) target = $region57
    $region56: #{tpu_custom_call.1} parent=1 // pred_region
      %143 = dma.done [#allocation10], 1024
    $region57: #{tpu_custom_call.1} parent=1 // pred_fallthru
      _
    // Predicated region
    $region58: #{tpu_custom_call.1} parent=1 // pred_check
      _
    $region59: #{tpu_custom_call.1} parent=1 // pred_check_branch
      %145 = sbr.rel (0) target = $region61
    $region60: #{tpu_custom_call.1} parent=1 // pred_region
      %146 = dma.done [#allocation10], 1024
    $region61: #{tpu_custom_call.1} parent=1 // pred_fallthru
      _
    // Predicated region
    $region62: #{tpu_custom_call.1} parent=1 // pred_check
      _
    $region63: #{tpu_custom_call.1} parent=1 // pred_check_branch
      %148 = sbr.rel (0) target = $region65
    $region64: #{tpu_custom_call.1} parent=1 // pred_region
      %149 = dma.done [#allocation13], 2048
    $region65: #{tpu_custom_call.1} parent=1 // pred_fallthru
      _
    // Predicated region
    $region66: #{tpu_custom_call.1} parent=1 // pred_check
      _
    $region67: #{tpu_custom_call.1} parent=1 // pred_check_branch
      %151 = sbr.rel (0) target = $region69
    $region68: #{tpu_custom_call.1} parent=1 // pred_region
      %152 = dma.done [#allocation13], 1024
    $region69: #{tpu_custom_call.1} parent=1 // pred_fallthru
      _
    // Predicated region
    $region70: #{tpu_custom_call.1} parent=1 // pred_check
      _
    $region71: #{tpu_custom_call.1} parent=1 // pred_check_branch
      %154 = sbr.rel (0) target = $region73
    $region72: #{tpu_custom_call.1} parent=1 // pred_region
      %155 = dma.done [#allocation16], 1024
    $region73: #{tpu_custom_call.1} parent=1 // pred_fallthru
      _
    // Predicated region
    $region74: #{tpu_custom_call.1} parent=1 // pred_check
      _
    $region75: #{tpu_custom_call.1} parent=1 // pred_check_branch
      %157 = sbr.rel (0) target = $region77
    $region76: #{tpu_custom_call.1} parent=1 // pred_region
      %158 = dma.done [#allocation16], 1024
    $region77: #{tpu_custom_call.1} parent=1 // pred_fallthru
      _
    %v160 = vld [vmem:[#allocation3] sm:$0xff]
    %v161 = vld [vmem:[#allocation3 + $0x8] sm:$0xff]
    %v162 = vld [vmem:[#allocation3 + $0x10] sm:$0xff]
    %v163 = vld [vmem:[#allocation3 + $0x18] sm:$0xff]
    %v164 = vld [vmem:[#allocation3 + $0x20] sm:$0xff]
    %v165 = vld [vmem:[#allocation3 + $0x28] sm:$0xff]
    %v166 = vld [vmem:[#allocation3 + $0x30] sm:$0xff]
    %v167 = vld [vmem:[#allocation3 + $0x38] sm:$0xff]
    %v168 = vld [vmem:[#allocation3 + $0x40] sm:$0xff]
    %v169 = vld [vmem:[#allocation3 + $0x48] sm:$0xff]
    %v170 = vld [vmem:[#allocation3 + $0x50] sm:$0xff]
    %v171 = vld [vmem:[#allocation3 + $0x58] sm:$0xff]
    %v172 = vld [vmem:[#allocation3 + $0x60] sm:$0xff]
    %v173 = vld [vmem:[#allocation3 + $0x68] sm:$0xff]
    %v174 = vld [vmem:[#allocation3 + $0x70] sm:$0xff]
    %v175 = vld [vmem:[#allocation3 + $0x78] sm:$0xff]
    %v176 = vld [vmem:[#allocation3 + $0x80] sm:$0xff]
    %v177 = vld [vmem:[#allocation3 + $0x88] sm:$0xff]
    %v178 = vld [vmem:[#allocation3 + $0x90] sm:$0xff]
    %v179 = vld [vmem:[#allocation3 + $0x98] sm:$0xff]
    %v180 = vld [vmem:[#allocation3 + $0xa0] sm:$0xff]
    %v181 = vld [vmem:[#allocation3 + $0xa8] sm:$0xff]
    %v182 = vld [vmem:[#allocation3 + $0xb0] sm:$0xff]
    %v183 = vld [vmem:[#allocation3 + $0xb8] sm:$0xff]
    %v184 = vld [vmem:[#allocation3 + $0xc0] sm:$0xff]
    %v185 = vld [vmem:[#allocation3 + $0xc8] sm:$0xff]
    %v186 = vld [vmem:[#allocation3 + $0xd0] sm:$0xff]
    %v187 = vld [vmem:[#allocation3 + $0xd8] sm:$0xff]
    %v188 = vld [vmem:[#allocation3 + $0xe0] sm:$0xff]
    %v189 = vld [vmem:[#allocation3 + $0xe8] sm:$0xff]
    %v190 = vld [vmem:[#allocation3 + $0xf0] sm:$0xff]
    %v191 = vld [vmem:[#allocation3 + $0xf8] sm:$0xff]
    %v192 = vpack.c.bf16 %v161, %v160
    %v193 = vpack.c.bf16 %v163, %v162
    %v194 = vpack.c.bf16 %v165, %v164
    %v195 = vpack.c.bf16 %v167, %v166
    %v196 = vpack.c.bf16 %v169, %v168
    %v197 = vpack.c.bf16 %v171, %v170
    %v198 = vpack.c.bf16 %v173, %v172
    %v199 = vpack.c.bf16 %v175, %v174
    %v200 = vpack.c.bf16 %v177, %v176
    %v201 = vpack.c.bf16 %v179, %v178
    %v202 = vpack.c.bf16 %v181, %v180
    %v203 = vpack.c.bf16 %v183, %v182
    %v204 = vpack.c.bf16 %v185, %v184
    %v205 = vpack.c.bf16 %v187, %v186
    %v206 = vpack.c.bf16 %v189, %v188
    %v207 = vpack.c.bf16 %v191, %v190
    %v208 = vld [vmem:[#allocation9] sm:$0xf]
    %v209 = vld [vmem:[#allocation9 + $0x4] sm:$0xf]
    %v210 = vld [vmem:[#allocation9 + $0x8] sm:$0xf]
    %v211 = vld [vmem:[#allocation9 + $0xc] sm:$0xf]
    %v212 = vld [vmem:[#allocation9 + $0x10] sm:$0xf]
    %v213 = vld [vmem:[#allocation9 + $0x14] sm:$0xf]
    %v214 = vld [vmem:[#allocation9 + $0x18] sm:$0xf]
    %v215 = vld [vmem:[#allocation9 + $0x1c] sm:$0xf]
    %v216 = vld [vmem:[#allocation9 + $0x20] sm:$0xf]
    %v217 = vld [vmem:[#allocation9 + $0x24] sm:$0xf]
    %v218 = vld [vmem:[#allocation9 + $0x28] sm:$0xf]
    %v219 = vld [vmem:[#allocation9 + $0x2c] sm:$0xf]
    %v220 = vld [vmem:[#allocation9 + $0x30] sm:$0xf]
    %v221 = vld [vmem:[#allocation9 + $0x34] sm:$0xf]
    %v222 = vld [vmem:[#allocation9 + $0x38] sm:$0xf]
    %v223 = vld [vmem:[#allocation9 + $0x3c] sm:$0xf]
    %v240 = vunpack.c.l.b16 %v208
    %v241 = vunpack.c.l.b16 %v209
    %v242 = vunpack.c.l.b16 %v210
    %v243 = vunpack.c.l.b16 %v211
    %v244 = vunpack.c.l.b16 %v212
    %v245 = vunpack.c.l.b16 %v213
    %v246 = vunpack.c.l.b16 %v214
    %v247 = vunpack.c.l.b16 %v215
    %v248 = vunpack.c.l.b16 %v216
    %v249 = vunpack.c.l.b16 %v217
    %v250 = vunpack.c.l.b16 %v218
    %v251 = vunpack.c.l.b16 %v219
    %v252 = vunpack.c.l.b16 %v220
    %v253 = vunpack.c.l.b16 %v221
    %v254 = vunpack.c.l.b16 %v222
    %v255 = vunpack.c.l.b16 %v223
    %v256 = vpack.c.b16 %v241, %v240
    %v257 = vpack.c.b16 %v243, %v242
    %v258 = vpack.c.b16 %v245, %v244
    %v259 = vpack.c.b16 %v247, %v246
    %v260 = vpack.c.b16 %v249, %v248
    %v261 = vpack.c.b16 %v251, %v250
    %v262 = vpack.c.b16 %v253, %v252
    %v263 = vpack.c.b16 %v255, %v254
    %272 = vmatprep.subr.bf16.mxu0 0
    %273 = vmatpush1.bf16.msra.mxu0 %v256
    %274 = vmatprep.subr.bf16.mxu0 0
    %275 = vmatpush1.bf16.msra.mxu0 %v257
    %276 = vmatprep.subr.bf16.mxu0 0
    %277 = vmatpush1.bf16.msra.mxu0 %v258
    %278 = vmatprep.subr.bf16.mxu0 0
    %279 = vmatpush1.bf16.msra.mxu0 %v259
    %280 = vmatprep.subr.bf16.mxu0 0
    %281 = vmatpush1.bf16.msra.mxu0 %v260
    %282 = vmatprep.subr.bf16.mxu0 0
    %283 = vmatpush1.bf16.msra.mxu0 %v261
    %284 = vmatprep.subr.bf16.mxu0 0
    %285 = vmatpush1.bf16.msra.mxu0 %v262
    %286 = vmatprep.subr.bf16.mxu0 0
    %287 = vmatpush1.bf16.msra.mxu0 %v263
    %288 = vmatprep.subr.bf16.mxu0 0
    %289 = vmatpush1.bf16.msra.mxu0 0
    %290 = vmatprep.subr.bf16.mxu0 0
    %291 = vmatpush1.bf16.msra.mxu0 0
    %292 = vmatprep.subr.bf16.mxu0 0
    %293 = vmatpush1.bf16.msra.mxu0 0
    %294 = vmatprep.subr.bf16.mxu0 0
    %295 = vmatpush1.bf16.msra.mxu0 0
    %296 = vmatprep.subr.bf16.mxu0 0
    %297 = vmatpush1.bf16.msra.mxu0 0
    %298 = vmatprep.subr.bf16.mxu0 0
    %299 = vmatpush1.bf16.msra.mxu0 0
    %300 = vmatprep.subr.bf16.mxu0 0
    %301 = vmatpush1.bf16.msra.mxu0 0
    %302 = vmatprep.subr.bf16.mxu0 0
    %303 = vmatpush1.bf16.msra.mxu0 0
    %304 = vmatprep.mubr.bf16.mxu0 0
    %305 = vmatmul.mubr.bf16.gmra.mrb[0].mxu0 %v192
    %v306 = vpop.f32.mrb[0].mxu0
    %v307 = vadd.f32 0.0, %v306
    %v308 = vpop.f32.mrb[0].mxu0
    %v309 = vpop.f32.mrb[0].mxu0
    %v310 = vadd.f32 0.0, %v309
    %v311 = vpop.f32.mrb[0].mxu0
    %312 = vmatprep.mubr.bf16.mxu0 0
    %313 = vmatmul.mubr.bf16.gmra.mrb[0].mxu0 %v193
    %v314 = vpop.f32.mrb[0].mxu0
    %v315 = vadd.f32 0.0, %v314
    %v316 = vpop.f32.mrb[0].mxu0
    %v317 = vpop.f32.mrb[0].mxu0
    %v318 = vadd.f32 0.0, %v317
    %v319 = vpop.f32.mrb[0].mxu0
    %320 = vmatprep.mubr.bf16.mxu0 0
    %321 = vmatmul.mubr.bf16.gmra.mrb[0].mxu0 %v194
    %v322 = vpop.f32.mrb[0].mxu0
    %v323 = vadd.f32 0.0, %v322
    %v324 = vpop.f32.mrb[0].mxu0
    %v325 = vpop.f32.mrb[0].mxu0
    %v326 = vadd.f32 0.0, %v325
    %v327 = vpop.f32.mrb[0].mxu0
    %328 = vmatprep.mubr.bf16.mxu0 0
    %329 = vmatmul.mubr.bf16.gmra.mrb[0].mxu0 %v195
    %v330 = vpop.f32.mrb[0].mxu0
    %v331 = vadd.f32 0.0, %v330
    %v332 = vpop.f32.mrb[0].mxu0
    %v333 = vpop.f32.mrb[0].mxu0
    %v334 = vadd.f32 0.0, %v333
    %v335 = vpop.f32.mrb[0].mxu0
    %336 = vmatprep.mubr.bf16.mxu0 0
    %337 = vmatmul.mubr.bf16.gmra.mrb[0].mxu0 %v196
    %v338 = vpop.f32.mrb[0].mxu0
    %v339 = vadd.f32 0.0, %v338
    %v340 = vpop.f32.mrb[0].mxu0
    %v341 = vpop.f32.mrb[0].mxu0
    %v342 = vadd.f32 0.0, %v341
    %v343 = vpop.f32.mrb[0].mxu0
    %344 = vmatprep.mubr.bf16.mxu0 0
    %345 = vmatmul.mubr.bf16.gmra.mrb[0].mxu0 %v197
    %v346 = vpop.f32.mrb[0].mxu0
    %v347 = vadd.f32 0.0, %v346
    %v348 = vpop.f32.mrb[0].mxu0
    %v349 = vpop.f32.mrb[0].mxu0
    %v350 = vadd.f32 0.0, %v349
    %v351 = vpop.f32.mrb[0].mxu0
    %352 = vmatprep.mubr.bf16.mxu0 0
    %353 = vmatmul.mubr.bf16.gmra.mrb[0].mxu0 %v198
    %v354 = vpop.f32.mrb[0].mxu0
    %v355 = vadd.f32 0.0, %v354
    %v356 = vpop.f32.mrb[0].mxu0
    %v357 = vpop.f32.mrb[0].mxu0
    %v358 = vadd.f32 0.0, %v357
    %v359 = vpop.f32.mrb[0].mxu0
    %360 = vmatprep.mubr.bf16.mxu0 0
    %361 = vmatmul.mubr.bf16.gmra.mrb[0].mxu0 %v199
    %v362 = vpop.f32.mrb[0].mxu0
    %v363 = vadd.f32 0.0, %v362
    %v364 = vpop.f32.mrb[0].mxu0
    %v365 = vpop.f32.mrb[0].mxu0
    %v366 = vadd.f32 0.0, %v365
    %v367 = vpop.f32.mrb[0].mxu0
    %368 = vmatprep.mubr.bf16.mxu0 0
    %369 = vmatmul.mubr.bf16.gmra.mrb[0].mxu0 %v200
    %v370 = vpop.f32.mrb[0].mxu0
    %v371 = vadd.f32 0.0, %v370
    %v372 = vpop.f32.mrb[0].mxu0
    %v373 = vpop.f32.mrb[0].mxu0
    %v374 = vadd.f32 0.0, %v373
    %v375 = vpop.f32.mrb[0].mxu0
    %376 = vmatprep.mubr.bf16.mxu0 0
    %377 = vmatmul.mubr.bf16.gmra.mrb[0].mxu0 %v201
    %v378 = vpop.f32.mrb[0].mxu0
    %v379 = vadd.f32 0.0, %v378
    %v380 = vpop.f32.mrb[0].mxu0
    %v381 = vpop.f32.mrb[0].mxu0
    %v382 = vadd.f32 0.0, %v381
    %v383 = vpop.f32.mrb[0].mxu0
    %384 = vmatprep.mubr.bf16.mxu0 0
    %385 = vmatmul.mubr.bf16.gmra.mrb[0].mxu0 %v202
    %v386 = vpop.f32.mrb[0].mxu0
    %v387 = vadd.f32 0.0, %v386
    %v388 = vpop.f32.mrb[0].mxu0
    %v389 = vpop.f32.mrb[0].mxu0
    %v390 = vadd.f32 0.0, %v389
    %v391 = vpop.f32.mrb[0].mxu0
    %392 = vmatprep.mubr.bf16.mxu0 0
    %393 = vmatmul.mubr.bf16.gmra.mrb[0].mxu0 %v203
    %v394 = vpop.f32.mrb[0].mxu0
    %v395 = vadd.f32 0.0, %v394
    %v396 = vpop.f32.mrb[0].mxu0
    %v397 = vpop.f32.mrb[0].mxu0
    %v398 = vadd.f32 0.0, %v397
    %v399 = vpop.f32.mrb[0].mxu0
    %400 = vmatprep.mubr.bf16.mxu0 0
    %401 = vmatmul.mubr.bf16.gmra.mrb[0].mxu0 %v204
    %v402 = vpop.f32.mrb[0].mxu0
    %v403 = vadd.f32 0.0, %v402
    %v404 = vpop.f32.mrb[0].mxu0
    %v405 = vpop.f32.mrb[0].mxu0
    %v406 = vadd.f32 0.0, %v405
    %v407 = vpop.f32.mrb[0].mxu0
    %408 = vmatprep.mubr.bf16.mxu0 0
    %409 = vmatmul.mubr.bf16.gmra.mrb[0].mxu0 %v205
    %v410 = vpop.f32.mrb[0].mxu0
    %v411 = vadd.f32 0.0, %v410
    %v412 = vpop.f32.mrb[0].mxu0
    %v413 = vpop.f32.mrb[0].mxu0
    %v414 = vadd.f32 0.0, %v413
    %v415 = vpop.f32.mrb[0].mxu0
    %416 = vmatprep.mubr.bf16.mxu0 0
    %417 = vmatmul.mubr.bf16.gmra.mrb[0].mxu0 %v206
    %v418 = vpop.f32.mrb[0].mxu0
    %v419 = vadd.f32 0.0, %v418
    %v420 = vpop.f32.mrb[0].mxu0
    %v421 = vpop.f32.mrb[0].mxu0
    %v422 = vadd.f32 0.0, %v421
    %v423 = vpop.f32.mrb[0].mxu0
    %424 = vmatprep.mubr.bf16.mxu0 0
    %425 = vmatmul.mubr.bf16.gmra.mrb[0].mxu0 %v207
    %v426 = vpop.f32.mrb[0].mxu0
    %v427 = vadd.f32 0.0, %v426
    %v428 = vpop.f32.mrb[0].mxu0
    %v429 = vpop.f32.mrb[0].mxu0
    %v430 = vadd.f32 0.0, %v429
    %v431 = vpop.f32.mrb[0].mxu0
    %432 = vdwg.mxu0
    %v433 = vld [vmem:[#allocation8] ss:$0 sm:$0xff]
    %v434 = vld [vmem:[#allocation8 + $0x1] ss:$0 sm:$0xff]
    %v435 = vadd.f32 %v307, %v310
    %v436 = vadd.f32 %v435, %v315
    %v437 = vadd.f32 %v436, %v318
    %v438 = vadd.f32 %v437, %v323
    %v439 = vadd.f32 %v438, %v326
    %v440 = vadd.f32 %v439, %v331
    %v441 = vadd.f32 %v440, %v334
    %v442 = vadd.f32 %v441, %v339
    %v443 = vadd.f32 %v442, %v342
    %v444 = vadd.f32 %v443, %v347
    %v445 = vadd.f32 %v444, %v350
    %v446 = vadd.f32 %v445, %v355
    %v447 = vadd.f32 %v446, %v358
    %v448 = vadd.f32 %v447, %v363
    %v449 = vadd.f32 %v448, %v366
    %v450 = vadd.f32 %v449, %v371
    %v451 = vadd.f32 %v450, %v374
    %v452 = vadd.f32 %v451, %v379
    %v453 = vadd.f32 %v452, %v382
    %v454 = vadd.f32 %v453, %v387
    %v455 = vadd.f32 %v454, %v390
    %v456 = vadd.f32 %v455, %v395
    %v457 = vadd.f32 %v456, %v398
    %v458 = vadd.f32 %v457, %v403
    %v459 = vadd.f32 %v458, %v406
    %v460 = vadd.f32 %v459, %v411
    %v461 = vadd.f32 %v460, %v414
    %v462 = vadd.f32 %v461, %v419
    %v463 = vadd.f32 %v462, %v422
    %v464 = vadd.f32 %v463, %v427
    %v465 = vadd.f32 %v464, %v430
    %v466 = vrot.slane %v465, 4
    %v467 = vadd.f32 %v465, %v466
    %v468 = vrot.slane %v467, 2
    %v469 = vadd.f32 %v467, %v468
    %v470 = vrot.slane %v469, 1
    %v471 = vadd.f32 %v469, %v470
    %v472 = vrcp.pop 256.0
    %v473 = vmul.f32 %v471, %v472
    %v474 = vsub.f32 %v307, %v473
    %v475 = vsub.f32 %v310, %v473
    %v476 = vsub.f32 %v315, %v473
    %v477 = vsub.f32 %v318, %v473
    %v478 = vsub.f32 %v323, %v473
    %v479 = vsub.f32 %v326, %v473
    %v480 = vsub.f32 %v331, %v473
    %v481 = vsub.f32 %v334, %v473
    %v482 = vsub.f32 %v339, %v473
    %v483 = vsub.f32 %v342, %v473
    %v484 = vsub.f32 %v347, %v473
    %v485 = vsub.f32 %v350, %v473
    %v486 = vsub.f32 %v355, %v473
    %v487 = vsub.f32 %v358, %v473
    %v488 = vsub.f32 %v363, %v473
    %v489 = vsub.f32 %v366, %v473
    %v490 = vsub.f32 %v371, %v473
    %v491 = vsub.f32 %v374, %v473
    %v492 = vsub.f32 %v379, %v473
    %v493 = vsub.f32 %v382, %v473
    %v494 = vsub.f32 %v387, %v473
    %v495 = vsub.f32 %v390, %v473
    %v496 = vsub.f32 %v395, %v473
    %v497 = vsub.f32 %v398, %v473
    %v498 = vsub.f32 %v403, %v473
    %v499 = vsub.f32 %v406, %v473
    %v500 = vsub.f32 %v411, %v473
    %v501 = vsub.f32 %v414, %v473
    %v502 = vsub.f32 %v419, %v473
    %v503 = vsub.f32 %v422, %v473
    %v504 = vsub.f32 %v427, %v473
    %v505 = vsub.f32 %v430, %v473
    %v506 = vmul.f32 %v474, %v474
    %v507 = vmul.f32 %v475, %v475
    %v508 = vmul.f32 %v476, %v476
    %v509 = vmul.f32 %v477, %v477
    %v510 = vmul.f32 %v478, %v478
    %v511 = vmul.f32 %v479, %v479
    %v512 = vmul.f32 %v480, %v480
    %v513 = vmul.f32 %v481, %v481
    %v514 = vmul.f32 %v482, %v482
    %v515 = vmul.f32 %v483, %v483
    %v516 = vmul.f32 %v484, %v484
    %v517 = vmul.f32 %v485, %v485
    %v518 = vmul.f32 %v486, %v486
    %v519 = vmul.f32 %v487, %v487
    %v520 = vmul.f32 %v488, %v488
    %v521 = vmul.f32 %v489, %v489
    %v522 = vmul.f32 %v490, %v490
    %v523 = vmul.f32 %v491, %v491
    %v524 = vmul.f32 %v492, %v492
    %v525 = vmul.f32 %v493, %v493
    %v526 = vmul.f32 %v494, %v494
    %v527 = vmul.f32 %v495, %v495
    %v528 = vmul.f32 %v496, %v496
    %v529 = vmul.f32 %v497, %v497
    %v530 = vmul.f32 %v498, %v498
    %v531 = vmul.f32 %v499, %v499
    %v532 = vmul.f32 %v500, %v500
    %v533 = vmul.f32 %v501, %v501
    %v534 = vmul.f32 %v502, %v502
    %v535 = vmul.f32 %v503, %v503
    %v536 = vmul.f32 %v504, %v504
    %v537 = vmul.f32 %v505, %v505
    %v538 = vadd.f32 %v506, %v507
    %v539 = vadd.f32 %v538, %v508
    %v540 = vadd.f32 %v539, %v509
    %v541 = vadd.f32 %v540, %v510
    %v542 = vadd.f32 %v541, %v511
    %v543 = vadd.f32 %v542, %v512
    %v544 = vadd.f32 %v543, %v513
    %v545 = vadd.f32 %v544, %v514
    %v546 = vadd.f32 %v545, %v515
    %v547 = vadd.f32 %v546, %v516
    %v548 = vadd.f32 %v547, %v517
    %v549 = vadd.f32 %v548, %v518
    %v550 = vadd.f32 %v549, %v519
    %v551 = vadd.f32 %v550, %v520
    %v552 = vadd.f32 %v551, %v521
    %v553 = vadd.f32 %v552, %v522
    %v554 = vadd.f32 %v553, %v523
    %v555 = vadd.f32 %v554, %v524
    %v556 = vadd.f32 %v555, %v525
    %v557 = vadd.f32 %v556, %v526
    %v558 = vadd.f32 %v557, %v527
    %v559 = vadd.f32 %v558, %v528
    %v560 = vadd.f32 %v559, %v529
    %v561 = vadd.f32 %v560, %v530
    %v562 = vadd.f32 %v561, %v531
    %v563 = vadd.f32 %v562, %v532
    %v564 = vadd.f32 %v563, %v533
    %v565 = vadd.f32 %v564, %v534
    %v566 = vadd.f32 %v565, %v535
    %v567 = vadd.f32 %v566, %v536
    %v568 = vadd.f32 %v567, %v537
    %v569 = vrot.slane %v568, 4
    %v570 = vadd.f32 %v568, %v569
    %v571 = vrot.slane %v570, 2
    %v572 = vadd.f32 %v570, %v571
    %v573 = vrot.slane %v572, 1
    %v574 = vadd.f32 %v572, %v573
    %v575 = vmul.f32 %v574, %v472
    %v576 = vadd.f32 %v575, 1e-05
    %v577 = vrsqrt.pop %v576
    %v578 = vmul.f32 %v433, %v577
    %v579 = vmul.f32 %v474, %v578
    %v580 = vmul.f32 %v475, %v578
    %v581 = vmul.f32 %v476, %v578
    %v582 = vmul.f32 %v477, %v578
    %v583 = vmul.f32 %v478, %v578
    %v584 = vmul.f32 %v479, %v578
    %v585 = vmul.f32 %v480, %v578
    %v586 = vmul.f32 %v481, %v578
    %v587 = vmul.f32 %v482, %v578
    %v588 = vmul.f32 %v483, %v578
    %v589 = vmul.f32 %v484, %v578
    %v590 = vmul.f32 %v485, %v578
    %v591 = vmul.f32 %v486, %v578
    %v592 = vmul.f32 %v487, %v578
    %v593 = vmul.f32 %v488, %v578
    %v594 = vmul.f32 %v489, %v578
    %v595 = vmul.f32 %v490, %v578
    %v596 = vmul.f32 %v491, %v578
    %v597 = vmul.f32 %v492, %v578
    %v598 = vmul.f32 %v493, %v578
    %v599 = vmul.f32 %v494, %v578
    %v600 = vmul.f32 %v495, %v578
    %v601 = vmul.f32 %v496, %v578
    %v602 = vmul.f32 %v497, %v578
    %v603 = vmul.f32 %v498, %v578
    %v604 = vmul.f32 %v499, %v578
    %v605 = vmul.f32 %v500, %v578
    %v606 = vmul.f32 %v501, %v578
    %v607 = vmul.f32 %v502, %v578
    %v608 = vmul.f32 %v503, %v578
    %v609 = vmul.f32 %v504, %v578
    %v610 = vmul.f32 %v505, %v578
    %v611 = vadd.f32 %v579, %v434
    %v612 = vadd.f32 %v580, %v434
    %v613 = vadd.f32 %v581, %v434
    %v614 = vadd.f32 %v582, %v434
    %v615 = vadd.f32 %v583, %v434
    %v616 = vadd.f32 %v584, %v434
    %v617 = vadd.f32 %v585, %v434
    %v618 = vadd.f32 %v586, %v434
    %v619 = vadd.f32 %v587, %v434
    %v620 = vadd.f32 %v588, %v434
    %v621 = vadd.f32 %v589, %v434
    %v622 = vadd.f32 %v590, %v434
    %v623 = vadd.f32 %v591, %v434
    %v624 = vadd.f32 %v592, %v434
    %v625 = vadd.f32 %v593, %v434
    %v626 = vadd.f32 %v594, %v434
    %v627 = vadd.f32 %v595, %v434
    %v628 = vadd.f32 %v596, %v434
    %v629 = vadd.f32 %v597, %v434
    %v630 = vadd.f32 %v598, %v434
    %v631 = vadd.f32 %v599, %v434
    %v632 = vadd.f32 %v600, %v434
    %v633 = vadd.f32 %v601, %v434
    %v634 = vadd.f32 %v602, %v434
    %v635 = vadd.f32 %v603, %v434
    %v636 = vadd.f32 %v604, %v434
    %v637 = vadd.f32 %v605, %v434
    %v638 = vadd.f32 %v606, %v434
    %v639 = vadd.f32 %v607, %v434
    %v640 = vadd.f32 %v608, %v434
    %v641 = vadd.f32 %v609, %v434
    %v642 = vadd.f32 %v610, %v434
    %v643 = vmax.f32 %v611, 0.0
    %v644 = vmax.f32 %v612, 0.0
    %v645 = vmax.f32 %v613, 0.0
    %v646 = vmax.f32 %v614, 0.0
    %v647 = vmax.f32 %v615, 0.0
    %v648 = vmax.f32 %v616, 0.0
    %v649 = vmax.f32 %v617, 0.0
    %v650 = vmax.f32 %v618, 0.0
    %v651 = vmax.f32 %v619, 0.0
    %v652 = vmax.f32 %v620, 0.0
    %v653 = vmax.f32 %v621, 0.0
    %v654 = vmax.f32 %v622, 0.0
    %v655 = vmax.f32 %v623, 0.0
    %v656 = vmax.f32 %v624, 0.0
    %v657 = vmax.f32 %v625, 0.0
    %v658 = vmax.f32 %v626, 0.0
    %v659 = vmax.f32 %v627, 0.0
    %v660 = vmax.f32 %v628, 0.0
    %v661 = vmax.f32 %v629, 0.0
    %v662 = vmax.f32 %v630, 0.0
    %v663 = vmax.f32 %v631, 0.0
    %v664 = vmax.f32 %v632, 0.0
    %v665 = vmax.f32 %v633, 0.0
    %v666 = vmax.f32 %v634, 0.0
    %v667 = vmax.f32 %v635, 0.0
    %v668 = vmax.f32 %v636, 0.0
    %v669 = vmax.f32 %v637, 0.0
    %v670 = vmax.f32 %v638, 0.0
    %v671 = vmax.f32 %v639, 0.0
    %v672 = vmax.f32 %v640, 0.0
    %v673 = vmax.f32 %v641, 0.0
    %v674 = vmax.f32 %v642, 0.0
    %v675 = vpack.c.bf16 %v644, %v643
    %v676 = vpack.c.bf16 %v646, %v645
    %v677 = vpack.c.bf16 %v648, %v647
    %v678 = vpack.c.bf16 %v650, %v649
    %v679 = vpack.c.bf16 %v652, %v651
    %v680 = vpack.c.bf16 %v654, %v653
    %v681 = vpack.c.bf16 %v656, %v655
    %v682 = vpack.c.bf16 %v658, %v657
    %v683 = vpack.c.bf16 %v660, %v659
    %v684 = vpack.c.bf16 %v662, %v661
    %v685 = vpack.c.bf16 %v664, %v663
    %v686 = vpack.c.bf16 %v666, %v665
    %v687 = vpack.c.bf16 %v668, %v667
    %v688 = vpack.c.bf16 %v670, %v669
    %v689 = vpack.c.bf16 %v672, %v671
    %v690 = vpack.c.bf16 %v674, %v673
    %v691 = vld [vmem:[#allocation11] sm:$0xf]
    %v692 = vld [vmem:[#allocation11 + $0x4] sm:$0xf]
    %v693 = vld [vmem:[#allocation11 + $0x8] sm:$0xf]
    %v694 = vld [vmem:[#allocation11 + $0xc] sm:$0xf]
    %v695 = vld [vmem:[#allocation11 + $0x10] sm:$0xf]
    %v696 = vld [vmem:[#allocation11 + $0x14] sm:$0xf]
    %v697 = vld [vmem:[#allocation11 + $0x18] sm:$0xf]
    %v698 = vld [vmem:[#allocation11 + $0x1c] sm:$0xf]
    %v699 = vld [vmem:[#allocation11 + $0x20] sm:$0xf]
    %v700 = vld [vmem:[#allocation11 + $0x24] sm:$0xf]
    %v701 = vld [vmem:[#allocation11 + $0x28] sm:$0xf]
    %v702 = vld [vmem:[#allocation11 + $0x2c] sm:$0xf]
    %v703 = vld [vmem:[#allocation11 + $0x30] sm:$0xf]
    %v704 = vld [vmem:[#allocation11 + $0x34] sm:$0xf]
    %v705 = vld [vmem:[#allocation11 + $0x38] sm:$0xf]
    %v706 = vld [vmem:[#allocation11 + $0x3c] sm:$0xf]
    %v723 = vunpack.c.l.b16 %v691
    %v724 = vunpack.c.l.b16 %v692
    %v725 = vunpack.c.l.b16 %v693
    %v726 = vunpack.c.l.b16 %v694
    %v727 = vunpack.c.l.b16 %v695
    %v728 = vunpack.c.l.b16 %v696
    %v729 = vunpack.c.l.b16 %v697
    %v730 = vunpack.c.l.b16 %v698
    %v731 = vunpack.c.l.b16 %v699
    %v732 = vunpack.c.l.b16 %v700
    %v733 = vunpack.c.l.b16 %v701
    %v734 = vunpack.c.l.b16 %v702
    %v735 = vunpack.c.l.b16 %v703
    %v736 = vunpack.c.l.b16 %v704
    %v737 = vunpack.c.l.b16 %v705
    %v738 = vunpack.c.l.b16 %v706
    %v739 = vpack.c.b16 %v724, %v723
    %v740 = vpack.c.b16 %v726, %v725
    %v741 = vpack.c.b16 %v728, %v727
    %v742 = vpack.c.b16 %v730, %v729
    %v743 = vpack.c.b16 %v732, %v731
    %v744 = vpack.c.b16 %v734, %v733
    %v745 = vpack.c.b16 %v736, %v735
    %v746 = vpack.c.b16 %v738, %v737
    %755 = vmatprep.subr.bf16.mxu0 0
    %756 = vmatpush1.bf16.msra.mxu0 %v739
    %757 = vmatprep.subr.bf16.mxu0 0
    %758 = vmatpush1.bf16.msra.mxu0 %v740
    %759 = vmatprep.subr.bf16.mxu0 0
    %760 = vmatpush1.bf16.msra.mxu0 %v741
    %761 = vmatprep.subr.bf16.mxu0 0
    %762 = vmatpush1.bf16.msra.mxu0 %v742
    %763 = vmatprep.subr.bf16.mxu0 0
    %764 = vmatpush1.bf16.msra.mxu0 %v743
    %765 = vmatprep.subr.bf16.mxu0 0
    %766 = vmatpush1.bf16.msra.mxu0 %v744
    %767 = vmatprep.subr.bf16.mxu0 0
    %768 = vmatpush1.bf16.msra.mxu0 %v745
    %769 = vmatprep.subr.bf16.mxu0 0
    %770 = vmatpush1.bf16.msra.mxu0 %v746
    %771 = vmatprep.subr.bf16.mxu0 0
    %772 = vmatpush1.bf16.msra.mxu0 0
    %773 = vmatprep.subr.bf16.mxu0 0
    %774 = vmatpush1.bf16.msra.mxu0 0
    %775 = vmatprep.subr.bf16.mxu0 0
    %776 = vmatpush1.bf16.msra.mxu0 0
    %777 = vmatprep.subr.bf16.mxu0 0
    %778 = vmatpush1.bf16.msra.mxu0 0
    %779 = vmatprep.subr.bf16.mxu0 0
    %780 = vmatpush1.bf16.msra.mxu0 0
    %781 = vmatprep.subr.bf16.mxu0 0
    %782 = vmatpush1.bf16.msra.mxu0 0
    %783 = vmatprep.subr.bf16.mxu0 0
    %784 = vmatpush1.bf16.msra.mxu0 0
    %785 = vmatprep.subr.bf16.mxu0 0
    %786 = vmatpush1.bf16.msra.mxu0 0
    %787 = vmatprep.mubr.bf16.mxu0 0
    %788 = vmatmul.mubr.bf16.gmra.mrb[0].mxu0 %v675
    %v789 = vpop.f32.mrb[0].mxu0
    %v790 = vadd.f32 0.0, %v789
    %v791 = vpop.f32.mrb[0].mxu0
    %v792 = vpop.f32.mrb[0].mxu0
    %v793 = vadd.f32 0.0, %v792
    %v794 = vpop.f32.mrb[0].mxu0
    %795 = vmatprep.mubr.bf16.mxu0 0
    %796 = vmatmul.mubr.bf16.gmra.mrb[0].mxu0 %v676
    %v797 = vpop.f32.mrb[0].mxu0
    %v798 = vadd.f32 0.0, %v797
    %v799 = vpop.f32.mrb[0].mxu0
    %v800 = vpop.f32.mrb[0].mxu0
    %v801 = vadd.f32 0.0, %v800
    %v802 = vpop.f32.mrb[0].mxu0
    %803 = vmatprep.mubr.bf16.mxu0 0
    %804 = vmatmul.mubr.bf16.gmra.mrb[0].mxu0 %v677
    %v805 = vpop.f32.mrb[0].mxu0
    %v806 = vadd.f32 0.0, %v805
    %v807 = vpop.f32.mrb[0].mxu0
    %v808 = vpop.f32.mrb[0].mxu0
    %v809 = vadd.f32 0.0, %v808
    %v810 = vpop.f32.mrb[0].mxu0
    %811 = vmatprep.mubr.bf16.mxu0 0
    %812 = vmatmul.mubr.bf16.gmra.mrb[0].mxu0 %v678
    %v813 = vpop.f32.mrb[0].mxu0
    %v814 = vadd.f32 0.0, %v813
    %v815 = vpop.f32.mrb[0].mxu0
    %v816 = vpop.f32.mrb[0].mxu0
    %v817 = vadd.f32 0.0, %v816
    %v818 = vpop.f32.mrb[0].mxu0
    %819 = vmatprep.mubr.bf16.mxu0 0
    %820 = vmatmul.mubr.bf16.gmra.mrb[0].mxu0 %v679
    %v821 = vpop.f32.mrb[0].mxu0
    %v822 = vadd.f32 0.0, %v821
    %v823 = vpop.f32.mrb[0].mxu0
    %v824 = vpop.f32.mrb[0].mxu0
    %v825 = vadd.f32 0.0, %v824
    %v826 = vpop.f32.mrb[0].mxu0
    %827 = vmatprep.mubr.bf16.mxu0 0
    %828 = vmatmul.mubr.bf16.gmra.mrb[0].mxu0 %v680
    %v829 = vpop.f32.mrb[0].mxu0
    %v830 = vadd.f32 0.0, %v829
    %v831 = vpop.f32.mrb[0].mxu0
    %v832 = vpop.f32.mrb[0].mxu0
    %v833 = vadd.f32 0.0, %v832
    %v834 = vpop.f32.mrb[0].mxu0
    %835 = vmatprep.mubr.bf16.mxu0 0
    %836 = vmatmul.mubr.bf16.gmra.mrb[0].mxu0 %v681
    %v837 = vpop.f32.mrb[0].mxu0
    %v838 = vadd.f32 0.0, %v837
    %v839 = vpop.f32.mrb[0].mxu0
    %v840 = vpop.f32.mrb[0].mxu0
    %v841 = vadd.f32 0.0, %v840
    %v842 = vpop.f32.mrb[0].mxu0
    %843 = vmatprep.mubr.bf16.mxu0 0
    %844 = vmatmul.mubr.bf16.gmra.mrb[0].mxu0 %v682
    %v845 = vpop.f32.mrb[0].mxu0
    %v846 = vadd.f32 0.0, %v845
    %v847 = vpop.f32.mrb[0].mxu0
    %v848 = vpop.f32.mrb[0].mxu0
    %v849 = vadd.f32 0.0, %v848
    %v850 = vpop.f32.mrb[0].mxu0
    %851 = vmatprep.mubr.bf16.mxu0 0
    %852 = vmatmul.mubr.bf16.gmra.mrb[0].mxu0 %v683
    %v853 = vpop.f32.mrb[0].mxu0
    %v854 = vadd.f32 0.0, %v853
    %v855 = vpop.f32.mrb[0].mxu0
    %v856 = vpop.f32.mrb[0].mxu0
    %v857 = vadd.f32 0.0, %v856
    %v858 = vpop.f32.mrb[0].mxu0
    %859 = vmatprep.mubr.bf16.mxu0 0
    %860 = vmatmul.mubr.bf16.gmra.mrb[0].mxu0 %v684
    %v861 = vpop.f32.mrb[0].mxu0
    %v862 = vadd.f32 0.0, %v861
    %v863 = vpop.f32.mrb[0].mxu0
    %v864 = vpop.f32.mrb[0].mxu0
    %v865 = vadd.f32 0.0, %v864
    %v866 = vpop.f32.mrb[0].mxu0
    %867 = vmatprep.mubr.bf16.mxu0 0
    %868 = vmatmul.mubr.bf16.gmra.mrb[0].mxu0 %v685
    %v869 = vpop.f32.mrb[0].mxu0
    %v870 = vadd.f32 0.0, %v869
    %v871 = vpop.f32.mrb[0].mxu0
    %v872 = vpop.f32.mrb[0].mxu0
    %v873 = vadd.f32 0.0, %v872
    %v874 = vpop.f32.mrb[0].mxu0
    %875 = vmatprep.mubr.bf16.mxu0 0
    %876 = vmatmul.mubr.bf16.gmra.mrb[0].mxu0 %v686
    %v877 = vpop.f32.mrb[0].mxu0
    %v878 = vadd.f32 0.0, %v877
    %v879 = vpop.f32.mrb[0].mxu0
    %v880 = vpop.f32.mrb[0].mxu0
    %v881 = vadd.f32 0.0, %v880
    %v882 = vpop.f32.mrb[0].mxu0
    %883 = vmatprep.mubr.bf16.mxu0 0
    %884 = vmatmul.mubr.bf16.gmra.mrb[0].mxu0 %v687
    %v885 = vpop.f32.mrb[0].mxu0
    %v886 = vadd.f32 0.0, %v885
    %v887 = vpop.f32.mrb[0].mxu0
    %v888 = vpop.f32.mrb[0].mxu0
    %v889 = vadd.f32 0.0, %v888
    %v890 = vpop.f32.mrb[0].mxu0
    %891 = vmatprep.mubr.bf16.mxu0 0
    %892 = vmatmul.mubr.bf16.gmra.mrb[0].mxu0 %v688
    %v893 = vpop.f32.mrb[0].mxu0
    %v894 = vadd.f32 0.0, %v893
    %v895 = vpop.f32.mrb[0].mxu0
    %v896 = vpop.f32.mrb[0].mxu0
    %v897 = vadd.f32 0.0, %v896
    %v898 = vpop.f32.mrb[0].mxu0
    %899 = vmatprep.mubr.bf16.mxu0 0
    %900 = vmatmul.mubr.bf16.gmra.mrb[0].mxu0 %v689
    %v901 = vpop.f32.mrb[0].mxu0
    %v902 = vadd.f32 0.0, %v901
    %v903 = vpop.f32.mrb[0].mxu0
    %v904 = vpop.f32.mrb[0].mxu0
    %v905 = vadd.f32 0.0, %v904
    %v906 = vpop.f32.mrb[0].mxu0
    %907 = vmatprep.mubr.bf16.mxu0 0
    %908 = vmatmul.mubr.bf16.gmra.mrb[0].mxu0 %v690
    %v909 = vpop.f32.mrb[0].mxu0
    %v910 = vadd.f32 0.0, %v909
    %v911 = vpop.f32.mrb[0].mxu0
    %v912 = vpop.f32.mrb[0].mxu0
    %v913 = vadd.f32 0.0, %v912
    %v914 = vpop.f32.mrb[0].mxu0
    %915 = vdwg.mxu0
    %v916 = vld [vmem:[#allocation8 + $0x2] ss:$0 sm:$0xff]
    %v917 = vld [vmem:[#allocation8 + $0x3] ss:$0 sm:$0xff]
    %v918 = vadd.f32 %v790, %v793
    %v919 = vadd.f32 %v918, %v798
    %v920 = vadd.f32 %v919, %v801
    %v921 = vadd.f32 %v920, %v806
    %v922 = vadd.f32 %v921, %v809
    %v923 = vadd.f32 %v922, %v814
    %v924 = vadd.f32 %v923, %v817
    %v925 = vadd.f32 %v924, %v822
    %v926 = vadd.f32 %v925, %v825
    %v927 = vadd.f32 %v926, %v830
    %v928 = vadd.f32 %v927, %v833
    %v929 = vadd.f32 %v928, %v838
    %v930 = vadd.f32 %v929, %v841
    %v931 = vadd.f32 %v930, %v846
    %v932 = vadd.f32 %v931, %v849
    %v933 = vadd.f32 %v932, %v854
    %v934 = vadd.f32 %v933, %v857
    %v935 = vadd.f32 %v934, %v862
    %v936 = vadd.f32 %v935, %v865
    %v937 = vadd.f32 %v936, %v870
    %v938 = vadd.f32 %v937, %v873
    %v939 = vadd.f32 %v938, %v878
    %v940 = vadd.f32 %v939, %v881
    %v941 = vadd.f32 %v940, %v886
    %v942 = vadd.f32 %v941, %v889
    %v943 = vadd.f32 %v942, %v894
    %v944 = vadd.f32 %v943, %v897
    %v945 = vadd.f32 %v944, %v902
    %v946 = vadd.f32 %v945, %v905
    %v947 = vadd.f32 %v946, %v910
    %v948 = vadd.f32 %v947, %v913
    %v949 = vrot.slane %v948, 4
    %v950 = vadd.f32 %v948, %v949
    %v951 = vrot.slane %v950, 2
    %v952 = vadd.f32 %v950, %v951
    %v953 = vrot.slane %v952, 1
    %v954 = vadd.f32 %v952, %v953
    %v955 = vmul.f32 %v954, %v472
    %v956 = vsub.f32 %v790, %v955
    %v957 = vsub.f32 %v793, %v955
    %v958 = vsub.f32 %v798, %v955
    %v959 = vsub.f32 %v801, %v955
    %v960 = vsub.f32 %v806, %v955
    %v961 = vsub.f32 %v809, %v955
    %v962 = vsub.f32 %v814, %v955
    %v963 = vsub.f32 %v817, %v955
    %v964 = vsub.f32 %v822, %v955
    %v965 = vsub.f32 %v825, %v955
    %v966 = vsub.f32 %v830, %v955
    %v967 = vsub.f32 %v833, %v955
    %v968 = vsub.f32 %v838, %v955
    %v969 = vsub.f32 %v841, %v955
    %v970 = vsub.f32 %v846, %v955
    %v971 = vsub.f32 %v849, %v955
    %v972 = vsub.f32 %v854, %v955
    %v973 = vsub.f32 %v857, %v955
    %v974 = vsub.f32 %v862, %v955
    %v975 = vsub.f32 %v865, %v955
    %v976 = vsub.f32 %v870, %v955
    %v977 = vsub.f32 %v873, %v955
    %v978 = vsub.f32 %v878, %v955
    %v979 = vsub.f32 %v881, %v955
    %v980 = vsub.f32 %v886, %v955
    %v981 = vsub.f32 %v889, %v955
    %v982 = vsub.f32 %v894, %v955
    %v983 = vsub.f32 %v897, %v955
    %v984 = vsub.f32 %v902, %v955
    %v985 = vsub.f32 %v905, %v955
    %v986 = vsub.f32 %v910, %v955
    %v987 = vsub.f32 %v913, %v955
    %v988 = vmul.f32 %v956, %v956
    %v989 = vmul.f32 %v957, %v957
    %v990 = vmul.f32 %v958, %v958
    %v991 = vmul.f32 %v959, %v959
    %v992 = vmul.f32 %v960, %v960
    %v993 = vmul.f32 %v961, %v961
    %v994 = vmul.f32 %v962, %v962
    %v995 = vmul.f32 %v963, %v963
    %v996 = vmul.f32 %v964, %v964
    %v997 = vmul.f32 %v965, %v965
    %v998 = vmul.f32 %v966, %v966
    %v999 = vmul.f32 %v967, %v967
    %v1000 = vmul.f32 %v968, %v968
    %v1001 = vmul.f32 %v969, %v969
    %v1002 = vmul.f32 %v970, %v970
    %v1003 = vmul.f32 %v971, %v971
    %v1004 = vmul.f32 %v972, %v972
    %v1005 = vmul.f32 %v973, %v973
    %v1006 = vmul.f32 %v974, %v974
    %v1007 = vmul.f32 %v975, %v975
    %v1008 = vmul.f32 %v976, %v976
    %v1009 = vmul.f32 %v977, %v977
    %v1010 = vmul.f32 %v978, %v978
    %v1011 = vmul.f32 %v979, %v979
    %v1012 = vmul.f32 %v980, %v980
    %v1013 = vmul.f32 %v981, %v981
    %v1014 = vmul.f32 %v982, %v982
    %v1015 = vmul.f32 %v983, %v983
    %v1016 = vmul.f32 %v984, %v984
    %v1017 = vmul.f32 %v985, %v985
    %v1018 = vmul.f32 %v986, %v986
    %v1019 = vmul.f32 %v987, %v987
    %v1020 = vadd.f32 %v988, %v989
    %v1021 = vadd.f32 %v1020, %v990
    %v1022 = vadd.f32 %v1021, %v991
    %v1023 = vadd.f32 %v1022, %v992
    %v1024 = vadd.f32 %v1023, %v993
    %v1025 = vadd.f32 %v1024, %v994
    %v1026 = vadd.f32 %v1025, %v995
    %v1027 = vadd.f32 %v1026, %v996
    %v1028 = vadd.f32 %v1027, %v997
    %v1029 = vadd.f32 %v1028, %v998
    %v1030 = vadd.f32 %v1029, %v999
    %v1031 = vadd.f32 %v1030, %v1000
    %v1032 = vadd.f32 %v1031, %v1001
    %v1033 = vadd.f32 %v1032, %v1002
    %v1034 = vadd.f32 %v1033, %v1003
    %v1035 = vadd.f32 %v1034, %v1004
    %v1036 = vadd.f32 %v1035, %v1005
    %v1037 = vadd.f32 %v1036, %v1006
    %v1038 = vadd.f32 %v1037, %v1007
    %v1039 = vadd.f32 %v1038, %v1008
    %v1040 = vadd.f32 %v1039, %v1009
    %v1041 = vadd.f32 %v1040, %v1010
    %v1042 = vadd.f32 %v1041, %v1011
    %v1043 = vadd.f32 %v1042, %v1012
    %v1044 = vadd.f32 %v1043, %v1013
    %v1045 = vadd.f32 %v1044, %v1014
    %v1046 = vadd.f32 %v1045, %v1015
    %v1047 = vadd.f32 %v1046, %v1016
    %v1048 = vadd.f32 %v1047, %v1017
    %v1049 = vadd.f32 %v1048, %v1018
    %v1050 = vadd.f32 %v1049, %v1019
    %v1051 = vrot.slane %v1050, 4
    %v1052 = vadd.f32 %v1050, %v1051
    %v1053 = vrot.slane %v1052, 2
    %v1054 = vadd.f32 %v1052, %v1053
    %v1055 = vrot.slane %v1054, 1
    %v1056 = vadd.f32 %v1054, %v1055
    %v1057 = vmul.f32 %v1056, %v472
    %v1058 = vadd.f32 %v1057, 1e-05
    %v1059 = vrsqrt.pop %v1058
    %v1060 = vmul.f32 %v916, %v1059
    %v1061 = vmul.f32 %v956, %v1060
    %v1062 = vmul.f32 %v957, %v1060
    %v1063 = vmul.f32 %v958, %v1060
    %v1064 = vmul.f32 %v959, %v1060
    %v1065 = vmul.f32 %v960, %v1060
    %v1066 = vmul.f32 %v961, %v1060
    %v1067 = vmul.f32 %v962, %v1060
    %v1068 = vmul.f32 %v963, %v1060
    %v1069 = vmul.f32 %v964, %v1060
    %v1070 = vmul.f32 %v965, %v1060
    %v1071 = vmul.f32 %v966, %v1060
    %v1072 = vmul.f32 %v967, %v1060
    %v1073 = vmul.f32 %v968, %v1060
    %v1074 = vmul.f32 %v969, %v1060
    %v1075 = vmul.f32 %v970, %v1060
    %v1076 = vmul.f32 %v971, %v1060
    %v1077 = vmul.f32 %v972, %v1060
    %v1078 = vmul.f32 %v973, %v1060
    %v1079 = vmul.f32 %v974, %v1060
    %v1080 = vmul.f32 %v975, %v1060
    %v1081 = vmul.f32 %v976, %v1060
    %v1082 = vmul.f32 %v977, %v1060
    %v1083 = vmul.f32 %v978, %v1060
    %v1084 = vmul.f32 %v979, %v1060
    %v1085 = vmul.f32 %v980, %v1060
    %v1086 = vmul.f32 %v981, %v1060
    %v1087 = vmul.f32 %v982, %v1060
    %v1088 = vmul.f32 %v983, %v1060
    %v1089 = vmul.f32 %v984, %v1060
    %v1090 = vmul.f32 %v985, %v1060
    %v1091 = vmul.f32 %v986, %v1060
    %v1092 = vmul.f32 %v987, %v1060
    %v1093 = vadd.f32 %v1061, %v917
    %v1094 = vadd.f32 %v1062, %v917
    %v1095 = vadd.f32 %v1063, %v917
    %v1096 = vadd.f32 %v1064, %v917
    %v1097 = vadd.f32 %v1065, %v917
    %v1098 = vadd.f32 %v1066, %v917
    %v1099 = vadd.f32 %v1067, %v917
    %v1100 = vadd.f32 %v1068, %v917
    %v1101 = vadd.f32 %v1069, %v917
    %v1102 = vadd.f32 %v1070, %v917
    %v1103 = vadd.f32 %v1071, %v917
    %v1104 = vadd.f32 %v1072, %v917
    %v1105 = vadd.f32 %v1073, %v917
    %v1106 = vadd.f32 %v1074, %v917
    %v1107 = vadd.f32 %v1075, %v917
    %v1108 = vadd.f32 %v1076, %v917
    %v1109 = vadd.f32 %v1077, %v917
    %v1110 = vadd.f32 %v1078, %v917
    %v1111 = vadd.f32 %v1079, %v917
    %v1112 = vadd.f32 %v1080, %v917
    %v1113 = vadd.f32 %v1081, %v917
    %v1114 = vadd.f32 %v1082, %v917
    %v1115 = vadd.f32 %v1083, %v917
    %v1116 = vadd.f32 %v1084, %v917
    %v1117 = vadd.f32 %v1085, %v917
    %v1118 = vadd.f32 %v1086, %v917
    %v1119 = vadd.f32 %v1087, %v917
    %v1120 = vadd.f32 %v1088, %v917
    %v1121 = vadd.f32 %v1089, %v917
    %v1122 = vadd.f32 %v1090, %v917
    %v1123 = vadd.f32 %v1091, %v917
    %v1124 = vadd.f32 %v1092, %v917
    %v1125 = vmax.f32 %v1093, 0.0
    %v1126 = vmax.f32 %v1094, 0.0
    %v1127 = vmax.f32 %v1095, 0.0
    %v1128 = vmax.f32 %v1096, 0.0
    %v1129 = vmax.f32 %v1097, 0.0
    %v1130 = vmax.f32 %v1098, 0.0
    %v1131 = vmax.f32 %v1099, 0.0
    %v1132 = vmax.f32 %v1100, 0.0
    %v1133 = vmax.f32 %v1101, 0.0
    %v1134 = vmax.f32 %v1102, 0.0
    %v1135 = vmax.f32 %v1103, 0.0
    %v1136 = vmax.f32 %v1104, 0.0
    %v1137 = vmax.f32 %v1105, 0.0
    %v1138 = vmax.f32 %v1106, 0.0
    %v1139 = vmax.f32 %v1107, 0.0
    %v1140 = vmax.f32 %v1108, 0.0
    %v1141 = vmax.f32 %v1109, 0.0
    %v1142 = vmax.f32 %v1110, 0.0
    %v1143 = vmax.f32 %v1111, 0.0
    %v1144 = vmax.f32 %v1112, 0.0
    %v1145 = vmax.f32 %v1113, 0.0
    %v1146 = vmax.f32 %v1114, 0.0
    %v1147 = vmax.f32 %v1115, 0.0
    %v1148 = vmax.f32 %v1116, 0.0
    %v1149 = vmax.f32 %v1117, 0.0
    %v1150 = vmax.f32 %v1118, 0.0
    %v1151 = vmax.f32 %v1119, 0.0
    %v1152 = vmax.f32 %v1120, 0.0
    %v1153 = vmax.f32 %v1121, 0.0
    %v1154 = vmax.f32 %v1122, 0.0
    %v1155 = vmax.f32 %v1123, 0.0
    %v1156 = vmax.f32 %v1124, 0.0
    %v1157 = vpack.c.bf16 %v1126, %v1125
    %v1158 = vpack.c.bf16 %v1128, %v1127
    %v1159 = vpack.c.bf16 %v1130, %v1129
    %v1160 = vpack.c.bf16 %v1132, %v1131
    %v1161 = vpack.c.bf16 %v1134, %v1133
    %v1162 = vpack.c.bf16 %v1136, %v1135
    %v1163 = vpack.c.bf16 %v1138, %v1137
    %v1164 = vpack.c.bf16 %v1140, %v1139
    %v1165 = vpack.c.bf16 %v1142, %v1141
    %v1166 = vpack.c.bf16 %v1144, %v1143
    %v1167 = vpack.c.bf16 %v1146, %v1145
    %v1168 = vpack.c.bf16 %v1148, %v1147
    %v1169 = vpack.c.bf16 %v1150, %v1149
    %v1170 = vpack.c.bf16 %v1152, %v1151
    %v1171 = vpack.c.bf16 %v1154, %v1153
    %v1172 = vpack.c.bf16 %v1156, %v1155
    %v1173 = vld [vmem:[#allocation12] sm:$0xff]
    %v1174 = vld [vmem:[#allocation12 + $0x8] sm:$0xff]
    %v1175 = vld [vmem:[#allocation12 + $0x10] sm:$0xff]
    %v1176 = vld [vmem:[#allocation12 + $0x18] sm:$0xff]
    %v1177 = vld [vmem:[#allocation12 + $0x20] sm:$0xff]
    %v1178 = vld [vmem:[#allocation12 + $0x28] sm:$0xff]
    %v1179 = vld [vmem:[#allocation12 + $0x30] sm:$0xff]
    %v1180 = vld [vmem:[#allocation12 + $0x38] sm:$0xff]
    %v1181 = vld [vmem:[#allocation12 + $0x40] sm:$0xff]
    %v1182 = vld [vmem:[#allocation12 + $0x48] sm:$0xff]
    %v1183 = vld [vmem:[#allocation12 + $0x50] sm:$0xff]
    %v1184 = vld [vmem:[#allocation12 + $0x58] sm:$0xff]
    %v1185 = vld [vmem:[#allocation12 + $0x60] sm:$0xff]
    %v1186 = vld [vmem:[#allocation12 + $0x68] sm:$0xff]
    %v1187 = vld [vmem:[#allocation12 + $0x70] sm:$0xff]
    %v1188 = vld [vmem:[#allocation12 + $0x78] sm:$0xff]
    %s1189 = scalar_lea.vmem [#allocation8], 4
    %v1190 = vld [vmem:[%s1189] ss:$8 sm:$0x3]
    %v1192 = vlaneseq
    %v1193 = vshrl.u32 %v1192, 7
    %v1194 = vsub.s32 0, %v1193
    %v1195 = vrot.slane %v1190, %v1194
    %v1196 = vlaneseq
    %v1197 = vshrl.u32 %v1196, 7
    %v1198 = vsub.s32 1, %v1197
    %v1199 = vrot.slane %v1190, %v1198
    %v1218 = vunpack.c.l.b16 %v1173
    %v1219 = vunpack.c.h.b16 %v1173
    %v1220 = vunpack.c.l.b16 %v1174
    %v1221 = vunpack.c.h.b16 %v1174
    %v1222 = vunpack.c.l.b16 %v1175
    %v1223 = vunpack.c.h.b16 %v1175
    %v1224 = vunpack.c.l.b16 %v1176
    %v1225 = vunpack.c.h.b16 %v1176
    %v1226 = vunpack.c.l.b16 %v1177
    %v1227 = vunpack.c.h.b16 %v1177
    %v1228 = vunpack.c.l.b16 %v1178
    %v1229 = vunpack.c.h.b16 %v1178
    %v1230 = vunpack.c.l.b16 %v1179
    %v1231 = vunpack.c.h.b16 %v1179
    %v1232 = vunpack.c.l.b16 %v1180
    %v1233 = vunpack.c.h.b16 %v1180
    %v1234 = vunpack.c.l.b16 %v1181
    %v1235 = vunpack.c.h.b16 %v1181
    %v1236 = vunpack.c.l.b16 %v1182
    %v1237 = vunpack.c.h.b16 %v1182
    %v1238 = vunpack.c.l.b16 %v1183
    %v1239 = vunpack.c.h.b16 %v1183
    %v1240 = vunpack.c.l.b16 %v1184
    %v1241 = vunpack.c.h.b16 %v1184
    %v1242 = vunpack.c.l.b16 %v1185
    %v1243 = vunpack.c.h.b16 %v1185
    %v1244 = vunpack.c.l.b16 %v1186
    %v1245 = vunpack.c.h.b16 %v1186
    %v1246 = vunpack.c.l.b16 %v1187
    %v1247 = vunpack.c.h.b16 %v1187
    %v1248 = vunpack.c.l.b16 %v1188
    %v1249 = vunpack.c.h.b16 %v1188
    %v1250 = vpack.c.b16 %v1220, %v1218
    %v1251 = vpack.c.b16 %v1221, %v1219
    %v1252 = vpack.c.b16 %v1224, %v1222
    %v1253 = vpack.c.b16 %v1225, %v1223
    %v1254 = vpack.c.b16 %v1228, %v1226
    %v1255 = vpack.c.b16 %v1229, %v1227
    %v1256 = vpack.c.b16 %v1232, %v1230
    %v1257 = vpack.c.b16 %v1233, %v1231
    %v1258 = vpack.c.b16 %v1236, %v1234
    %v1259 = vpack.c.b16 %v1237, %v1235
    %v1260 = vpack.c.b16 %v1240, %v1238
    %v1261 = vpack.c.b16 %v1241, %v1239
    %v1262 = vpack.c.b16 %v1244, %v1242
    %v1263 = vpack.c.b16 %v1245, %v1243
    %v1264 = vpack.c.b16 %v1248, %v1246
    %v1265 = vpack.c.b16 %v1249, %v1247
    %1282 = vmatprep.subr.bf16.mxu0 %v1251
    %1283 = vmatpush1.bf16.msra.mxu0 %v1250
    %1284 = vmatprep.subr.bf16.mxu0 %v1253
    %1285 = vmatpush1.bf16.msra.mxu0 %v1252
    %1286 = vmatprep.subr.bf16.mxu0 %v1255
    %1287 = vmatpush1.bf16.msra.mxu0 %v1254
    %1288 = vmatprep.subr.bf16.mxu0 %v1257
    %1289 = vmatpush1.bf16.msra.mxu0 %v1256
    %1290 = vmatprep.subr.bf16.mxu0 %v1259
    %1291 = vmatpush1.bf16.msra.mxu0 %v1258
    %1292 = vmatprep.subr.bf16.mxu0 %v1261
    %1293 = vmatpush1.bf16.msra.mxu0 %v1260
    %1294 = vmatprep.subr.bf16.mxu0 %v1263
    %1295 = vmatpush1.bf16.msra.mxu0 %v1262
    %1296 = vmatprep.subr.bf16.mxu0 %v1265
    %1297 = vmatpush1.bf16.msra.mxu0 %v1264
    %1298 = vmatprep.subr.bf16.mxu0 0
    %1299 = vmatpush1.bf16.msra.mxu0 0
    %1300 = vmatprep.subr.bf16.mxu0 0
    %1301 = vmatpush1.bf16.msra.mxu0 0
    %1302 = vmatprep.subr.bf16.mxu0 0
    %1303 = vmatpush1.bf16.msra.mxu0 0
    %1304 = vmatprep.subr.bf16.mxu0 0
    %1305 = vmatpush1.bf16.msra.mxu0 0
    %1306 = vmatprep.subr.bf16.mxu0 0
    %1307 = vmatpush1.bf16.msra.mxu0 0
    %1308 = vmatprep.subr.bf16.mxu0 0
    %1309 = vmatpush1.bf16.msra.mxu0 0
    %1310 = vmatprep.subr.bf16.mxu0 0
    %1311 = vmatpush1.bf16.msra.mxu0 0
    %1312 = vmatprep.subr.bf16.mxu0 0
    %1313 = vmatpush1.bf16.msra.mxu0 0
    %1314 = vmatprep.mubr.bf16.mxu0 0
    %1315 = vmatmul.mubr.bf16.gmra.mrb[0].mxu0 %v1157
    %v1316 = vpop.f32.mrb[0].mxu0
    %v1317 = vadd.f32 %v1195, %v1316
    %v1318 = vpop.f32.mrb[0].mxu0
    %v1319 = vadd.f32 %v1199, %v1318
    %v1320 = vpop.f32.mrb[0].mxu0
    %v1321 = vadd.f32 %v1195, %v1320
    %v1322 = vpop.f32.mrb[0].mxu0
    %v1323 = vadd.f32 %v1199, %v1322
    %1324 = vmatprep.mubr.bf16.mxu0 0
    %1325 = vmatmul.mubr.bf16.gmra.mrb[0].mxu0 %v1158
    %v1326 = vpop.f32.mrb[0].mxu0
    %v1327 = vadd.f32 %v1195, %v1326
    %v1328 = vpop.f32.mrb[0].mxu0
    %v1329 = vadd.f32 %v1199, %v1328
    %v1330 = vpop.f32.mrb[0].mxu0
    %v1331 = vadd.f32 %v1195, %v1330
    %v1332 = vpop.f32.mrb[0].mxu0
    %v1333 = vadd.f32 %v1199, %v1332
    %1334 = vmatprep.mubr.bf16.mxu0 0
    %1335 = vmatmul.mubr.bf16.gmra.mrb[0].mxu0 %v1159
    %v1336 = vpop.f32.mrb[0].mxu0
    %v1337 = vadd.f32 %v1195, %v1336
    %v1338 = vpop.f32.mrb[0].mxu0
    %v1339 = vadd.f32 %v1199, %v1338
    %v1340 = vpop.f32.mrb[0].mxu0
    %v1341 = vadd.f32 %v1195, %v1340
    %v1342 = vpop.f32.mrb[0].mxu0
    %v1343 = vadd.f32 %v1199, %v1342
    %1344 = vmatprep.mubr.bf16.mxu0 0
    %1345 = vmatmul.mubr.bf16.gmra.mrb[0].mxu0 %v1160
    %v1346 = vpop.f32.mrb[0].mxu0
    %v1347 = vadd.f32 %v1195, %v1346
    %v1348 = vpop.f32.mrb[0].mxu0
    %v1349 = vadd.f32 %v1199, %v1348
    %v1350 = vpop.f32.mrb[0].mxu0
    %v1351 = vadd.f32 %v1195, %v1350
    %v1352 = vpop.f32.mrb[0].mxu0
    %v1353 = vadd.f32 %v1199, %v1352
    %1354 = vmatprep.mubr.bf16.mxu0 0
    %1355 = vmatmul.mubr.bf16.gmra.mrb[0].mxu0 %v1161
    %v1356 = vpop.f32.mrb[0].mxu0
    %v1357 = vadd.f32 %v1195, %v1356
    %v1358 = vpop.f32.mrb[0].mxu0
    %v1359 = vadd.f32 %v1199, %v1358
    %v1360 = vpop.f32.mrb[0].mxu0
    %v1361 = vadd.f32 %v1195, %v1360
    %v1362 = vpop.f32.mrb[0].mxu0
    %v1363 = vadd.f32 %v1199, %v1362
    %1364 = vmatprep.mubr.bf16.mxu0 0
    %1365 = vmatmul.mubr.bf16.gmra.mrb[0].mxu0 %v1162
    %v1366 = vpop.f32.mrb[0].mxu0
    %v1367 = vadd.f32 %v1195, %v1366
    %v1368 = vpop.f32.mrb[0].mxu0
    %v1369 = vadd.f32 %v1199, %v1368
    %v1370 = vpop.f32.mrb[0].mxu0
    %v1371 = vadd.f32 %v1195, %v1370
    %v1372 = vpop.f32.mrb[0].mxu0
    %v1373 = vadd.f32 %v1199, %v1372
    %1374 = vmatprep.mubr.bf16.mxu0 0
    %1375 = vmatmul.mubr.bf16.gmra.mrb[0].mxu0 %v1163
    %v1376 = vpop.f32.mrb[0].mxu0
    %v1377 = vadd.f32 %v1195, %v1376
    %v1378 = vpop.f32.mrb[0].mxu0
    %v1379 = vadd.f32 %v1199, %v1378
    %v1380 = vpop.f32.mrb[0].mxu0
    %v1381 = vadd.f32 %v1195, %v1380
    %v1382 = vpop.f32.mrb[0].mxu0
    %v1383 = vadd.f32 %v1199, %v1382
    %1384 = vmatprep.mubr.bf16.mxu0 0
    %1385 = vmatmul.mubr.bf16.gmra.mrb[0].mxu0 %v1164
    %v1386 = vpop.f32.mrb[0].mxu0
    %v1387 = vadd.f32 %v1195, %v1386
    %v1388 = vpop.f32.mrb[0].mxu0
    %v1389 = vadd.f32 %v1199, %v1388
    %v1390 = vpop.f32.mrb[0].mxu0
    %v1391 = vadd.f32 %v1195, %v1390
    %v1392 = vpop.f32.mrb[0].mxu0
    %v1393 = vadd.f32 %v1199, %v1392
    %1394 = vmatprep.mubr.bf16.mxu0 0
    %1395 = vmatmul.mubr.bf16.gmra.mrb[0].mxu0 %v1165
    %v1396 = vpop.f32.mrb[0].mxu0
    %v1397 = vadd.f32 %v1195, %v1396
    %v1398 = vpop.f32.mrb[0].mxu0
    %v1399 = vadd.f32 %v1199, %v1398
    %v1400 = vpop.f32.mrb[0].mxu0
    %v1401 = vadd.f32 %v1195, %v1400
    %v1402 = vpop.f32.mrb[0].mxu0
    %v1403 = vadd.f32 %v1199, %v1402
    %1404 = vmatprep.mubr.bf16.mxu0 0
    %1405 = vmatmul.mubr.bf16.gmra.mrb[0].mxu0 %v1166
    %v1406 = vpop.f32.mrb[0].mxu0
    %v1407 = vadd.f32 %v1195, %v1406
    %v1408 = vpop.f32.mrb[0].mxu0
    %v1409 = vadd.f32 %v1199, %v1408
    %v1410 = vpop.f32.mrb[0].mxu0
    %v1411 = vadd.f32 %v1195, %v1410
    %v1412 = vpop.f32.mrb[0].mxu0
    %v1413 = vadd.f32 %v1199, %v1412
    %1414 = vmatprep.mubr.bf16.mxu0 0
    %1415 = vmatmul.mubr.bf16.gmra.mrb[0].mxu0 %v1167
    %v1416 = vpop.f32.mrb[0].mxu0
    %v1417 = vadd.f32 %v1195, %v1416
    %v1418 = vpop.f32.mrb[0].mxu0
    %v1419 = vadd.f32 %v1199, %v1418
    %v1420 = vpop.f32.mrb[0].mxu0
    %v1421 = vadd.f32 %v1195, %v1420
    %v1422 = vpop.f32.mrb[0].mxu0
    %v1423 = vadd.f32 %v1199, %v1422
    %1424 = vmatprep.mubr.bf16.mxu0 0
    %1425 = vmatmul.mubr.bf16.gmra.mrb[0].mxu0 %v1168
    %v1426 = vpop.f32.mrb[0].mxu0
    %v1427 = vadd.f32 %v1195, %v1426
    %v1428 = vpop.f32.mrb[0].mxu0
    %v1429 = vadd.f32 %v1199, %v1428
    %v1430 = vpop.f32.mrb[0].mxu0
    %v1431 = vadd.f32 %v1195, %v1430
    %v1432 = vpop.f32.mrb[0].mxu0
    %v1433 = vadd.f32 %v1199, %v1432
    %1434 = vmatprep.mubr.bf16.mxu0 0
    %1435 = vmatmul.mubr.bf16.gmra.mrb[0].mxu0 %v1169
    %v1436 = vpop.f32.mrb[0].mxu0
    %v1437 = vadd.f32 %v1195, %v1436
    %v1438 = vpop.f32.mrb[0].mxu0
    %v1439 = vadd.f32 %v1199, %v1438
    %v1440 = vpop.f32.mrb[0].mxu0
    %v1441 = vadd.f32 %v1195, %v1440
    %v1442 = vpop.f32.mrb[0].mxu0
    %v1443 = vadd.f32 %v1199, %v1442
    %1444 = vmatprep.mubr.bf16.mxu0 0
    %1445 = vmatmul.mubr.bf16.gmra.mrb[0].mxu0 %v1170
    %v1446 = vpop.f32.mrb[0].mxu0
    %v1447 = vadd.f32 %v1195, %v1446
    %v1448 = vpop.f32.mrb[0].mxu0
    %v1449 = vadd.f32 %v1199, %v1448
    %v1450 = vpop.f32.mrb[0].mxu0
    %v1451 = vadd.f32 %v1195, %v1450
    %v1452 = vpop.f32.mrb[0].mxu0
    %v1453 = vadd.f32 %v1199, %v1452
    %1454 = vmatprep.mubr.bf16.mxu0 0
    %1455 = vmatmul.mubr.bf16.gmra.mrb[0].mxu0 %v1171
    %v1456 = vpop.f32.mrb[0].mxu0
    %v1457 = vadd.f32 %v1195, %v1456
    %v1458 = vpop.f32.mrb[0].mxu0
    %v1459 = vadd.f32 %v1199, %v1458
    %v1460 = vpop.f32.mrb[0].mxu0
    %v1461 = vadd.f32 %v1195, %v1460
    %v1462 = vpop.f32.mrb[0].mxu0
    %v1463 = vadd.f32 %v1199, %v1462
    %1464 = vmatprep.mubr.bf16.mxu0 0
    %1465 = vmatmul.mubr.bf16.gmra.mrb[0].mxu0 %v1172
    %v1466 = vpop.f32.mrb[0].mxu0
    %v1467 = vadd.f32 %v1195, %v1466
    %v1468 = vpop.f32.mrb[0].mxu0
    %v1469 = vadd.f32 %v1199, %v1468
    %v1470 = vpop.f32.mrb[0].mxu0
    %v1471 = vadd.f32 %v1195, %v1470
    %v1472 = vpop.f32.mrb[0].mxu0
    %v1473 = vadd.f32 %v1199, %v1472
    %1474 = vdwg.mxu0
    %v1475 = vmul.f32 %v1319, 0.5
    %v1476 = vmul.f32 %v1323, 0.5
    %v1477 = vmul.f32 %v1329, 0.5
    %v1478 = vmul.f32 %v1333, 0.5
    %v1479 = vmul.f32 %v1339, 0.5
    %v1480 = vmul.f32 %v1343, 0.5
    %v1481 = vmul.f32 %v1349, 0.5
    %v1482 = vmul.f32 %v1353, 0.5
    %v1483 = vmul.f32 %v1359, 0.5
    %v1484 = vmul.f32 %v1363, 0.5
    %v1485 = vmul.f32 %v1369, 0.5
    %v1486 = vmul.f32 %v1373, 0.5
    %v1487 = vmul.f32 %v1379, 0.5
    %v1488 = vmul.f32 %v1383, 0.5
    %v1489 = vmul.f32 %v1389, 0.5
    %v1490 = vmul.f32 %v1393, 0.5
    %v1491 = vmul.f32 %v1399, 0.5
    %v1492 = vmul.f32 %v1403, 0.5
    %v1493 = vmul.f32 %v1409, 0.5
    %v1494 = vmul.f32 %v1413, 0.5
    %v1495 = vmul.f32 %v1419, 0.5
    %v1496 = vmul.f32 %v1423, 0.5
    %v1497 = vmul.f32 %v1429, 0.5
    %v1498 = vmul.f32 %v1433, 0.5
    %v1499 = vmul.f32 %v1439, 0.5
    %v1500 = vmul.f32 %v1443, 0.5
    %v1501 = vmul.f32 %v1449, 0.5
    %v1502 = vmul.f32 %v1453, 0.5
    %v1503 = vmul.f32 %v1459, 0.5
    %v1504 = vmul.f32 %v1463, 0.5
    %v1505 = vmul.f32 %v1469, 0.5
    %v1506 = vmul.f32 %v1473, 0.5
    %v1507 = vmul.f32 %v1475, 1.442695
    %v1508 = vpow.pop %v1507
    %v1509 = vmul.f32 %v1476, 1.442695
    %v1510 = vpow.pop %v1509
    %v1511 = vmul.f32 %v1477, 1.442695
    %v1512 = vpow.pop %v1511
    %v1513 = vmul.f32 %v1478, 1.442695
    %v1514 = vpow.pop %v1513
    %v1515 = vmul.f32 %v1479, 1.442695
    %v1516 = vpow.pop %v1515
    %v1517 = vmul.f32 %v1480, 1.442695
    %v1518 = vpow.pop %v1517
    %v1519 = vmul.f32 %v1481, 1.442695
    %v1520 = vpow.pop %v1519
    %v1521 = vmul.f32 %v1482, 1.442695
    %v1522 = vpow.pop %v1521
    %v1523 = vmul.f32 %v1483, 1.442695
    %v1524 = vpow.pop %v1523
    %v1525 = vmul.f32 %v1484, 1.442695
    %v1526 = vpow.pop %v1525
    %v1527 = vmul.f32 %v1485, 1.442695
    %v1528 = vpow.pop %v1527
    %v1529 = vmul.f32 %v1486, 1.442695
    %v1530 = vpow.pop %v1529
    %v1531 = vmul.f32 %v1487, 1.442695
    %v1532 = vpow.pop %v1531
    %v1533 = vmul.f32 %v1488, 1.442695
    %v1534 = vpow.pop %v1533
    %v1535 = vmul.f32 %v1489, 1.442695
    %v1536 = vpow.pop %v1535
    %v1537 = vmul.f32 %v1490, 1.442695
    %v1538 = vpow.pop %v1537
    %v1539 = vmul.f32 %v1491, 1.442695
    %v1540 = vpow.pop %v1539
    %v1541 = vmul.f32 %v1492, 1.442695
    %v1542 = vpow.pop %v1541
    %v1543 = vmul.f32 %v1493, 1.442695
    %v1544 = vpow.pop %v1543
    %v1545 = vmul.f32 %v1494, 1.442695
    %v1546 = vpow.pop %v1545
    %v1547 = vmul.f32 %v1495, 1.442695
    %v1548 = vpow.pop %v1547
    %v1549 = vmul.f32 %v1496, 1.442695
    %v1550 = vpow.pop %v1549
    %v1551 = vmul.f32 %v1497, 1.442695
    %v1552 = vpow.pop %v1551
    %v1553 = vmul.f32 %v1498, 1.442695
    %v1554 = vpow.pop %v1553
    %v1555 = vmul.f32 %v1499, 1.442695
    %v1556 = vpow.pop %v1555
    %v1557 = vmul.f32 %v1500, 1.442695
    %v1558 = vpow.pop %v1557
    %v1559 = vmul.f32 %v1501, 1.442695
    %v1560 = vpow.pop %v1559
    %v1561 = vmul.f32 %v1502, 1.442695
    %v1562 = vpow.pop %v1561
    %v1563 = vmul.f32 %v1503, 1.442695
    %v1564 = vpow.pop %v1563
    %v1565 = vmul.f32 %v1504, 1.442695
    %v1566 = vpow.pop %v1565
    %v1567 = vmul.f32 %v1505, 1.442695
    %v1568 = vpow.pop %v1567
    %v1569 = vmul.f32 %v1506, 1.442695
    %v1570 = vpow.pop %v1569
    %v1571 = vld [vmem:[#allocation6] sm:$0xff]
    %v1572 = vld [vmem:[#allocation6 + $0x8] sm:$0xff]
    %v1573 = vld [vmem:[#allocation6 + $0x10] sm:$0xff]
    %v1574 = vld [vmem:[#allocation6 + $0x18] sm:$0xff]
    %v1575 = vld [vmem:[#allocation6 + $0x20] sm:$0xff]
    %v1576 = vld [vmem:[#allocation6 + $0x28] sm:$0xff]
    %v1577 = vld [vmem:[#allocation6 + $0x30] sm:$0xff]
    %v1578 = vld [vmem:[#allocation6 + $0x38] sm:$0xff]
    %v1579 = vld [vmem:[#allocation6 + $0x40] sm:$0xff]
    %v1580 = vld [vmem:[#allocation6 + $0x48] sm:$0xff]
    %v1581 = vld [vmem:[#allocation6 + $0x50] sm:$0xff]
    %v1582 = vld [vmem:[#allocation6 + $0x58] sm:$0xff]
    %v1583 = vld [vmem:[#allocation6 + $0x60] sm:$0xff]
    %v1584 = vld [vmem:[#allocation6 + $0x68] sm:$0xff]
    %v1585 = vld [vmem:[#allocation6 + $0x70] sm:$0xff]
    %v1586 = vld [vmem:[#allocation6 + $0x78] sm:$0xff]
    %v1587 = vld [vmem:[#allocation6 + $0x80] sm:$0xff]
    %v1588 = vld [vmem:[#allocation6 + $0x88] sm:$0xff]
    %v1589 = vld [vmem:[#allocation6 + $0x90] sm:$0xff]
    %v1590 = vld [vmem:[#allocation6 + $0x98] sm:$0xff]
    %v1591 = vld [vmem:[#allocation6 + $0xa0] sm:$0xff]
    %v1592 = vld [vmem:[#allocation6 + $0xa8] sm:$0xff]
    %v1593 = vld [vmem:[#allocation6 + $0xb0] sm:$0xff]
    %v1594 = vld [vmem:[#allocation6 + $0xb8] sm:$0xff]
    %v1595 = vld [vmem:[#allocation6 + $0xc0] sm:$0xff]
    %v1596 = vld [vmem:[#allocation6 + $0xc8] sm:$0xff]
    %v1597 = vld [vmem:[#allocation6 + $0xd0] sm:$0xff]
    %v1598 = vld [vmem:[#allocation6 + $0xd8] sm:$0xff]
    %v1599 = vld [vmem:[#allocation6 + $0xe0] sm:$0xff]
    %v1600 = vld [vmem:[#allocation6 + $0xe8] sm:$0xff]
    %v1601 = vld [vmem:[#allocation6 + $0xf0] sm:$0xff]
    %v1602 = vld [vmem:[#allocation6 + $0xf8] sm:$0xff]
    %s1603 = sld [smem:[#allocation2]]
    %v1604 = vstv %s1603
    %v1605 = vmul.f32 %v1571, %v1604
    %v1606 = vmul.f32 %v1572, %v1604
    %v1607 = vmul.f32 %v1573, %v1604
    %v1608 = vmul.f32 %v1574, %v1604
    %v1609 = vmul.f32 %v1575, %v1604
    %v1610 = vmul.f32 %v1576, %v1604
    %v1611 = vmul.f32 %v1577, %v1604
    %v1612 = vmul.f32 %v1578, %v1604
    %v1613 = vmul.f32 %v1579, %v1604
    %v1614 = vmul.f32 %v1580, %v1604
    %v1615 = vmul.f32 %v1581, %v1604
    %v1616 = vmul.f32 %v1582, %v1604
    %v1617 = vmul.f32 %v1583, %v1604
    %v1618 = vmul.f32 %v1584, %v1604
    %v1619 = vmul.f32 %v1585, %v1604
    %v1620 = vmul.f32 %v1586, %v1604
    %v1621 = vmul.f32 %v1587, %v1604
    %v1622 = vmul.f32 %v1588, %v1604
    %v1623 = vmul.f32 %v1589, %v1604
    %v1624 = vmul.f32 %v1590, %v1604
    %v1625 = vmul.f32 %v1591, %v1604
    %v1626 = vmul.f32 %v1592, %v1604
    %v1627 = vmul.f32 %v1593, %v1604
    %v1628 = vmul.f32 %v1594, %v1604
    %v1629 = vmul.f32 %v1595, %v1604
    %v1630 = vmul.f32 %v1596, %v1604
    %v1631 = vmul.f32 %v1597, %v1604
    %v1632 = vmul.f32 %v1598, %v1604
    %v1633 = vmul.f32 %v1599, %v1604
    %v1634 = vmul.f32 %v1600, %v1604
    %v1635 = vmul.f32 %v1601, %v1604
    %v1636 = vmul.f32 %v1602, %v1604
    %v1637 = vmul.f32 %v1508, %v1605
    %v1638 = vmul.f32 %v1510, %v1606
    %v1639 = vmul.f32 %v1512, %v1607
    %v1640 = vmul.f32 %v1514, %v1608
    %v1641 = vmul.f32 %v1516, %v1609
    %v1642 = vmul.f32 %v1518, %v1610
    %v1643 = vmul.f32 %v1520, %v1611
    %v1644 = vmul.f32 %v1522, %v1612
    %v1645 = vmul.f32 %v1524, %v1613
    %v1646 = vmul.f32 %v1526, %v1614
    %v1647 = vmul.f32 %v1528, %v1615
    %v1648 = vmul.f32 %v1530, %v1616
    %v1649 = vmul.f32 %v1532, %v1617
    %v1650 = vmul.f32 %v1534, %v1618
    %v1651 = vmul.f32 %v1536, %v1619
    %v1652 = vmul.f32 %v1538, %v1620
    %v1653 = vmul.f32 %v1540, %v1621
    %v1654 = vmul.f32 %v1542, %v1622
    %v1655 = vmul.f32 %v1544, %v1623
    %v1656 = vmul.f32 %v1546, %v1624
    %v1657 = vmul.f32 %v1548, %v1625
    %v1658 = vmul.f32 %v1550, %v1626
    %v1659 = vmul.f32 %v1552, %v1627
    %v1660 = vmul.f32 %v1554, %v1628
    %v1661 = vmul.f32 %v1556, %v1629
    %v1662 = vmul.f32 %v1558, %v1630
    %v1663 = vmul.f32 %v1560, %v1631
    %v1664 = vmul.f32 %v1562, %v1632
    %v1665 = vmul.f32 %v1564, %v1633
    %v1666 = vmul.f32 %v1566, %v1634
    %v1667 = vmul.f32 %v1568, %v1635
    %v1668 = vmul.f32 %v1570, %v1636
    %v1669 = vadd.f32 %v1317, %v1637
    %v1670 = vadd.f32 %v1321, %v1638
    %v1671 = vadd.f32 %v1327, %v1639
    %v1672 = vadd.f32 %v1331, %v1640
    %v1673 = vadd.f32 %v1337, %v1641
    %v1674 = vadd.f32 %v1341, %v1642
    %v1675 = vadd.f32 %v1347, %v1643
    %v1676 = vadd.f32 %v1351, %v1644
    %v1677 = vadd.f32 %v1357, %v1645
    %v1678 = vadd.f32 %v1361, %v1646
    %v1679 = vadd.f32 %v1367, %v1647
    %v1680 = vadd.f32 %v1371, %v1648
    %v1681 = vadd.f32 %v1377, %v1649
    %v1682 = vadd.f32 %v1381, %v1650
    %v1683 = vadd.f32 %v1387, %v1651
    %v1684 = vadd.f32 %v1391, %v1652
    %v1685 = vadd.f32 %v1397, %v1653
    %v1686 = vadd.f32 %v1401, %v1654
    %v1687 = vadd.f32 %v1407, %v1655
    %v1688 = vadd.f32 %v1411, %v1656
    %v1689 = vadd.f32 %v1417, %v1657
    %v1690 = vadd.f32 %v1421, %v1658
    %v1691 = vadd.f32 %v1427, %v1659
    %v1692 = vadd.f32 %v1431, %v1660
    %v1693 = vadd.f32 %v1437, %v1661
    %v1694 = vadd.f32 %v1441, %v1662
    %v1695 = vadd.f32 %v1447, %v1663
    %v1696 = vadd.f32 %v1451, %v1664
    %v1697 = vadd.f32 %v1457, %v1665
    %v1698 = vadd.f32 %v1461, %v1666
    %v1699 = vadd.f32 %v1467, %v1667
    %v1700 = vadd.f32 %v1471, %v1668
    %v1701 = vpack.c.bf16 %v1670, %v1669
    %v1702 = vpack.c.bf16 %v1672, %v1671
    %v1703 = vpack.c.bf16 %v1674, %v1673
    %v1704 = vpack.c.bf16 %v1676, %v1675
    %v1705 = vpack.c.bf16 %v1678, %v1677
    %v1706 = vpack.c.bf16 %v1680, %v1679
    %v1707 = vpack.c.bf16 %v1682, %v1681
    %v1708 = vpack.c.bf16 %v1684, %v1683
    %v1709 = vpack.c.bf16 %v1686, %v1685
    %v1710 = vpack.c.bf16 %v1688, %v1687
    %v1711 = vpack.c.bf16 %v1690, %v1689
    %v1712 = vpack.c.bf16 %v1692, %v1691
    %v1713 = vpack.c.bf16 %v1694, %v1693
    %v1714 = vpack.c.bf16 %v1696, %v1695
    %v1715 = vpack.c.bf16 %v1698, %v1697
    %v1716 = vpack.c.bf16 %v1700, %v1699
    %v1717 = vld [vmem:[#allocation14] sm:$0xf]
    %v1718 = vld [vmem:[#allocation14 + $0x4] sm:$0xf]
    %v1719 = vld [vmem:[#allocation14 + $0x8] sm:$0xf]
    %v1720 = vld [vmem:[#allocation14 + $0xc] sm:$0xf]
    %v1721 = vld [vmem:[#allocation14 + $0x10] sm:$0xf]
    %v1722 = vld [vmem:[#allocation14 + $0x14] sm:$0xf]
    %v1723 = vld [vmem:[#allocation14 + $0x18] sm:$0xf]
    %v1724 = vld [vmem:[#allocation14 + $0x1c] sm:$0xf]
    %v1725 = vld [vmem:[#allocation14 + $0x20] sm:$0xf]
    %v1726 = vld [vmem:[#allocation14 + $0x24] sm:$0xf]
    %v1727 = vld [vmem:[#allocation14 + $0x28] sm:$0xf]
    %v1728 = vld [vmem:[#allocation14 + $0x2c] sm:$0xf]
    %v1729 = vld [vmem:[#allocation14 + $0x30] sm:$0xf]
    %v1730 = vld [vmem:[#allocation14 + $0x34] sm:$0xf]
    %v1731 = vld [vmem:[#allocation14 + $0x38] sm:$0xf]
    %v1732 = vld [vmem:[#allocation14 + $0x3c] sm:$0xf]
    %v1749 = vunpack.c.l.b16 %v1717
    %v1750 = vunpack.c.l.b16 %v1718
    %v1751 = vunpack.c.l.b16 %v1719
    %v1752 = vunpack.c.l.b16 %v1720
    %v1753 = vunpack.c.l.b16 %v1721
    %v1754 = vunpack.c.l.b16 %v1722
    %v1755 = vunpack.c.l.b16 %v1723
    %v1756 = vunpack.c.l.b16 %v1724
    %v1757 = vunpack.c.l.b16 %v1725
    %v1758 = vunpack.c.l.b16 %v1726
    %v1759 = vunpack.c.l.b16 %v1727
    %v1760 = vunpack.c.l.b16 %v1728
    %v1761 = vunpack.c.l.b16 %v1729
    %v1762 = vunpack.c.l.b16 %v1730
    %v1763 = vunpack.c.l.b16 %v1731
    %v1764 = vunpack.c.l.b16 %v1732
    %v1765 = vpack.c.b16 %v1750, %v1749
    %v1766 = vpack.c.b16 %v1752, %v1751
    %v1767 = vpack.c.b16 %v1754, %v1753
    %v1768 = vpack.c.b16 %v1756, %v1755
    %v1769 = vpack.c.b16 %v1758, %v1757
    %v1770 = vpack.c.b16 %v1760, %v1759
    %v1771 = vpack.c.b16 %v1762, %v1761
    %v1772 = vpack.c.b16 %v1764, %v1763
    %1781 = vmatprep.subr.bf16.mxu0 0
    %1782 = vmatpush1.bf16.msra.mxu0 %v1765
    %1783 = vmatprep.subr.bf16.mxu0 0
    %1784 = vmatpush1.bf16.msra.mxu0 %v1766
    %1785 = vmatprep.subr.bf16.mxu0 0
    %1786 = vmatpush1.bf16.msra.mxu0 %v1767
    %1787 = vmatprep.subr.bf16.mxu0 0
    %1788 = vmatpush1.bf16.msra.mxu0 %v1768
    %1789 = vmatprep.subr.bf16.mxu0 0
    %1790 = vmatpush1.bf16.msra.mxu0 %v1769
    %1791 = vmatprep.subr.bf16.mxu0 0
    %1792 = vmatpush1.bf16.msra.mxu0 %v1770
    %1793 = vmatprep.subr.bf16.mxu0 0
    %1794 = vmatpush1.bf16.msra.mxu0 %v1771
    %1795 = vmatprep.subr.bf16.mxu0 0
    %1796 = vmatpush1.bf16.msra.mxu0 %v1772
    %1797 = vmatprep.subr.bf16.mxu0 0
    %1798 = vmatpush1.bf16.msra.mxu0 0
    %1799 = vmatprep.subr.bf16.mxu0 0
    %1800 = vmatpush1.bf16.msra.mxu0 0
    %1801 = vmatprep.subr.bf16.mxu0 0
    %1802 = vmatpush1.bf16.msra.mxu0 0
    %1803 = vmatprep.subr.bf16.mxu0 0
    %1804 = vmatpush1.bf16.msra.mxu0 0
    %1805 = vmatprep.subr.bf16.mxu0 0
    %1806 = vmatpush1.bf16.msra.mxu0 0
    %1807 = vmatprep.subr.bf16.mxu0 0
    %1808 = vmatpush1.bf16.msra.mxu0 0
    %1809 = vmatprep.subr.bf16.mxu0 0
    %1810 = vmatpush1.bf16.msra.mxu0 0
    %1811 = vmatprep.subr.bf16.mxu0 0
    %1812 = vmatpush1.bf16.msra.mxu0 0
    %1813 = vmatprep.mubr.bf16.mxu0 0
    %1814 = vmatmul.mubr.bf16.gmra.mrb[0].mxu0 %v1701
    %v1815 = vpop.f32.mrb[0].mxu0
    %v1816 = vadd.f32 0.0, %v1815
    %v1817 = vpop.f32.mrb[0].mxu0
    %v1818 = vpop.f32.mrb[0].mxu0
    %v1819 = vadd.f32 0.0, %v1818
    %v1820 = vpop.f32.mrb[0].mxu0
    %1821 = vmatprep.mubr.bf16.mxu0 0
    %1822 = vmatmul.mubr.bf16.gmra.mrb[0].mxu0 %v1702
    %v1823 = vpop.f32.mrb[0].mxu0
    %v1824 = vadd.f32 0.0, %v1823
    %v1825 = vpop.f32.mrb[0].mxu0
    %v1826 = vpop.f32.mrb[0].mxu0
    %v1827 = vadd.f32 0.0, %v1826
    %v1828 = vpop.f32.mrb[0].mxu0
    %1829 = vmatprep.mubr.bf16.mxu0 0
    %1830 = vmatmul.mubr.bf16.gmra.mrb[0].mxu0 %v1703
    %v1831 = vpop.f32.mrb[0].mxu0
    %v1832 = vadd.f32 0.0, %v1831
    %v1833 = vpop.f32.mrb[0].mxu0
    %v1834 = vpop.f32.mrb[0].mxu0
    %v1835 = vadd.f32 0.0, %v1834
    %v1836 = vpop.f32.mrb[0].mxu0
    %1837 = vmatprep.mubr.bf16.mxu0 0
    %1838 = vmatmul.mubr.bf16.gmra.mrb[0].mxu0 %v1704
    %v1839 = vpop.f32.mrb[0].mxu0
    %v1840 = vadd.f32 0.0, %v1839
    %v1841 = vpop.f32.mrb[0].mxu0
    %v1842 = vpop.f32.mrb[0].mxu0
    %v1843 = vadd.f32 0.0, %v1842
    %v1844 = vpop.f32.mrb[0].mxu0
    %1845 = vmatprep.mubr.bf16.mxu0 0
    %1846 = vmatmul.mubr.bf16.gmra.mrb[0].mxu0 %v1705
    %v1847 = vpop.f32.mrb[0].mxu0
    %v1848 = vadd.f32 0.0, %v1847
    %v1849 = vpop.f32.mrb[0].mxu0
    %v1850 = vpop.f32.mrb[0].mxu0
    %v1851 = vadd.f32 0.0, %v1850
    %v1852 = vpop.f32.mrb[0].mxu0
    %1853 = vmatprep.mubr.bf16.mxu0 0
    %1854 = vmatmul.mubr.bf16.gmra.mrb[0].mxu0 %v1706
    %v1855 = vpop.f32.mrb[0].mxu0
    %v1856 = vadd.f32 0.0, %v1855
    %v1857 = vpop.f32.mrb[0].mxu0
    %v1858 = vpop.f32.mrb[0].mxu0
    %v1859 = vadd.f32 0.0, %v1858
    %v1860 = vpop.f32.mrb[0].mxu0
    %1861 = vmatprep.mubr.bf16.mxu0 0
    %1862 = vmatmul.mubr.bf16.gmra.mrb[0].mxu0 %v1707
    %v1863 = vpop.f32.mrb[0].mxu0
    %v1864 = vadd.f32 0.0, %v1863
    %v1865 = vpop.f32.mrb[0].mxu0
    %v1866 = vpop.f32.mrb[0].mxu0
    %v1867 = vadd.f32 0.0, %v1866
    %v1868 = vpop.f32.mrb[0].mxu0
    %1869 = vmatprep.mubr.bf16.mxu0 0
    %1870 = vmatmul.mubr.bf16.gmra.mrb[0].mxu0 %v1708
    %v1871 = vpop.f32.mrb[0].mxu0
    %v1872 = vadd.f32 0.0, %v1871
    %v1873 = vpop.f32.mrb[0].mxu0
    %v1874 = vpop.f32.mrb[0].mxu0
    %v1875 = vadd.f32 0.0, %v1874
    %v1876 = vpop.f32.mrb[0].mxu0
    %1877 = vmatprep.mubr.bf16.mxu0 0
    %1878 = vmatmul.mubr.bf16.gmra.mrb[0].mxu0 %v1709
    %v1879 = vpop.f32.mrb[0].mxu0
    %v1880 = vadd.f32 0.0, %v1879
    %v1881 = vpop.f32.mrb[0].mxu0
    %v1882 = vpop.f32.mrb[0].mxu0
    %v1883 = vadd.f32 0.0, %v1882
    %v1884 = vpop.f32.mrb[0].mxu0
    %1885 = vmatprep.mubr.bf16.mxu0 0
    %1886 = vmatmul.mubr.bf16.gmra.mrb[0].mxu0 %v1710
    %v1887 = vpop.f32.mrb[0].mxu0
    %v1888 = vadd.f32 0.0, %v1887
    %v1889 = vpop.f32.mrb[0].mxu0
    %v1890 = vpop.f32.mrb[0].mxu0
    %v1891 = vadd.f32 0.0, %v1890
    %v1892 = vpop.f32.mrb[0].mxu0
    %1893 = vmatprep.mubr.bf16.mxu0 0
    %1894 = vmatmul.mubr.bf16.gmra.mrb[0].mxu0 %v1711
    %v1895 = vpop.f32.mrb[0].mxu0
    %v1896 = vadd.f32 0.0, %v1895
    %v1897 = vpop.f32.mrb[0].mxu0
    %v1898 = vpop.f32.mrb[0].mxu0
    %v1899 = vadd.f32 0.0, %v1898
    %v1900 = vpop.f32.mrb[0].mxu0
    %1901 = vmatprep.mubr.bf16.mxu0 0
    %1902 = vmatmul.mubr.bf16.gmra.mrb[0].mxu0 %v1712
    %v1903 = vpop.f32.mrb[0].mxu0
    %v1904 = vadd.f32 0.0, %v1903
    %v1905 = vpop.f32.mrb[0].mxu0
    %v1906 = vpop.f32.mrb[0].mxu0
    %v1907 = vadd.f32 0.0, %v1906
    %v1908 = vpop.f32.mrb[0].mxu0
    %1909 = vmatprep.mubr.bf16.mxu0 0
    %1910 = vmatmul.mubr.bf16.gmra.mrb[0].mxu0 %v1713
    %v1911 = vpop.f32.mrb[0].mxu0
    %v1912 = vadd.f32 0.0, %v1911
    %v1913 = vpop.f32.mrb[0].mxu0
    %v1914 = vpop.f32.mrb[0].mxu0
    %v1915 = vadd.f32 0.0, %v1914
    %v1916 = vpop.f32.mrb[0].mxu0
    %1917 = vmatprep.mubr.bf16.mxu0 0
    %1918 = vmatmul.mubr.bf16.gmra.mrb[0].mxu0 %v1714
    %v1919 = vpop.f32.mrb[0].mxu0
    %v1920 = vadd.f32 0.0, %v1919
    %v1921 = vpop.f32.mrb[0].mxu0
    %v1922 = vpop.f32.mrb[0].mxu0
    %v1923 = vadd.f32 0.0, %v1922
    %v1924 = vpop.f32.mrb[0].mxu0
    %1925 = vmatprep.mubr.bf16.mxu0 0
    %1926 = vmatmul.mubr.bf16.gmra.mrb[0].mxu0 %v1715
    %v1927 = vpop.f32.mrb[0].mxu0
    %v1928 = vadd.f32 0.0, %v1927
    %v1929 = vpop.f32.mrb[0].mxu0
    %v1930 = vpop.f32.mrb[0].mxu0
    %v1931 = vadd.f32 0.0, %v1930
    %v1932 = vpop.f32.mrb[0].mxu0
    %1933 = vmatprep.mubr.bf16.mxu0 0
    %1934 = vmatmul.mubr.bf16.gmra.mrb[0].mxu0 %v1716
    %v1935 = vpop.f32.mrb[0].mxu0
    %v1936 = vadd.f32 0.0, %v1935
    %v1937 = vpop.f32.mrb[0].mxu0
    %v1938 = vpop.f32.mrb[0].mxu0
    %v1939 = vadd.f32 0.0, %v1938
    %v1940 = vpop.f32.mrb[0].mxu0
    %1941 = vdwg.mxu0
    %v1942 = vld [vmem:[#allocation8 + $0x5] ss:$0 sm:$0xff]
    %v1943 = vld [vmem:[#allocation8 + $0x6] ss:$0 sm:$0xff]
    %v1944 = vadd.f32 %v1816, %v1819
    %v1945 = vadd.f32 %v1944, %v1824
    %v1946 = vadd.f32 %v1945, %v1827
    %v1947 = vadd.f32 %v1946, %v1832
    %v1948 = vadd.f32 %v1947, %v1835
    %v1949 = vadd.f32 %v1948, %v1840
    %v1950 = vadd.f32 %v1949, %v1843
    %v1951 = vadd.f32 %v1950, %v1848
    %v1952 = vadd.f32 %v1951, %v1851
    %v1953 = vadd.f32 %v1952, %v1856
    %v1954 = vadd.f32 %v1953, %v1859
    %v1955 = vadd.f32 %v1954, %v1864
    %v1956 = vadd.f32 %v1955, %v1867
    %v1957 = vadd.f32 %v1956, %v1872
    %v1958 = vadd.f32 %v1957, %v1875
    %v1959 = vadd.f32 %v1958, %v1880
    %v1960 = vadd.f32 %v1959, %v1883
    %v1961 = vadd.f32 %v1960, %v1888
    %v1962 = vadd.f32 %v1961, %v1891
    %v1963 = vadd.f32 %v1962, %v1896
    %v1964 = vadd.f32 %v1963, %v1899
    %v1965 = vadd.f32 %v1964, %v1904
    %v1966 = vadd.f32 %v1965, %v1907
    %v1967 = vadd.f32 %v1966, %v1912
    %v1968 = vadd.f32 %v1967, %v1915
    %v1969 = vadd.f32 %v1968, %v1920
    %v1970 = vadd.f32 %v1969, %v1923
    %v1971 = vadd.f32 %v1970, %v1928
    %v1972 = vadd.f32 %v1971, %v1931
    %v1973 = vadd.f32 %v1972, %v1936
    %v1974 = vadd.f32 %v1973, %v1939
    %v1975 = vrot.slane %v1974, 4
    %v1976 = vadd.f32 %v1974, %v1975
    %v1977 = vrot.slane %v1976, 2
    %v1978 = vadd.f32 %v1976, %v1977
    %v1979 = vrot.slane %v1978, 1
    %v1980 = vadd.f32 %v1978, %v1979
    %v1981 = vmul.f32 %v1980, %v472
    %v1982 = vsub.f32 %v1816, %v1981
    %v1983 = vsub.f32 %v1819, %v1981
    %v1984 = vsub.f32 %v1824, %v1981
    %v1985 = vsub.f32 %v1827, %v1981
    %v1986 = vsub.f32 %v1832, %v1981
    %v1987 = vsub.f32 %v1835, %v1981
    %v1988 = vsub.f32 %v1840, %v1981
    %v1989 = vsub.f32 %v1843, %v1981
    %v1990 = vsub.f32 %v1848, %v1981
    %v1991 = vsub.f32 %v1851, %v1981
    %v1992 = vsub.f32 %v1856, %v1981
    %v1993 = vsub.f32 %v1859, %v1981
    %v1994 = vsub.f32 %v1864, %v1981
    %v1995 = vsub.f32 %v1867, %v1981
    %v1996 = vsub.f32 %v1872, %v1981
    %v1997 = vsub.f32 %v1875, %v1981
    %v1998 = vsub.f32 %v1880, %v1981
    %v1999 = vsub.f32 %v1883, %v1981
    %v2000 = vsub.f32 %v1888, %v1981
    %v2001 = vsub.f32 %v1891, %v1981
    %v2002 = vsub.f32 %v1896, %v1981
    %v2003 = vsub.f32 %v1899, %v1981
    %v2004 = vsub.f32 %v1904, %v1981
    %v2005 = vsub.f32 %v1907, %v1981
    %v2006 = vsub.f32 %v1912, %v1981
    %v2007 = vsub.f32 %v1915, %v1981
    %v2008 = vsub.f32 %v1920, %v1981
    %v2009 = vsub.f32 %v1923, %v1981
    %v2010 = vsub.f32 %v1928, %v1981
    %v2011 = vsub.f32 %v1931, %v1981
    %v2012 = vsub.f32 %v1936, %v1981
    %v2013 = vsub.f32 %v1939, %v1981
    %v2014 = vmul.f32 %v1982, %v1982
    %v2015 = vmul.f32 %v1983, %v1983
    %v2016 = vmul.f32 %v1984, %v1984
    %v2017 = vmul.f32 %v1985, %v1985
    %v2018 = vmul.f32 %v1986, %v1986
    %v2019 = vmul.f32 %v1987, %v1987
    %v2020 = vmul.f32 %v1988, %v1988
    %v2021 = vmul.f32 %v1989, %v1989
    %v2022 = vmul.f32 %v1990, %v1990
    %v2023 = vmul.f32 %v1991, %v1991
    %v2024 = vmul.f32 %v1992, %v1992
    %v2025 = vmul.f32 %v1993, %v1993
    %v2026 = vmul.f32 %v1994, %v1994
    %v2027 = vmul.f32 %v1995, %v1995
    %v2028 = vmul.f32 %v1996, %v1996
    %v2029 = vmul.f32 %v1997, %v1997
    %v2030 = vmul.f32 %v1998, %v1998
    %v2031 = vmul.f32 %v1999, %v1999
    %v2032 = vmul.f32 %v2000, %v2000
    %v2033 = vmul.f32 %v2001, %v2001
    %v2034 = vmul.f32 %v2002, %v2002
    %v2035 = vmul.f32 %v2003, %v2003
    %v2036 = vmul.f32 %v2004, %v2004
    %v2037 = vmul.f32 %v2005, %v2005
    %v2038 = vmul.f32 %v2006, %v2006
    %v2039 = vmul.f32 %v2007, %v2007
    %v2040 = vmul.f32 %v2008, %v2008
    %v2041 = vmul.f32 %v2009, %v2009
    %v2042 = vmul.f32 %v2010, %v2010
    %v2043 = vmul.f32 %v2011, %v2011
    %v2044 = vmul.f32 %v2012, %v2012
    %v2045 = vmul.f32 %v2013, %v2013
    %v2046 = vadd.f32 %v2014, %v2015
    %v2047 = vadd.f32 %v2046, %v2016
    %v2048 = vadd.f32 %v2047, %v2017
    %v2049 = vadd.f32 %v2048, %v2018
    %v2050 = vadd.f32 %v2049, %v2019
    %v2051 = vadd.f32 %v2050, %v2020
    %v2052 = vadd.f32 %v2051, %v2021
    %v2053 = vadd.f32 %v2052, %v2022
    %v2054 = vadd.f32 %v2053, %v2023
    %v2055 = vadd.f32 %v2054, %v2024
    %v2056 = vadd.f32 %v2055, %v2025
    %v2057 = vadd.f32 %v2056, %v2026
    %v2058 = vadd.f32 %v2057, %v2027
    %v2059 = vadd.f32 %v2058, %v2028
    %v2060 = vadd.f32 %v2059, %v2029
    %v2061 = vadd.f32 %v2060, %v2030
    %v2062 = vadd.f32 %v2061, %v2031
    %v2063 = vadd.f32 %v2062, %v2032
    %v2064 = vadd.f32 %v2063, %v2033
    %v2065 = vadd.f32 %v2064, %v2034
    %v2066 = vadd.f32 %v2065, %v2035
    %v2067 = vadd.f32 %v2066, %v2036
    %v2068 = vadd.f32 %v2067, %v2037
    %v2069 = vadd.f32 %v2068, %v2038
    %v2070 = vadd.f32 %v2069, %v2039
    %v2071 = vadd.f32 %v2070, %v2040
    %v2072 = vadd.f32 %v2071, %v2041
    %v2073 = vadd.f32 %v2072, %v2042
    %v2074 = vadd.f32 %v2073, %v2043
    %v2075 = vadd.f32 %v2074, %v2044
    %v2076 = vadd.f32 %v2075, %v2045
    %v2077 = vrot.slane %v2076, 4
    %v2078 = vadd.f32 %v2076, %v2077
    %v2079 = vrot.slane %v2078, 2
    %v2080 = vadd.f32 %v2078, %v2079
    %v2081 = vrot.slane %v2080, 1
    %v2082 = vadd.f32 %v2080, %v2081
    %v2083 = vmul.f32 %v2082, %v472
    %v2084 = vadd.f32 %v2083, 1e-05
    %v2085 = vrsqrt.pop %v2084
    %v2086 = vmul.f32 %v1942, %v2085
    %v2087 = vmul.f32 %v1982, %v2086
    %v2088 = vmul.f32 %v1983, %v2086
    %v2089 = vmul.f32 %v1984, %v2086
    %v2090 = vmul.f32 %v1985, %v2086
    %v2091 = vmul.f32 %v1986, %v2086
    %v2092 = vmul.f32 %v1987, %v2086
    %v2093 = vmul.f32 %v1988, %v2086
    %v2094 = vmul.f32 %v1989, %v2086
    %v2095 = vmul.f32 %v1990, %v2086
    %v2096 = vmul.f32 %v1991, %v2086
    %v2097 = vmul.f32 %v1992, %v2086
    %v2098 = vmul.f32 %v1993, %v2086
    %v2099 = vmul.f32 %v1994, %v2086
    %v2100 = vmul.f32 %v1995, %v2086
    %v2101 = vmul.f32 %v1996, %v2086
    %v2102 = vmul.f32 %v1997, %v2086
    %v2103 = vmul.f32 %v1998, %v2086
    %v2104 = vmul.f32 %v1999, %v2086
    %v2105 = vmul.f32 %v2000, %v2086
    %v2106 = vmul.f32 %v2001, %v2086
    %v2107 = vmul.f32 %v2002, %v2086
    %v2108 = vmul.f32 %v2003, %v2086
    %v2109 = vmul.f32 %v2004, %v2086
    %v2110 = vmul.f32 %v2005, %v2086
    %v2111 = vmul.f32 %v2006, %v2086
    %v2112 = vmul.f32 %v2007, %v2086
    %v2113 = vmul.f32 %v2008, %v2086
    %v2114 = vmul.f32 %v2009, %v2086
    %v2115 = vmul.f32 %v2010, %v2086
    %v2116 = vmul.f32 %v2011, %v2086
    %v2117 = vmul.f32 %v2012, %v2086
    %v2118 = vmul.f32 %v2013, %v2086
    %v2119 = vadd.f32 %v2087, %v1943
    %v2120 = vadd.f32 %v2088, %v1943
    %v2121 = vadd.f32 %v2089, %v1943
    %v2122 = vadd.f32 %v2090, %v1943
    %v2123 = vadd.f32 %v2091, %v1943
    %v2124 = vadd.f32 %v2092, %v1943
    %v2125 = vadd.f32 %v2093, %v1943
    %v2126 = vadd.f32 %v2094, %v1943
    %v2127 = vadd.f32 %v2095, %v1943
    %v2128 = vadd.f32 %v2096, %v1943
    %v2129 = vadd.f32 %v2097, %v1943
    %v2130 = vadd.f32 %v2098, %v1943
    %v2131 = vadd.f32 %v2099, %v1943
    %v2132 = vadd.f32 %v2100, %v1943
    %v2133 = vadd.f32 %v2101, %v1943
    %v2134 = vadd.f32 %v2102, %v1943
    %v2135 = vadd.f32 %v2103, %v1943
    %v2136 = vadd.f32 %v2104, %v1943
    %v2137 = vadd.f32 %v2105, %v1943
    %v2138 = vadd.f32 %v2106, %v1943
    %v2139 = vadd.f32 %v2107, %v1943
    %v2140 = vadd.f32 %v2108, %v1943
    %v2141 = vadd.f32 %v2109, %v1943
    %v2142 = vadd.f32 %v2110, %v1943
    %v2143 = vadd.f32 %v2111, %v1943
    %v2144 = vadd.f32 %v2112, %v1943
    %v2145 = vadd.f32 %v2113, %v1943
    %v2146 = vadd.f32 %v2114, %v1943
    %v2147 = vadd.f32 %v2115, %v1943
    %v2148 = vadd.f32 %v2116, %v1943
    %v2149 = vadd.f32 %v2117, %v1943
    %v2150 = vadd.f32 %v2118, %v1943
    %v2151 = vmax.f32 %v2119, 0.0
    %v2152 = vmax.f32 %v2120, 0.0
    %v2153 = vmax.f32 %v2121, 0.0
    %v2154 = vmax.f32 %v2122, 0.0
    %v2155 = vmax.f32 %v2123, 0.0
    %v2156 = vmax.f32 %v2124, 0.0
    %v2157 = vmax.f32 %v2125, 0.0
    %v2158 = vmax.f32 %v2126, 0.0
    %v2159 = vmax.f32 %v2127, 0.0
    %v2160 = vmax.f32 %v2128, 0.0
    %v2161 = vmax.f32 %v2129, 0.0
    %v2162 = vmax.f32 %v2130, 0.0
    %v2163 = vmax.f32 %v2131, 0.0
    %v2164 = vmax.f32 %v2132, 0.0
    %v2165 = vmax.f32 %v2133, 0.0
    %v2166 = vmax.f32 %v2134, 0.0
    %v2167 = vmax.f32 %v2135, 0.0
    %v2168 = vmax.f32 %v2136, 0.0
    %v2169 = vmax.f32 %v2137, 0.0
    %v2170 = vmax.f32 %v2138, 0.0
    %v2171 = vmax.f32 %v2139, 0.0
    %v2172 = vmax.f32 %v2140, 0.0
    %v2173 = vmax.f32 %v2141, 0.0
    %v2174 = vmax.f32 %v2142, 0.0
    %v2175 = vmax.f32 %v2143, 0.0
    %v2176 = vmax.f32 %v2144, 0.0
    %v2177 = vmax.f32 %v2145, 0.0
    %v2178 = vmax.f32 %v2146, 0.0
    %v2179 = vmax.f32 %v2147, 0.0
    %v2180 = vmax.f32 %v2148, 0.0
    %v2181 = vmax.f32 %v2149, 0.0
    %v2182 = vmax.f32 %v2150, 0.0
    %v2183 = vpack.c.bf16 %v2152, %v2151
    %v2184 = vpack.c.bf16 %v2154, %v2153
    %v2185 = vpack.c.bf16 %v2156, %v2155
    %v2186 = vpack.c.bf16 %v2158, %v2157
    %v2187 = vpack.c.bf16 %v2160, %v2159
    %v2188 = vpack.c.bf16 %v2162, %v2161
    %v2189 = vpack.c.bf16 %v2164, %v2163
    %v2190 = vpack.c.bf16 %v2166, %v2165
    %v2191 = vpack.c.bf16 %v2168, %v2167
    %v2192 = vpack.c.bf16 %v2170, %v2169
    %v2193 = vpack.c.bf16 %v2172, %v2171
    %v2194 = vpack.c.bf16 %v2174, %v2173
    %v2195 = vpack.c.bf16 %v2176, %v2175
    %v2196 = vpack.c.bf16 %v2178, %v2177
    %v2197 = vpack.c.bf16 %v2180, %v2179
    %v2198 = vpack.c.bf16 %v2182, %v2181
    %v2199 = vld [vmem:[#allocation15] sm:$0xf]
    %v2200 = vld [vmem:[#allocation15 + $0x4] sm:$0xf]
    %v2201 = vld [vmem:[#allocation15 + $0x8] sm:$0xf]
    %v2202 = vld [vmem:[#allocation15 + $0xc] sm:$0xf]
    %v2203 = vld [vmem:[#allocation15 + $0x10] sm:$0xf]
    %v2204 = vld [vmem:[#allocation15 + $0x14] sm:$0xf]
    %v2205 = vld [vmem:[#allocation15 + $0x18] sm:$0xf]
    %v2206 = vld [vmem:[#allocation15 + $0x1c] sm:$0xf]
    %v2207 = vld [vmem:[#allocation15 + $0x20] sm:$0xf]
    %v2208 = vld [vmem:[#allocation15 + $0x24] sm:$0xf]
    %v2209 = vld [vmem:[#allocation15 + $0x28] sm:$0xf]
    %v2210 = vld [vmem:[#allocation15 + $0x2c] sm:$0xf]
    %v2211 = vld [vmem:[#allocation15 + $0x30] sm:$0xf]
    %v2212 = vld [vmem:[#allocation15 + $0x34] sm:$0xf]
    %v2213 = vld [vmem:[#allocation15 + $0x38] sm:$0xf]
    %v2214 = vld [vmem:[#allocation15 + $0x3c] sm:$0xf]
    %v2231 = vunpack.c.l.b16 %v2199
    %v2232 = vunpack.c.l.b16 %v2200
    %v2233 = vunpack.c.l.b16 %v2201
    %v2234 = vunpack.c.l.b16 %v2202
    %v2235 = vunpack.c.l.b16 %v2203
    %v2236 = vunpack.c.l.b16 %v2204
    %v2237 = vunpack.c.l.b16 %v2205
    %v2238 = vunpack.c.l.b16 %v2206
    %v2239 = vunpack.c.l.b16 %v2207
    %v2240 = vunpack.c.l.b16 %v2208
    %v2241 = vunpack.c.l.b16 %v2209
    %v2242 = vunpack.c.l.b16 %v2210
    %v2243 = vunpack.c.l.b16 %v2211
    %v2244 = vunpack.c.l.b16 %v2212
    %v2245 = vunpack.c.l.b16 %v2213
    %v2246 = vunpack.c.l.b16 %v2214
    %v2247 = vpack.c.b16 %v2232, %v2231
    %v2248 = vpack.c.b16 %v2234, %v2233
    %v2249 = vpack.c.b16 %v2236, %v2235
    %v2250 = vpack.c.b16 %v2238, %v2237
    %v2251 = vpack.c.b16 %v2240, %v2239
    %v2252 = vpack.c.b16 %v2242, %v2241
    %v2253 = vpack.c.b16 %v2244, %v2243
    %v2254 = vpack.c.b16 %v2246, %v2245
    %2263 = vmatprep.subr.bf16.mxu0 0
    %2264 = vmatpush1.bf16.msra.mxu0 %v2247
    %2265 = vmatprep.subr.bf16.mxu0 0
    %2266 = vmatpush1.bf16.msra.mxu0 %v2248
    %2267 = vmatprep.subr.bf16.mxu0 0
    %2268 = vmatpush1.bf16.msra.mxu0 %v2249
    %2269 = vmatprep.subr.bf16.mxu0 0
    %2270 = vmatpush1.bf16.msra.mxu0 %v2250
    %2271 = vmatprep.subr.bf16.mxu0 0
    %2272 = vmatpush1.bf16.msra.mxu0 %v2251
    %2273 = vmatprep.subr.bf16.mxu0 0
    %2274 = vmatpush1.bf16.msra.mxu0 %v2252
    %2275 = vmatprep.subr.bf16.mxu0 0
    %2276 = vmatpush1.bf16.msra.mxu0 %v2253
    %2277 = vmatprep.subr.bf16.mxu0 0
    %2278 = vmatpush1.bf16.msra.mxu0 %v2254
    %2279 = vmatprep.subr.bf16.mxu0 0
    %2280 = vmatpush1.bf16.msra.mxu0 0
    %2281 = vmatprep.subr.bf16.mxu0 0
    %2282 = vmatpush1.bf16.msra.mxu0 0
    %2283 = vmatprep.subr.bf16.mxu0 0
    %2284 = vmatpush1.bf16.msra.mxu0 0
    %2285 = vmatprep.subr.bf16.mxu0 0
    %2286 = vmatpush1.bf16.msra.mxu0 0
    %2287 = vmatprep.subr.bf16.mxu0 0
    %2288 = vmatpush1.bf16.msra.mxu0 0
    %2289 = vmatprep.subr.bf16.mxu0 0
    %2290 = vmatpush1.bf16.msra.mxu0 0
    %2291 = vmatprep.subr.bf16.mxu0 0
    %2292 = vmatpush1.bf16.msra.mxu0 0
    %2293 = vmatprep.subr.bf16.mxu0 0
    %2294 = vmatpush1.bf16.msra.mxu0 0
    %2295 = vmatprep.mubr.bf16.mxu0 0
    %2296 = vmatmul.mubr.bf16.gmra.mrb[0].mxu0 %v2183
    %v2297 = vpop.f32.mrb[0].mxu0
    %v2298 = vadd.f32 0.0, %v2297
    %v2299 = vpop.f32.mrb[0].mxu0
    %v2300 = vpop.f32.mrb[0].mxu0
    %v2301 = vadd.f32 0.0, %v2300
    %v2302 = vpop.f32.mrb[0].mxu0
    %2303 = vmatprep.mubr.bf16.mxu0 0
    %2304 = vmatmul.mubr.bf16.gmra.mrb[0].mxu0 %v2184
    %v2305 = vpop.f32.mrb[0].mxu0
    %v2306 = vadd.f32 0.0, %v2305
    %v2307 = vpop.f32.mrb[0].mxu0
    %v2308 = vpop.f32.mrb[0].mxu0
    %v2309 = vadd.f32 0.0, %v2308
    %v2310 = vpop.f32.mrb[0].mxu0
    %2311 = vmatprep.mubr.bf16.mxu0 0
    %2312 = vmatmul.mubr.bf16.gmra.mrb[0].mxu0 %v2185
    %v2313 = vpop.f32.mrb[0].mxu0
    %v2314 = vadd.f32 0.0, %v2313
    %v2315 = vpop.f32.mrb[0].mxu0
    %v2316 = vpop.f32.mrb[0].mxu0
    %v2317 = vadd.f32 0.0, %v2316
    %v2318 = vpop.f32.mrb[0].mxu0
    %2319 = vmatprep.mubr.bf16.mxu0 0
    %2320 = vmatmul.mubr.bf16.gmra.mrb[0].mxu0 %v2186
    %v2321 = vpop.f32.mrb[0].mxu0
    %v2322 = vadd.f32 0.0, %v2321
    %v2323 = vpop.f32.mrb[0].mxu0
    %v2324 = vpop.f32.mrb[0].mxu0
    %v2325 = vadd.f32 0.0, %v2324
    %v2326 = vpop.f32.mrb[0].mxu0
    %2327 = vmatprep.mubr.bf16.mxu0 0
    %2328 = vmatmul.mubr.bf16.gmra.mrb[0].mxu0 %v2187
    %v2329 = vpop.f32.mrb[0].mxu0
    %v2330 = vadd.f32 0.0, %v2329
    %v2331 = vpop.f32.mrb[0].mxu0
    %v2332 = vpop.f32.mrb[0].mxu0
    %v2333 = vadd.f32 0.0, %v2332
    %v2334 = vpop.f32.mrb[0].mxu0
    %2335 = vmatprep.mubr.bf16.mxu0 0
    %2336 = vmatmul.mubr.bf16.gmra.mrb[0].mxu0 %v2188
    %v2337 = vpop.f32.mrb[0].mxu0
    %v2338 = vadd.f32 0.0, %v2337
    %v2339 = vpop.f32.mrb[0].mxu0
    %v2340 = vpop.f32.mrb[0].mxu0
    %v2341 = vadd.f32 0.0, %v2340
    %v2342 = vpop.f32.mrb[0].mxu0
    %2343 = vmatprep.mubr.bf16.mxu0 0
    %2344 = vmatmul.mubr.bf16.gmra.mrb[0].mxu0 %v2189
    %v2345 = vpop.f32.mrb[0].mxu0
    %v2346 = vadd.f32 0.0, %v2345
    %v2347 = vpop.f32.mrb[0].mxu0
    %v2348 = vpop.f32.mrb[0].mxu0
    %v2349 = vadd.f32 0.0, %v2348
    %v2350 = vpop.f32.mrb[0].mxu0
    %2351 = vmatprep.mubr.bf16.mxu0 0
    %2352 = vmatmul.mubr.bf16.gmra.mrb[0].mxu0 %v2190
    %v2353 = vpop.f32.mrb[0].mxu0
    %v2354 = vadd.f32 0.0, %v2353
    %v2355 = vpop.f32.mrb[0].mxu0
    %v2356 = vpop.f32.mrb[0].mxu0
    %v2357 = vadd.f32 0.0, %v2356
    %v2358 = vpop.f32.mrb[0].mxu0
    %2359 = vmatprep.mubr.bf16.mxu0 0
    %2360 = vmatmul.mubr.bf16.gmra.mrb[0].mxu0 %v2191
    %v2361 = vpop.f32.mrb[0].mxu0
    %v2362 = vadd.f32 0.0, %v2361
    %v2363 = vpop.f32.mrb[0].mxu0
    %v2364 = vpop.f32.mrb[0].mxu0
    %v2365 = vadd.f32 0.0, %v2364
    %v2366 = vpop.f32.mrb[0].mxu0
    %2367 = vmatprep.mubr.bf16.mxu0 0
    %2368 = vmatmul.mubr.bf16.gmra.mrb[0].mxu0 %v2192
    %v2369 = vpop.f32.mrb[0].mxu0
    %v2370 = vadd.f32 0.0, %v2369
    %v2371 = vpop.f32.mrb[0].mxu0
    %v2372 = vpop.f32.mrb[0].mxu0
    %v2373 = vadd.f32 0.0, %v2372
    %v2374 = vpop.f32.mrb[0].mxu0
    %2375 = vmatprep.mubr.bf16.mxu0 0
    %2376 = vmatmul.mubr.bf16.gmra.mrb[0].mxu0 %v2193
    %v2377 = vpop.f32.mrb[0].mxu0
    %v2378 = vadd.f32 0.0, %v2377
    %v2379 = vpop.f32.mrb[0].mxu0
    %v2380 = vpop.f32.mrb[0].mxu0
    %v2381 = vadd.f32 0.0, %v2380
    %v2382 = vpop.f32.mrb[0].mxu0
    %2383 = vmatprep.mubr.bf16.mxu0 0
    %2384 = vmatmul.mubr.bf16.gmra.mrb[0].mxu0 %v2194
    %v2385 = vpop.f32.mrb[0].mxu0
    %v2386 = vadd.f32 0.0, %v2385
    %v2387 = vpop.f32.mrb[0].mxu0
    %v2388 = vpop.f32.mrb[0].mxu0
    %v2389 = vadd.f32 0.0, %v2388
    %v2390 = vpop.f32.mrb[0].mxu0
    %2391 = vmatprep.mubr.bf16.mxu0 0
    %2392 = vmatmul.mubr.bf16.gmra.mrb[0].mxu0 %v2195
    %v2393 = vpop.f32.mrb[0].mxu0
    %v2394 = vadd.f32 0.0, %v2393
    %v2395 = vpop.f32.mrb[0].mxu0
    %v2396 = vpop.f32.mrb[0].mxu0
    %v2397 = vadd.f32 0.0, %v2396
    %v2398 = vpop.f32.mrb[0].mxu0
    %2399 = vmatprep.mubr.bf16.mxu0 0
    %2400 = vmatmul.mubr.bf16.gmra.mrb[0].mxu0 %v2196
    %v2401 = vpop.f32.mrb[0].mxu0
    %v2402 = vadd.f32 0.0, %v2401
    %v2403 = vpop.f32.mrb[0].mxu0
    %v2404 = vpop.f32.mrb[0].mxu0
    %v2405 = vadd.f32 0.0, %v2404
    %v2406 = vpop.f32.mrb[0].mxu0
    %2407 = vmatprep.mubr.bf16.mxu0 0
    %2408 = vmatmul.mubr.bf16.gmra.mrb[0].mxu0 %v2197
    %v2409 = vpop.f32.mrb[0].mxu0
    %v2410 = vadd.f32 0.0, %v2409
    %v2411 = vpop.f32.mrb[0].mxu0
    %v2412 = vpop.f32.mrb[0].mxu0
    %v2413 = vadd.f32 0.0, %v2412
    %v2414 = vpop.f32.mrb[0].mxu0
    %2415 = vmatprep.mubr.bf16.mxu0 0
    %2416 = vmatmul.mubr.bf16.gmra.mrb[0].mxu0 %v2198
    %v2417 = vpop.f32.mrb[0].mxu0
    %v2418 = vadd.f32 0.0, %v2417
    %v2419 = vpop.f32.mrb[0].mxu0
    %v2420 = vpop.f32.mrb[0].mxu0
    %v2421 = vadd.f32 0.0, %v2420
    %v2422 = vpop.f32.mrb[0].mxu0
    %2423 = vdwg.mxu0
    %v2424 = vld [vmem:[#allocation8 + $0x7] ss:$0 sm:$0xff]
    %v2425 = vld [vmem:[#allocation8 + $0x10] ss:$0 sm:$0xff]
    %v2426 = vadd.f32 %v2298, %v2301
    %v2427 = vadd.f32 %v2426, %v2306
    %v2428 = vadd.f32 %v2427, %v2309
    %v2429 = vadd.f32 %v2428, %v2314
    %v2430 = vadd.f32 %v2429, %v2317
    %v2431 = vadd.f32 %v2430, %v2322
    %v2432 = vadd.f32 %v2431, %v2325
    %v2433 = vadd.f32 %v2432, %v2330
    %v2434 = vadd.f32 %v2433, %v2333
    %v2435 = vadd.f32 %v2434, %v2338
    %v2436 = vadd.f32 %v2435, %v2341
    %v2437 = vadd.f32 %v2436, %v2346
    %v2438 = vadd.f32 %v2437, %v2349
    %v2439 = vadd.f32 %v2438, %v2354
    %v2440 = vadd.f32 %v2439, %v2357
    %v2441 = vadd.f32 %v2440, %v2362
    %v2442 = vadd.f32 %v2441, %v2365
    %v2443 = vadd.f32 %v2442, %v2370
    %v2444 = vadd.f32 %v2443, %v2373
    %v2445 = vadd.f32 %v2444, %v2378
    %v2446 = vadd.f32 %v2445, %v2381
    %v2447 = vadd.f32 %v2446, %v2386
    %v2448 = vadd.f32 %v2447, %v2389
    %v2449 = vadd.f32 %v2448, %v2394
    %v2450 = vadd.f32 %v2449, %v2397
    %v2451 = vadd.f32 %v2450, %v2402
    %v2452 = vadd.f32 %v2451, %v2405
    %v2453 = vadd.f32 %v2452, %v2410
    %v2454 = vadd.f32 %v2453, %v2413
    %v2455 = vadd.f32 %v2454, %v2418
    %v2456 = vadd.f32 %v2455, %v2421
    %v2457 = vrot.slane %v2456, 4
    %v2458 = vadd.f32 %v2456, %v2457
    %v2459 = vrot.slane %v2458, 2
    %v2460 = vadd.f32 %v2458, %v2459
    %v2461 = vrot.slane %v2460, 1
    %v2462 = vadd.f32 %v2460, %v2461
    %v2463 = vmul.f32 %v2462, %v472
    %v2464 = vsub.f32 %v2298, %v2463
    %v2465 = vsub.f32 %v2301, %v2463
    %v2466 = vsub.f32 %v2306, %v2463
    %v2467 = vsub.f32 %v2309, %v2463
    %v2468 = vsub.f32 %v2314, %v2463
    %v2469 = vsub.f32 %v2317, %v2463
    %v2470 = vsub.f32 %v2322, %v2463
    %v2471 = vsub.f32 %v2325, %v2463
    %v2472 = vsub.f32 %v2330, %v2463
    %v2473 = vsub.f32 %v2333, %v2463
    %v2474 = vsub.f32 %v2338, %v2463
    %v2475 = vsub.f32 %v2341, %v2463
    %v2476 = vsub.f32 %v2346, %v2463
    %v2477 = vsub.f32 %v2349, %v2463
    %v2478 = vsub.f32 %v2354, %v2463
    %v2479 = vsub.f32 %v2357, %v2463
    %v2480 = vsub.f32 %v2362, %v2463
    %v2481 = vsub.f32 %v2365, %v2463
    %v2482 = vsub.f32 %v2370, %v2463
    %v2483 = vsub.f32 %v2373, %v2463
    %v2484 = vsub.f32 %v2378, %v2463
    %v2485 = vsub.f32 %v2381, %v2463
    %v2486 = vsub.f32 %v2386, %v2463
    %v2487 = vsub.f32 %v2389, %v2463
    %v2488 = vsub.f32 %v2394, %v2463
    %v2489 = vsub.f32 %v2397, %v2463
    %v2490 = vsub.f32 %v2402, %v2463
    %v2491 = vsub.f32 %v2405, %v2463
    %v2492 = vsub.f32 %v2410, %v2463
    %v2493 = vsub.f32 %v2413, %v2463
    %v2494 = vsub.f32 %v2418, %v2463
    %v2495 = vsub.f32 %v2421, %v2463
    %v2496 = vmul.f32 %v2464, %v2464
    %v2497 = vmul.f32 %v2465, %v2465
    %v2498 = vmul.f32 %v2466, %v2466
    %v2499 = vmul.f32 %v2467, %v2467
    %v2500 = vmul.f32 %v2468, %v2468
    %v2501 = vmul.f32 %v2469, %v2469
    %v2502 = vmul.f32 %v2470, %v2470
    %v2503 = vmul.f32 %v2471, %v2471
    %v2504 = vmul.f32 %v2472, %v2472
    %v2505 = vmul.f32 %v2473, %v2473
    %v2506 = vmul.f32 %v2474, %v2474
    %v2507 = vmul.f32 %v2475, %v2475
    %v2508 = vmul.f32 %v2476, %v2476
    %v2509 = vmul.f32 %v2477, %v2477
    %v2510 = vmul.f32 %v2478, %v2478
    %v2511 = vmul.f32 %v2479, %v2479
    %v2512 = vmul.f32 %v2480, %v2480
    %v2513 = vmul.f32 %v2481, %v2481
    %v2514 = vmul.f32 %v2482, %v2482
    %v2515 = vmul.f32 %v2483, %v2483
    %v2516 = vmul.f32 %v2484, %v2484
    %v2517 = vmul.f32 %v2485, %v2485
    %v2518 = vmul.f32 %v2486, %v2486
    %v2519 = vmul.f32 %v2487, %v2487
    %v2520 = vmul.f32 %v2488, %v2488
    %v2521 = vmul.f32 %v2489, %v2489
    %v2522 = vmul.f32 %v2490, %v2490
    %v2523 = vmul.f32 %v2491, %v2491
    %v2524 = vmul.f32 %v2492, %v2492
    %v2525 = vmul.f32 %v2493, %v2493
    %v2526 = vmul.f32 %v2494, %v2494
    %v2527 = vmul.f32 %v2495, %v2495
    %v2528 = vadd.f32 %v2496, %v2497
    %v2529 = vadd.f32 %v2528, %v2498
    %v2530 = vadd.f32 %v2529, %v2499
    %v2531 = vadd.f32 %v2530, %v2500
    %v2532 = vadd.f32 %v2531, %v2501
    %v2533 = vadd.f32 %v2532, %v2502
    %v2534 = vadd.f32 %v2533, %v2503
    %v2535 = vadd.f32 %v2534, %v2504
    %v2536 = vadd.f32 %v2535, %v2505
    %v2537 = vadd.f32 %v2536, %v2506
    %v2538 = vadd.f32 %v2537, %v2507
    %v2539 = vadd.f32 %v2538, %v2508
    %v2540 = vadd.f32 %v2539, %v2509
    %v2541 = vadd.f32 %v2540, %v2510
    %v2542 = vadd.f32 %v2541, %v2511
    %v2543 = vadd.f32 %v2542, %v2512
    %v2544 = vadd.f32 %v2543, %v2513
    %v2545 = vadd.f32 %v2544, %v2514
    %v2546 = vadd.f32 %v2545, %v2515
    %v2547 = vadd.f32 %v2546, %v2516
    %v2548 = vadd.f32 %v2547, %v2517
    %v2549 = vadd.f32 %v2548, %v2518
    %v2550 = vadd.f32 %v2549, %v2519
    %v2551 = vadd.f32 %v2550, %v2520
    %v2552 = vadd.f32 %v2551, %v2521
    %v2553 = vadd.f32 %v2552, %v2522
    %v2554 = vadd.f32 %v2553, %v2523
    %v2555 = vadd.f32 %v2554, %v2524
    %v2556 = vadd.f32 %v2555, %v2525
    %v2557 = vadd.f32 %v2556, %v2526
    %v2558 = vadd.f32 %v2557, %v2527
    %v2559 = vrot.slane %v2558, 4
    %v2560 = vadd.f32 %v2558, %v2559
    %v2561 = vrot.slane %v2560, 2
    %v2562 = vadd.f32 %v2560, %v2561
    %v2563 = vrot.slane %v2562, 1
    %v2564 = vadd.f32 %v2562, %v2563
    %v2565 = vmul.f32 %v2564, %v472
    %v2566 = vadd.f32 %v2565, 1e-05
    %v2567 = vrsqrt.pop %v2566
    %v2568 = vmul.f32 %v2424, %v2567
    %v2569 = vmul.f32 %v2464, %v2568
    %v2570 = vmul.f32 %v2465, %v2568
    %v2571 = vmul.f32 %v2466, %v2568
    %v2572 = vmul.f32 %v2467, %v2568
    %v2573 = vmul.f32 %v2468, %v2568
    %v2574 = vmul.f32 %v2469, %v2568
    %v2575 = vmul.f32 %v2470, %v2568
    %v2576 = vmul.f32 %v2471, %v2568
    %v2577 = vmul.f32 %v2472, %v2568
    %v2578 = vmul.f32 %v2473, %v2568
    %v2579 = vmul.f32 %v2474, %v2568
    %v2580 = vmul.f32 %v2475, %v2568
    %v2581 = vmul.f32 %v2476, %v2568
    %v2582 = vmul.f32 %v2477, %v2568
    %v2583 = vmul.f32 %v2478, %v2568
    %v2584 = vmul.f32 %v2479, %v2568
    %v2585 = vmul.f32 %v2480, %v2568
    %v2586 = vmul.f32 %v2481, %v2568
    %v2587 = vmul.f32 %v2482, %v2568
    %v2588 = vmul.f32 %v2483, %v2568
    %v2589 = vmul.f32 %v2484, %v2568
    %v2590 = vmul.f32 %v2485, %v2568
    %v2591 = vmul.f32 %v2486, %v2568
    %v2592 = vmul.f32 %v2487, %v2568
    %v2593 = vmul.f32 %v2488, %v2568
    %v2594 = vmul.f32 %v2489, %v2568
    %v2595 = vmul.f32 %v2490, %v2568
    %v2596 = vmul.f32 %v2491, %v2568
    %v2597 = vmul.f32 %v2492, %v2568
    %v2598 = vmul.f32 %v2493, %v2568
    %v2599 = vmul.f32 %v2494, %v2568
    %v2600 = vmul.f32 %v2495, %v2568
    %v2601 = vadd.f32 %v2569, %v2425
    %v2602 = vadd.f32 %v2570, %v2425
    %v2603 = vadd.f32 %v2571, %v2425
    %v2604 = vadd.f32 %v2572, %v2425
    %v2605 = vadd.f32 %v2573, %v2425
    %v2606 = vadd.f32 %v2574, %v2425
    %v2607 = vadd.f32 %v2575, %v2425
    %v2608 = vadd.f32 %v2576, %v2425
    %v2609 = vadd.f32 %v2577, %v2425
    %v2610 = vadd.f32 %v2578, %v2425
    %v2611 = vadd.f32 %v2579, %v2425
    %v2612 = vadd.f32 %v2580, %v2425
    %v2613 = vadd.f32 %v2581, %v2425
    %v2614 = vadd.f32 %v2582, %v2425
    %v2615 = vadd.f32 %v2583, %v2425
    %v2616 = vadd.f32 %v2584, %v2425
    %v2617 = vadd.f32 %v2585, %v2425
    %v2618 = vadd.f32 %v2586, %v2425
    %v2619 = vadd.f32 %v2587, %v2425
    %v2620 = vadd.f32 %v2588, %v2425
    %v2621 = vadd.f32 %v2589, %v2425
    %v2622 = vadd.f32 %v2590, %v2425
    %v2623 = vadd.f32 %v2591, %v2425
    %v2624 = vadd.f32 %v2592, %v2425
    %v2625 = vadd.f32 %v2593, %v2425
    %v2626 = vadd.f32 %v2594, %v2425
    %v2627 = vadd.f32 %v2595, %v2425
    %v2628 = vadd.f32 %v2596, %v2425
    %v2629 = vadd.f32 %v2597, %v2425
    %v2630 = vadd.f32 %v2598, %v2425
    %v2631 = vadd.f32 %v2599, %v2425
    %v2632 = vadd.f32 %v2600, %v2425
    %v2633 = vmax.f32 %v2601, 0.0
    %v2634 = vmax.f32 %v2602, 0.0
    %v2635 = vmax.f32 %v2603, 0.0
    %v2636 = vmax.f32 %v2604, 0.0
    %v2637 = vmax.f32 %v2605, 0.0
    %v2638 = vmax.f32 %v2606, 0.0
    %v2639 = vmax.f32 %v2607, 0.0
    %v2640 = vmax.f32 %v2608, 0.0
    %v2641 = vmax.f32 %v2609, 0.0
    %v2642 = vmax.f32 %v2610, 0.0
    %v2643 = vmax.f32 %v2611, 0.0
    %v2644 = vmax.f32 %v2612, 0.0
    %v2645 = vmax.f32 %v2613, 0.0
    %v2646 = vmax.f32 %v2614, 0.0
    %v2647 = vmax.f32 %v2615, 0.0
    %v2648 = vmax.f32 %v2616, 0.0
    %v2649 = vmax.f32 %v2617, 0.0
    %v2650 = vmax.f32 %v2618, 0.0
    %v2651 = vmax.f32 %v2619, 0.0
    %v2652 = vmax.f32 %v2620, 0.0
    %v2653 = vmax.f32 %v2621, 0.0
    %v2654 = vmax.f32 %v2622, 0.0
    %v2655 = vmax.f32 %v2623, 0.0
    %v2656 = vmax.f32 %v2624, 0.0
    %v2657 = vmax.f32 %v2625, 0.0
    %v2658 = vmax.f32 %v2626, 0.0
    %v2659 = vmax.f32 %v2627, 0.0
    %v2660 = vmax.f32 %v2628, 0.0
    %v2661 = vmax.f32 %v2629, 0.0
    %v2662 = vmax.f32 %v2630, 0.0
    %v2663 = vmax.f32 %v2631, 0.0
    %v2664 = vmax.f32 %v2632, 0.0
    %v2665 = vpack.c.bf16 %v2634, %v2633
    %v2666 = vpack.c.bf16 %v2636, %v2635
    %v2667 = vpack.c.bf16 %v2638, %v2637
    %v2668 = vpack.c.bf16 %v2640, %v2639
    %v2669 = vpack.c.bf16 %v2642, %v2641
    %v2670 = vpack.c.bf16 %v2644, %v2643
    %v2671 = vpack.c.bf16 %v2646, %v2645
    %v2672 = vpack.c.bf16 %v2648, %v2647
    %v2673 = vpack.c.bf16 %v2650, %v2649
    %v2674 = vpack.c.bf16 %v2652, %v2651
    %v2675 = vpack.c.bf16 %v2654, %v2653
    %v2676 = vpack.c.bf16 %v2656, %v2655
    %v2677 = vpack.c.bf16 %v2658, %v2657
    %v2678 = vpack.c.bf16 %v2660, %v2659
    %v2679 = vpack.c.bf16 %v2662, %v2661
    %v2680 = vpack.c.bf16 %v2664, %v2663
    %v2681 = vld [vmem:[#allocation17] sm:$0xf]
    %v2682 = vld [vmem:[#allocation17 + $0x4] sm:$0xf]
    %v2683 = vld [vmem:[#allocation17 + $0x8] sm:$0xf]
    %v2684 = vld [vmem:[#allocation17 + $0xc] sm:$0xf]
    %v2685 = vld [vmem:[#allocation17 + $0x10] sm:$0xf]
    %v2686 = vld [vmem:[#allocation17 + $0x14] sm:$0xf]
    %v2687 = vld [vmem:[#allocation17 + $0x18] sm:$0xf]
    %v2688 = vld [vmem:[#allocation17 + $0x1c] sm:$0xf]
    %v2689 = vld [vmem:[#allocation17 + $0x20] sm:$0xf]
    %v2690 = vld [vmem:[#allocation17 + $0x24] sm:$0xf]
    %v2691 = vld [vmem:[#allocation17 + $0x28] sm:$0xf]
    %v2692 = vld [vmem:[#allocation17 + $0x2c] sm:$0xf]
    %v2693 = vld [vmem:[#allocation17 + $0x30] sm:$0xf]
    %v2694 = vld [vmem:[#allocation17 + $0x34] sm:$0xf]
    %v2695 = vld [vmem:[#allocation17 + $0x38] sm:$0xf]
    %v2696 = vld [vmem:[#allocation17 + $0x3c] sm:$0xf]
    %v2697 = vld [vmem:[#allocation8 + $0x11] ss:$0 sm:$0xff]
    %v2714 = vunpack.c.l.b16 %v2681
    %v2715 = vunpack.c.l.b16 %v2682
    %v2716 = vunpack.c.l.b16 %v2683
    %v2717 = vunpack.c.l.b16 %v2684
    %v2718 = vunpack.c.l.b16 %v2685
    %v2719 = vunpack.c.l.b16 %v2686
    %v2720 = vunpack.c.l.b16 %v2687
    %v2721 = vunpack.c.l.b16 %v2688
    %v2722 = vunpack.c.l.b16 %v2689
    %v2723 = vunpack.c.l.b16 %v2690
    %v2724 = vunpack.c.l.b16 %v2691
    %v2725 = vunpack.c.l.b16 %v2692
    %v2726 = vunpack.c.l.b16 %v2693
    %v2727 = vunpack.c.l.b16 %v2694
    %v2728 = vunpack.c.l.b16 %v2695
    %v2729 = vunpack.c.l.b16 %v2696
    %v2730 = vpack.c.b16 %v2715, %v2714
    %v2731 = vpack.c.b16 %v2717, %v2716
    %v2732 = vpack.c.b16 %v2719, %v2718
    %v2733 = vpack.c.b16 %v2721, %v2720
    %v2734 = vpack.c.b16 %v2723, %v2722
    %v2735 = vpack.c.b16 %v2725, %v2724
    %v2736 = vpack.c.b16 %v2727, %v2726
    %v2737 = vpack.c.b16 %v2729, %v2728
    %2746 = vmatprep.subr.bf16.mxu0 0
    %2747 = vmatpush1.bf16.msra.mxu0 %v2730
    %2748 = vmatprep.subr.bf16.mxu0 0
    %2749 = vmatpush1.bf16.msra.mxu0 %v2731
    %2750 = vmatprep.subr.bf16.mxu0 0
    %2751 = vmatpush1.bf16.msra.mxu0 %v2732
    %2752 = vmatprep.subr.bf16.mxu0 0
    %2753 = vmatpush1.bf16.msra.mxu0 %v2733
    %2754 = vmatprep.subr.bf16.mxu0 0
    %2755 = vmatpush1.bf16.msra.mxu0 %v2734
    %2756 = vmatprep.subr.bf16.mxu0 0
    %2757 = vmatpush1.bf16.msra.mxu0 %v2735
    %2758 = vmatprep.subr.bf16.mxu0 0
    %2759 = vmatpush1.bf16.msra.mxu0 %v2736
    %2760 = vmatprep.subr.bf16.mxu0 0
    %2761 = vmatpush1.bf16.msra.mxu0 %v2737
    %2762 = vmatprep.subr.bf16.mxu0 0
    %2763 = vmatpush1.bf16.msra.mxu0 0
    %2764 = vmatprep.subr.bf16.mxu0 0
    %2765 = vmatpush1.bf16.msra.mxu0 0
    %2766 = vmatprep.subr.bf16.mxu0 0
    %2767 = vmatpush1.bf16.msra.mxu0 0
    %2768 = vmatprep.subr.bf16.mxu0 0
    %2769 = vmatpush1.bf16.msra.mxu0 0
    %2770 = vmatprep.subr.bf16.mxu0 0
    %2771 = vmatpush1.bf16.msra.mxu0 0
    %2772 = vmatprep.subr.bf16.mxu0 0
    %2773 = vmatpush1.bf16.msra.mxu0 0
    %2774 = vmatprep.subr.bf16.mxu0 0
    %2775 = vmatpush1.bf16.msra.mxu0 0
    %2776 = vmatprep.subr.bf16.mxu0 0
    %2777 = vmatpush1.bf16.msra.mxu0 0
    %2778 = vmatprep.mubr.bf16.mxu0 0
    %2779 = vmatmul.mubr.bf16.gmra.mrb[0].mxu0 %v2665
    %v2780 = vpop.f32.mrb[0].mxu0
    %v2781 = vadd.f32 %v2697, %v2780
    %v2782 = vpop.f32.mrb[0].mxu0
    %v2783 = vpop.f32.mrb[0].mxu0
    %v2784 = vadd.f32 %v2697, %v2783
    %v2785 = vpop.f32.mrb[0].mxu0
    %2786 = vmatprep.mubr.bf16.mxu0 0
    %2787 = vmatmul.mubr.bf16.gmra.mrb[0].mxu0 %v2666
    %v2788 = vpop.f32.mrb[0].mxu0
    %v2789 = vadd.f32 %v2697, %v2788
    %v2790 = vpop.f32.mrb[0].mxu0
    %v2791 = vpop.f32.mrb[0].mxu0
    %v2792 = vadd.f32 %v2697, %v2791
    %v2793 = vpop.f32.mrb[0].mxu0
    %2794 = vmatprep.mubr.bf16.mxu0 0
    %2795 = vmatmul.mubr.bf16.gmra.mrb[0].mxu0 %v2667
    %v2796 = vpop.f32.mrb[0].mxu0
    %v2797 = vadd.f32 %v2697, %v2796
    %v2798 = vpop.f32.mrb[0].mxu0
    %v2799 = vpop.f32.mrb[0].mxu0
    %v2800 = vadd.f32 %v2697, %v2799
    %v2801 = vpop.f32.mrb[0].mxu0
    %2802 = vmatprep.mubr.bf16.mxu0 0
    %2803 = vmatmul.mubr.bf16.gmra.mrb[0].mxu0 %v2668
    %v2804 = vpop.f32.mrb[0].mxu0
    %v2805 = vadd.f32 %v2697, %v2804
    %v2806 = vpop.f32.mrb[0].mxu0
    %v2807 = vpop.f32.mrb[0].mxu0
    %v2808 = vadd.f32 %v2697, %v2807
    %v2809 = vpop.f32.mrb[0].mxu0
    %2810 = vmatprep.mubr.bf16.mxu0 0
    %2811 = vmatmul.mubr.bf16.gmra.mrb[0].mxu0 %v2669
    %v2812 = vpop.f32.mrb[0].mxu0
    %v2813 = vadd.f32 %v2697, %v2812
    %v2814 = vpop.f32.mrb[0].mxu0
    %v2815 = vpop.f32.mrb[0].mxu0
    %v2816 = vadd.f32 %v2697, %v2815
    %v2817 = vpop.f32.mrb[0].mxu0
    %2818 = vmatprep.mubr.bf16.mxu0 0
    %2819 = vmatmul.mubr.bf16.gmra.mrb[0].mxu0 %v2670
    %v2820 = vpop.f32.mrb[0].mxu0
    %v2821 = vadd.f32 %v2697, %v2820
    %v2822 = vpop.f32.mrb[0].mxu0
    %v2823 = vpop.f32.mrb[0].mxu0
    %v2824 = vadd.f32 %v2697, %v2823
    %v2825 = vpop.f32.mrb[0].mxu0
    %2826 = vmatprep.mubr.bf16.mxu0 0
    %2827 = vmatmul.mubr.bf16.gmra.mrb[0].mxu0 %v2671
    %v2828 = vpop.f32.mrb[0].mxu0
    %v2829 = vadd.f32 %v2697, %v2828
    %v2830 = vpop.f32.mrb[0].mxu0
    %v2831 = vpop.f32.mrb[0].mxu0
    %v2832 = vadd.f32 %v2697, %v2831
    %v2833 = vpop.f32.mrb[0].mxu0
    %2834 = vmatprep.mubr.bf16.mxu0 0
    %2835 = vmatmul.mubr.bf16.gmra.mrb[0].mxu0 %v2672
    %v2836 = vpop.f32.mrb[0].mxu0
    %v2837 = vadd.f32 %v2697, %v2836
    %v2838 = vpop.f32.mrb[0].mxu0
    %v2839 = vpop.f32.mrb[0].mxu0
    %v2840 = vadd.f32 %v2697, %v2839
    %v2841 = vpop.f32.mrb[0].mxu0
    %2842 = vmatprep.mubr.bf16.mxu0 0
    %2843 = vmatmul.mubr.bf16.gmra.mrb[0].mxu0 %v2673
    %v2844 = vpop.f32.mrb[0].mxu0
    %v2845 = vadd.f32 %v2697, %v2844
    %v2846 = vpop.f32.mrb[0].mxu0
    %v2847 = vpop.f32.mrb[0].mxu0
    %v2848 = vadd.f32 %v2697, %v2847
    %v2849 = vpop.f32.mrb[0].mxu0
    %2850 = vmatprep.mubr.bf16.mxu0 0
    %2851 = vmatmul.mubr.bf16.gmra.mrb[0].mxu0 %v2674
    %v2852 = vpop.f32.mrb[0].mxu0
    %v2853 = vadd.f32 %v2697, %v2852
    %v2854 = vpop.f32.mrb[0].mxu0
    %v2855 = vpop.f32.mrb[0].mxu0
    %v2856 = vadd.f32 %v2697, %v2855
    %v2857 = vpop.f32.mrb[0].mxu0
    %2858 = vmatprep.mubr.bf16.mxu0 0
    %2859 = vmatmul.mubr.bf16.gmra.mrb[0].mxu0 %v2675
    %v2860 = vpop.f32.mrb[0].mxu0
    %v2861 = vadd.f32 %v2697, %v2860
    %v2862 = vpop.f32.mrb[0].mxu0
    %v2863 = vpop.f32.mrb[0].mxu0
    %v2864 = vadd.f32 %v2697, %v2863
    %v2865 = vpop.f32.mrb[0].mxu0
    %2866 = vmatprep.mubr.bf16.mxu0 0
    %2867 = vmatmul.mubr.bf16.gmra.mrb[0].mxu0 %v2676
    %v2868 = vpop.f32.mrb[0].mxu0
    %v2869 = vadd.f32 %v2697, %v2868
    %v2870 = vpop.f32.mrb[0].mxu0
    %v2871 = vpop.f32.mrb[0].mxu0
    %v2872 = vadd.f32 %v2697, %v2871
    %v2873 = vpop.f32.mrb[0].mxu0
    %2874 = vmatprep.mubr.bf16.mxu0 0
    %2875 = vmatmul.mubr.bf16.gmra.mrb[0].mxu0 %v2677
    %v2876 = vpop.f32.mrb[0].mxu0
    %v2877 = vadd.f32 %v2697, %v2876
    %v2878 = vpop.f32.mrb[0].mxu0
    %v2879 = vpop.f32.mrb[0].mxu0
    %v2880 = vadd.f32 %v2697, %v2879
    %v2881 = vpop.f32.mrb[0].mxu0
    %2882 = vmatprep.mubr.bf16.mxu0 0
    %2883 = vmatmul.mubr.bf16.gmra.mrb[0].mxu0 %v2678
    %v2884 = vpop.f32.mrb[0].mxu0
    %v2885 = vadd.f32 %v2697, %v2884
    %v2886 = vpop.f32.mrb[0].mxu0
    %v2887 = vpop.f32.mrb[0].mxu0
    %v2888 = vadd.f32 %v2697, %v2887
    %v2889 = vpop.f32.mrb[0].mxu0
    %2890 = vmatprep.mubr.bf16.mxu0 0
    %2891 = vmatmul.mubr.bf16.gmra.mrb[0].mxu0 %v2679
    %v2892 = vpop.f32.mrb[0].mxu0
    %v2893 = vadd.f32 %v2697, %v2892
    %v2894 = vpop.f32.mrb[0].mxu0
    %v2895 = vpop.f32.mrb[0].mxu0
    %v2896 = vadd.f32 %v2697, %v2895
    %v2897 = vpop.f32.mrb[0].mxu0
    %2898 = vmatprep.mubr.bf16.mxu0 0
    %2899 = vmatmul.mubr.bf16.gmra.mrb[0].mxu0 %v2680
    %v2900 = vpop.f32.mrb[0].mxu0
    %v2901 = vadd.f32 %v2697, %v2900
    %v2902 = vpop.f32.mrb[0].mxu0
    %v2903 = vpop.f32.mrb[0].mxu0
    %v2904 = vadd.f32 %v2697, %v2903
    %v2905 = vpop.f32.mrb[0].mxu0
    %2906 = vdwg.mxu0
    %v2907 = vxor.u32 %v2781, 2147483648
    %v2908 = vxor.u32 %v2784, 2147483648
    %v2909 = vxor.u32 %v2789, 2147483648
    %v2910 = vxor.u32 %v2792, 2147483648
    %v2911 = vxor.u32 %v2797, 2147483648
    %v2912 = vxor.u32 %v2800, 2147483648
    %v2913 = vxor.u32 %v2805, 2147483648
    %v2914 = vxor.u32 %v2808, 2147483648
    %v2915 = vxor.u32 %v2813, 2147483648
    %v2916 = vxor.u32 %v2816, 2147483648
    %v2917 = vxor.u32 %v2821, 2147483648
    %v2918 = vxor.u32 %v2824, 2147483648
    %v2919 = vxor.u32 %v2829, 2147483648
    %v2920 = vxor.u32 %v2832, 2147483648
    %v2921 = vxor.u32 %v2837, 2147483648
    %v2922 = vxor.u32 %v2840, 2147483648
    %v2923 = vxor.u32 %v2845, 2147483648
    %v2924 = vxor.u32 %v2848, 2147483648
    %v2925 = vxor.u32 %v2853, 2147483648
    %v2926 = vxor.u32 %v2856, 2147483648
    %v2927 = vxor.u32 %v2861, 2147483648
    %v2928 = vxor.u32 %v2864, 2147483648
    %v2929 = vxor.u32 %v2869, 2147483648
    %v2930 = vxor.u32 %v2872, 2147483648
    %v2931 = vxor.u32 %v2877, 2147483648
    %v2932 = vxor.u32 %v2880, 2147483648
    %v2933 = vxor.u32 %v2885, 2147483648
    %v2934 = vxor.u32 %v2888, 2147483648
    %v2935 = vxor.u32 %v2893, 2147483648
    %v2936 = vxor.u32 %v2896, 2147483648
    %v2937 = vxor.u32 %v2901, 2147483648
    %v2938 = vxor.u32 %v2904, 2147483648
    %v2939 = vmul.f32 %v2907, 1.442695
    %v2940 = vpow.pop %v2939
    %v2941 = vmul.f32 %v2908, 1.442695
    %v2942 = vpow.pop %v2941
    %v2943 = vmul.f32 %v2909, 1.442695
    %v2944 = vpow.pop %v2943
    %v2945 = vmul.f32 %v2910, 1.442695
    %v2946 = vpow.pop %v2945
    %v2947 = vmul.f32 %v2911, 1.442695
    %v2948 = vpow.pop %v2947
    %v2949 = vmul.f32 %v2912, 1.442695
    %v2950 = vpow.pop %v2949
    %v2951 = vmul.f32 %v2913, 1.442695
    %v2952 = vpow.pop %v2951
    %v2953 = vmul.f32 %v2914, 1.442695
    %v2954 = vpow.pop %v2953
    %v2955 = vmul.f32 %v2915, 1.442695
    %v2956 = vpow.pop %v2955
    %v2957 = vmul.f32 %v2916, 1.442695
    %v2958 = vpow.pop %v2957
    %v2959 = vmul.f32 %v2917, 1.442695
    %v2960 = vpow.pop %v2959
    %v2961 = vmul.f32 %v2918, 1.442695
    %v2962 = vpow.pop %v2961
    %v2963 = vmul.f32 %v2919, 1.442695
    %v2964 = vpow.pop %v2963
    %v2965 = vmul.f32 %v2920, 1.442695
    %v2966 = vpow.pop %v2965
    %v2967 = vmul.f32 %v2921, 1.442695
    %v2968 = vpow.pop %v2967
    %v2969 = vmul.f32 %v2922, 1.442695
    %v2970 = vpow.pop %v2969
    %v2971 = vmul.f32 %v2923, 1.442695
    %v2972 = vpow.pop %v2971
    %v2973 = vmul.f32 %v2924, 1.442695
    %v2974 = vpow.pop %v2973
    %v2975 = vmul.f32 %v2925, 1.442695
    %v2976 = vpow.pop %v2975
    %v2977 = vmul.f32 %v2926, 1.442695
    %v2978 = vpow.pop %v2977
    %v2979 = vmul.f32 %v2927, 1.442695
    %v2980 = vpow.pop %v2979
    %v2981 = vmul.f32 %v2928, 1.442695
    %v2982 = vpow.pop %v2981
    %v2983 = vmul.f32 %v2929, 1.442695
    %v2984 = vpow.pop %v2983
    %v2985 = vmul.f32 %v2930, 1.442695
    %v2986 = vpow.pop %v2985
    %v2987 = vmul.f32 %v2931, 1.442695
    %v2988 = vpow.pop %v2987
    %v2989 = vmul.f32 %v2932, 1.442695
    %v2990 = vpow.pop %v2989
    %v2991 = vmul.f32 %v2933, 1.442695
    %v2992 = vpow.pop %v2991
    %v2993 = vmul.f32 %v2934, 1.442695
    %v2994 = vpow.pop %v2993
    %v2995 = vmul.f32 %v2935, 1.442695
    %v2996 = vpow.pop %v2995
    %v2997 = vmul.f32 %v2936, 1.442695
    %v2998 = vpow.pop %v2997
    %v2999 = vmul.f32 %v2937, 1.442695
    %v3000 = vpow.pop %v2999
    %v3001 = vmul.f32 %v2938, 1.442695
    %v3002 = vpow.pop %v3001
    %v3003 = vadd.f32 %v2940, 1.0
    %v3004 = vadd.f32 %v2942, 1.0
    %v3005 = vadd.f32 %v2944, 1.0
    %v3006 = vadd.f32 %v2946, 1.0
    %v3007 = vadd.f32 %v2948, 1.0
    %v3008 = vadd.f32 %v2950, 1.0
    %v3009 = vadd.f32 %v2952, 1.0
    %v3010 = vadd.f32 %v2954, 1.0
    %v3011 = vadd.f32 %v2956, 1.0
    %v3012 = vadd.f32 %v2958, 1.0
    %v3013 = vadd.f32 %v2960, 1.0
    %v3014 = vadd.f32 %v2962, 1.0
    %v3015 = vadd.f32 %v2964, 1.0
    %v3016 = vadd.f32 %v2966, 1.0
    %v3017 = vadd.f32 %v2968, 1.0
    %v3018 = vadd.f32 %v2970, 1.0
    %v3019 = vadd.f32 %v2972, 1.0
    %v3020 = vadd.f32 %v2974, 1.0
    %v3021 = vadd.f32 %v2976, 1.0
    %v3022 = vadd.f32 %v2978, 1.0
    %v3023 = vadd.f32 %v2980, 1.0
    %v3024 = vadd.f32 %v2982, 1.0
    %v3025 = vadd.f32 %v2984, 1.0
    %v3026 = vadd.f32 %v2986, 1.0
    %v3027 = vadd.f32 %v2988, 1.0
    %v3028 = vadd.f32 %v2990, 1.0
    %v3029 = vadd.f32 %v2992, 1.0
    %v3030 = vadd.f32 %v2994, 1.0
    %v3031 = vadd.f32 %v2996, 1.0
    %v3032 = vadd.f32 %v2998, 1.0
    %v3033 = vadd.f32 %v3000, 1.0
    %v3034 = vadd.f32 %v3002, 1.0
    %v3035 = vrcp.pop %v3003
    %v3036 = vmul.f32 1.0, %v3035
    %v3037 = vrcp.pop %v3004
    %v3038 = vmul.f32 1.0, %v3037
    %v3039 = vrcp.pop %v3005
    %v3040 = vmul.f32 1.0, %v3039
    %v3041 = vrcp.pop %v3006
    %v3042 = vmul.f32 1.0, %v3041
    %v3043 = vrcp.pop %v3007
    %v3044 = vmul.f32 1.0, %v3043
    %v3045 = vrcp.pop %v3008
    %v3046 = vmul.f32 1.0, %v3045
    %v3047 = vrcp.pop %v3009
    %v3048 = vmul.f32 1.0, %v3047
    %v3049 = vrcp.pop %v3010
    %v3050 = vmul.f32 1.0, %v3049
    %v3051 = vrcp.pop %v3011
    %v3052 = vmul.f32 1.0, %v3051
    %v3053 = vrcp.pop %v3012
    %v3054 = vmul.f32 1.0, %v3053
    %v3055 = vrcp.pop %v3013
    %v3056 = vmul.f32 1.0, %v3055
    %v3057 = vrcp.pop %v3014
    %v3058 = vmul.f32 1.0, %v3057
    %v3059 = vrcp.pop %v3015
    %v3060 = vmul.f32 1.0, %v3059
    %v3061 = vrcp.pop %v3016
    %v3062 = vmul.f32 1.0, %v3061
    %v3063 = vrcp.pop %v3017
    %v3064 = vmul.f32 1.0, %v3063
    %v3065 = vrcp.pop %v3018
    %v3066 = vmul.f32 1.0, %v3065
    %v3067 = vrcp.pop %v3019
    %v3068 = vmul.f32 1.0, %v3067
    %v3069 = vrcp.pop %v3020
    %v3070 = vmul.f32 1.0, %v3069
    %v3071 = vrcp.pop %v3021
    %v3072 = vmul.f32 1.0, %v3071
    %v3073 = vrcp.pop %v3022
    %v3074 = vmul.f32 1.0, %v3073
    %v3075 = vrcp.pop %v3023
    %v3076 = vmul.f32 1.0, %v3075
    %v3077 = vrcp.pop %v3024
    %v3078 = vmul.f32 1.0, %v3077
    %v3079 = vrcp.pop %v3025
    %v3080 = vmul.f32 1.0, %v3079
    %v3081 = vrcp.pop %v3026
    %v3082 = vmul.f32 1.0, %v3081
    %v3083 = vrcp.pop %v3027
    %v3084 = vmul.f32 1.0, %v3083
    %v3085 = vrcp.pop %v3028
    %v3086 = vmul.f32 1.0, %v3085
    %v3087 = vrcp.pop %v3029
    %v3088 = vmul.f32 1.0, %v3087
    %v3089 = vrcp.pop %v3030
    %v3090 = vmul.f32 1.0, %v3089
    %v3091 = vrcp.pop %v3031
    %v3092 = vmul.f32 1.0, %v3091
    %v3093 = vrcp.pop %v3032
    %v3094 = vmul.f32 1.0, %v3093
    %v3095 = vrcp.pop %v3033
    %v3096 = vmul.f32 1.0, %v3095
    %v3097 = vrcp.pop %v3034
    %v3098 = vmul.f32 1.0, %v3097
    %3099 = vst [vmem:[#allocation18] sm:$0xff] %v3036
    %3100 = vst [vmem:[#allocation18 + $0x18] sm:$0xff] %v3038
    %3101 = vst [vmem:[#allocation18 + $0x30] sm:$0xff] %v3040
    %3102 = vst [vmem:[#allocation18 + $0x48] sm:$0xff] %v3042
    %3103 = vst [vmem:[#allocation18 + $0x60] sm:$0xff] %v3044
    %3104 = vst [vmem:[#allocation18 + $0x78] sm:$0xff] %v3046
    %3105 = vst [vmem:[#allocation18 + $0x90] sm:$0xff] %v3048
    %3106 = vst [vmem:[#allocation18 + $0xa8] sm:$0xff] %v3050
    %3107 = vst [vmem:[#allocation18 + $0xc0] sm:$0xff] %v3052
    %3108 = vst [vmem:[#allocation18 + $0xd8] sm:$0xff] %v3054
    %3109 = vst [vmem:[#allocation18 + $0xf0] sm:$0xff] %v3056
    %3110 = vst [vmem:[#allocation18 + $0x108] sm:$0xff] %v3058
    %3111 = vst [vmem:[#allocation18 + $0x120] sm:$0xff] %v3060
    %3112 = vst [vmem:[#allocation18 + $0x138] sm:$0xff] %v3062
    %3113 = vst [vmem:[#allocation18 + $0x150] sm:$0xff] %v3064
    %3114 = vst [vmem:[#allocation18 + $0x168] sm:$0xff] %v3066
    %3115 = vst [vmem:[#allocation18 + $0x180] sm:$0xff] %v3068
    %3116 = vst [vmem:[#allocation18 + $0x198] sm:$0xff] %v3070
    %3117 = vst [vmem:[#allocation18 + $0x1b0] sm:$0xff] %v3072
    %3118 = vst [vmem:[#allocation18 + $0x1c8] sm:$0xff] %v3074
    %3119 = vst [vmem:[#allocation18 + $0x1e0] sm:$0xff] %v3076
    %3120 = vst [vmem:[#allocation18 + $0x1f8] sm:$0xff] %v3078
    %3121 = vst [vmem:[#allocation18 + $0x210] sm:$0xff] %v3080
    %3122 = vst [vmem:[#allocation18 + $0x228] sm:$0xff] %v3082
    %3123 = vst [vmem:[#allocation18 + $0x240] sm:$0xff] %v3084
    %3124 = vst [vmem:[#allocation18 + $0x258] sm:$0xff] %v3086
    %3125 = vst [vmem:[#allocation18 + $0x270] sm:$0xff] %v3088
    %3126 = vst [vmem:[#allocation18 + $0x288] sm:$0xff] %v3090
    %3127 = vst [vmem:[#allocation18 + $0x2a0] sm:$0xff] %v3092
    %3128 = vst [vmem:[#allocation18 + $0x2b8] sm:$0xff] %v3094
    %3129 = vst [vmem:[#allocation18 + $0x2d0] sm:$0xff] %v3096
    %3130 = vst [vmem:[#allocation18 + $0x2e8] sm:$0xff] %v3098
    %3131 = vst [vmem:[#allocation18 + $0x8] sm:$0xff] %v1317
    %3132 = vst [vmem:[#allocation18 + $0x10] sm:$0xff] %v1319
    %3133 = vst [vmem:[#allocation18 + $0x20] sm:$0xff] %v1321
    %3134 = vst [vmem:[#allocation18 + $0x28] sm:$0xff] %v1323
    %3135 = vst [vmem:[#allocation18 + $0x38] sm:$0xff] %v1327
    %3136 = vst [vmem:[#allocation18 + $0x40] sm:$0xff] %v1329
    %3137 = vst [vmem:[#allocation18 + $0x50] sm:$0xff] %v1331
    %3138 = vst [vmem:[#allocation18 + $0x58] sm:$0xff] %v1333
    %3139 = vst [vmem:[#allocation18 + $0x68] sm:$0xff] %v1337
    %3140 = vst [vmem:[#allocation18 + $0x70] sm:$0xff] %v1339
    %3141 = vst [vmem:[#allocation18 + $0x80] sm:$0xff] %v1341
    %3142 = vst [vmem:[#allocation18 + $0x88] sm:$0xff] %v1343
    %3143 = vst [vmem:[#allocation18 + $0x98] sm:$0xff] %v1347
    %3144 = vst [vmem:[#allocation18 + $0xa0] sm:$0xff] %v1349
    %3145 = vst [vmem:[#allocation18 + $0xb0] sm:$0xff] %v1351
    %3146 = vst [vmem:[#allocation18 + $0xb8] sm:$0xff] %v1353
    %3147 = vst [vmem:[#allocation18 + $0xc8] sm:$0xff] %v1357
    %3148 = vst [vmem:[#allocation18 + $0xd0] sm:$0xff] %v1359
    %3149 = vst [vmem:[#allocation18 + $0xe0] sm:$0xff] %v1361
    %3150 = vst [vmem:[#allocation18 + $0xe8] sm:$0xff] %v1363
    %3151 = vst [vmem:[#allocation18 + $0xf8] sm:$0xff] %v1367
    %3152 = vst [vmem:[#allocation18 + $0x100] sm:$0xff] %v1369
    %3153 = vst [vmem:[#allocation18 + $0x110] sm:$0xff] %v1371
    %3154 = vst [vmem:[#allocation18 + $0x118] sm:$0xff] %v1373
    %3155 = vst [vmem:[#allocation18 + $0x128] sm:$0xff] %v1377
    %3156 = vst [vmem:[#allocation18 + $0x130] sm:$0xff] %v1379
    %3157 = vst [vmem:[#allocation18 + $0x140] sm:$0xff] %v1381
    %3158 = vst [vmem:[#allocation18 + $0x148] sm:$0xff] %v1383
    %3159 = vst [vmem:[#allocation18 + $0x158] sm:$0xff] %v1387
    %3160 = vst [vmem:[#allocation18 + $0x160] sm:$0xff] %v1389
    %3161 = vst [vmem:[#allocation18 + $0x170] sm:$0xff] %v1391
    %3162 = vst [vmem:[#allocation18 + $0x178] sm:$0xff] %v1393
    %3163 = vst [vmem:[#allocation18 + $0x188] sm:$0xff] %v1397
    %3164 = vst [vmem:[#allocation18 + $0x190] sm:$0xff] %v1399
    %3165 = vst [vmem:[#allocation18 + $0x1a0] sm:$0xff] %v1401
    %3166 = vst [vmem:[#allocation18 + $0x1a8] sm:$0xff] %v1403
    %3167 = vst [vmem:[#allocation18 + $0x1b8] sm:$0xff] %v1407
    %3168 = vst [vmem:[#allocation18 + $0x1c0] sm:$0xff] %v1409
    %3169 = vst [vmem:[#allocation18 + $0x1d0] sm:$0xff] %v1411
    %3170 = vst [vmem:[#allocation18 + $0x1d8] sm:$0xff] %v1413
    %3171 = vst [vmem:[#allocation18 + $0x1e8] sm:$0xff] %v1417
    %3172 = vst [vmem:[#allocation18 + $0x1f0] sm:$0xff] %v1419
    %3173 = vst [vmem:[#allocation18 + $0x200] sm:$0xff] %v1421
    %3174 = vst [vmem:[#allocation18 + $0x208] sm:$0xff] %v1423
    %3175 = vst [vmem:[#allocation18 + $0x218] sm:$0xff] %v1427
    %3176 = vst [vmem:[#allocation18 + $0x220] sm:$0xff] %v1429
    %3177 = vst [vmem:[#allocation18 + $0x230] sm:$0xff] %v1431
    %3178 = vst [vmem:[#allocation18 + $0x238] sm:$0xff] %v1433
    %3179 = vst [vmem:[#allocation18 + $0x248] sm:$0xff] %v1437
    %3180 = vst [vmem:[#allocation18 + $0x250] sm:$0xff] %v1439
    %3181 = vst [vmem:[#allocation18 + $0x260] sm:$0xff] %v1441
    %3182 = vst [vmem:[#allocation18 + $0x268] sm:$0xff] %v1443
    %3183 = vst [vmem:[#allocation18 + $0x278] sm:$0xff] %v1447
    %3184 = vst [vmem:[#allocation18 + $0x280] sm:$0xff] %v1449
    %3185 = vst [vmem:[#allocation18 + $0x290] sm:$0xff] %v1451
    %3186 = vst [vmem:[#allocation18 + $0x298] sm:$0xff] %v1453
    %3187 = vst [vmem:[#allocation18 + $0x2a8] sm:$0xff] %v1457
    %3188 = vst [vmem:[#allocation18 + $0x2b0] sm:$0xff] %v1459
    %3189 = vst [vmem:[#allocation18 + $0x2c0] sm:$0xff] %v1461
    %3190 = vst [vmem:[#allocation18 + $0x2c8] sm:$0xff] %v1463
    %3191 = vst [vmem:[#allocation18 + $0x2d8] sm:$0xff] %v1467
    %3192 = vst [vmem:[#allocation18 + $0x2e0] sm:$0xff] %v1469
    %3193 = vst [vmem:[#allocation18 + $0x2f0] sm:$0xff] %v1471
    %3194 = vst [vmem:[#allocation18 + $0x2f8] sm:$0xff] %v1473
    // Predicated region
    $region78: #{tpu_custom_call.1} parent=1 // pred_check
      _
    $region79: #{tpu_custom_call.1} parent=1 // pred_check_branch
      %3196 = sbr.rel (0) target = $region81
    $region80: #{tpu_custom_call.1} parent=1 // pred_region
      %s3198 = ssub.s32 12288, 12288
      %3199 = vsyncadd [#allocation5], %s3198
      %s3200 = sshll.u32 [#allocation18], 4
      %s3201 = int_to_ptr.vmem [resolvable:$true] %s3200
      %3206 = dma.vmem_to_hbm [thread:$0]  %s3201, 12288, %s10, [#allocation5], 384, 384, 24
    $region81: #{tpu_custom_call.1} parent=1 // pred_fallthru
      _
    // Predicated region
    $region82: #{tpu_custom_call.1} parent=1 // pred_check
      _
    $region83: #{tpu_custom_call.1} parent=1 // pred_check_branch
      %3208 = sbr.rel (0) target = $region85
    $region84: #{tpu_custom_call.1} parent=1 // pred_region
      %3209 = dma.done [#allocation5], 12288
    $region85: #{tpu_custom_call.1} parent=1 // pred_fallthru
      _
    %3210 = vsyncpa [#allocation4], 1
    %3211 = vsyncpa [#allocation7], 1
    %3212 = vsyncpa [#allocation10], 1
    %3213 = vsyncpa [#allocation13], 1
    %3214 = vsyncpa [#allocation16], 1
    %3215 = vsyncpa [#allocation5], 1

</llo_original>
